<compile_context>
chip_gen: v6e
topology: v6e:2x2x1
jax: 0.10.0
libtpu: 0.0.40
codegen_flags: <defaults>
</compile_context>

<pallas_src>
import math
from functools import partial

import jax
import jax.numpy as jnp
from jax.experimental import pallas as pl
from jax.experimental.pallas import tpu as pltpu


# --------------------------- small static helpers --------------------------- #

def _align8(n):
    return ((n + 7) // 8) * 8


def _slab_offsets(S, F, D):
    """Row offsets of the packed 'globals' slab (shared by packer & kernel)."""
    pe_off = 8                                   # rows 0/1: fc1 bias / out bias
    emb_off = pe_off + _align8(S)                # input-embedding weight (F, D)
    outw_off = emb_off + _align8(F)              # output-layer weight (D, data)
    fc1_off = outw_off + _align8(D)              # fc1 all-joints weight (D, S*D)
    total = fc1_off + _align8(D)
    return pe_off, emb_off, outw_off, fc1_off, total


def _iota_floordiv(shape, axis, c):
    """broadcasted_iota(...) // c using only ops that lower on the TPU VPU."""
    if c & (c - 1) == 0:                         # power of two -> exact shift
        i = jax.lax.broadcasted_iota(jnp.int32, shape, axis)
        return jnp.right_shift(i, c.bit_length() - 1)
    i = jax.lax.broadcasted_iota(jnp.float32, shape, axis)
    return jnp.floor(i * (1.0 / c) + 1e-4).astype(jnp.int32)


def _iota_mod(shape, axis, c):
    if c & (c - 1) == 0:
        i = jax.lax.broadcasted_iota(jnp.int32, shape, axis)
        return jnp.bitwise_and(i, c - 1)
    i = jax.lax.broadcasted_iota(jnp.int32, shape, axis)
    return i - c * _iota_floordiv(shape, axis, c)


def _layernorm(x, gamma, beta, eps=1e-5):
    # PyTorch LayerNorm over the last dim, biased variance.
    mu = jnp.mean(x, axis=-1, keepdims=True)
    var = jnp.mean(jnp.square(x - mu), axis=-1, keepdims=True)
    return (x - mu) * jax.lax.rsqrt(var + eps) * gamma + beta


# ------------------------------ fused kernel -------------------------------- #

def _fused_forward_kernel(x_ref, slab_ref, wqkv_ref, wo_ref, w1_ref, w2_ref,
                          vecs_ref, o_ref, *, num_heads):
    """Whole-model forward in one invocation (no grid)."""
    B, S, F = x_ref.shape
    BS = B * S
    L, D, _ = wo_ref.shape
    H = num_heads
    dh = D // H
    qkv_stride = wqkv_ref.shape[2] // 3          # per-projection lane stride
    d_ff = w1_ref.shape[2]
    data_size = o_ref.shape[1]
    scale = 1.0 / math.sqrt(dh)

    pe_off, emb_off, outw_off, fc1_off, _ = _slab_offsets(S, F, D)
    fc1_b = slab_ref[0:1, :D]
    out_b = slab_ref[1:2, :data_size]
    pe = slab_ref[pe_off:pe_off + S, :D]             # pe + embedding bias
    emb_w = slab_ref[emb_off:emb_off + F, :D]        # (F, D)
    out_w = slab_ref[outw_off:outw_off + D, :data_size]
    fc1_w = slab_ref[fc1_off:fc1_off + D, :S * D]    # (D, S*D)

    # Block-diagonal mask: with (batch, seq) rows flattened to one length axis
    # for the heads-batched einsum, queries may only attend same-sample keys.
    same_batch = (_iota_floordiv((BS, BS), 0, S) ==
                  _iota_floordiv((BS, BS), 1, S))

    # ---- input embedding + positional encoding (emb bias folded into pe) ----
    emb = jnp.dot(x_ref[...].reshape(BS, F), emb_w,
                  preferred_element_type=jnp.float32)            # (BS, D)
    hf = (emb.reshape(B, S, D) + pe).reshape(BS, D)

    # ---- encoder layers (static unroll) ----
    for li in range(L):
        vecs = vecs_ref[li]                                      # (10, d_ff)
        bq, bk, bv = vecs[0:1, :D], vecs[1:2, :D], vecs[2:3, :D]
        bo = vecs[3:4, :D]
        g1, be1 = vecs[4:5, :D], vecs[5:6, :D]
        b1 = vecs[6:7, :d_ff]
        b2 = vecs[7:8, :D]
        g2, be2 = vecs[8:9, :D], vecs[9:10, :D]

        # Fused QKV: each projection sits on its own 128-lane tile, so the
        # three splits below start at lane-tile boundaries (no lane rotates).
        qkv = jnp.dot(hf, wqkv_ref[li], preferred_element_type=jnp.float32)
        q_flat = qkv[:, 0:D] + bq                                # (BS, D)
        k_flat = qkv[:, qkv_stride:qkv_stride + D] + bk
        v_flat = qkv[:, 2 * qkv_stride:2 * qkv_stride + D] + bv

        # Heads are the single leading batch dim of ONE batched einsum pair and
        # ONE softmax (instead of H serial matmul/softmax chains).
        q_h = jnp.stack([q_flat[:, h * dh:(h + 1) * dh] for h in range(H)], 0)
        k_h = jnp.stack([k_flat[:, h * dh:(h + 1) * dh] for h in range(H)], 0)
        v_h = jnp.stack([v_flat[:, h * dh:(h + 1) * dh] for h in range(H)], 0)

        s = jnp.einsum('hqd,hkd->hqk', q_h, k_h,
                       preferred_element_type=jnp.float32) * scale
        s = jnp.where(same_batch[None, :, :], s, -1e30)
        s = s - jnp.max(s, axis=-1, keepdims=True)
        p = jnp.exp(s)
        p = p / jnp.sum(p, axis=-1, keepdims=True)               # exact divide
        ctx = jnp.einsum('hqk,hkd->hqd', p, v_h,
                         preferred_element_type=jnp.float32)     # (H, BS, dh)
        attn = jnp.concatenate([ctx[h] for h in range(H)], axis=-1)

        attn_out = jnp.dot(attn, wo_ref[li],
                           preferred_element_type=jnp.float32) + bo
        h1 = _layernorm(hf + attn_out, g1, be1)

        # position-wise feed forward
        ff = jnp.maximum(
            jnp.dot(h1, w1_ref[li], preferred_element_type=jnp.float32) + b1,
            0.0)
        ff = jnp.dot(ff, w2_ref[li], preferred_element_type=jnp.float32) + b2
        hf = _layernorm(h1 + ff, g2, be2)

    # ---- fc1 over the flattened per-sample (S*D) features ----
    # One (BS, D) @ (D, S*D) matmul computes every (row, joint-weight) product;
    # a diagonal mask keeps the matching joint, a sublane reduce folds the S
    # rows of each sample, and a 0/1 selection matmul folds the S lane blocks.
    # Two MXU pushes total, and no lane-dim reshape is ever needed.
    r = jnp.dot(hf, fc1_w, preferred_element_type=jnp.float32)   # (BS, S*D)
    keep = (_iota_mod((BS, S * D), 0, S) ==
            _iota_floordiv((BS, S * D), 1, D))
    r = jnp.where(keep, r, 0.0)
    t = r.reshape(B, S, S * D).sum(axis=1)                       # (B, S*D)
    eye_r = jax.lax.broadcasted_iota(jnp.int32, (D, D), 0)
    eye_c = jax.lax.broadcasted_iota(jnp.int32, (D, D), 1)
    sel = jnp.tile((eye_r == eye_c).astype(jnp.float32), (S, 1))  # (S*D, D)
    fc1_out = jnp.dot(t, sel, preferred_element_type=jnp.float32) + fc1_b

    # ---- output layer ----
    # TODO(synk): output is a (B, data_size) masked store; pad to a lane-dense
    # slab only if this kernel is ever replicated in a tight per-frame loop.
    out = jnp.dot(fc1_out, out_w, preferred_element_type=jnp.float32) + out_b
    o_ref[...] = out.astype(o_ref.dtype)


# ------------------------------ model wrapper -------------------------------- #

def pose_prediction_transformer(x, packed, num_heads):
    """x: (B, S=num_joints, num_joints*data_size) -> (B, data_size)."""
    B, S, F = x.shape
    data_size = packed["data_size"]

    args = [x, packed["slab"], packed["wqkv"], packed["wo"],
            packed["w1"], packed["w2"], packed["vecs"]]

    return pl.pallas_call(
        partial(_fused_forward_kernel, num_heads=num_heads),
        out_shape=jax.ShapeDtypeStruct((B, data_size), jnp.float32),
        in_specs=[pl.BlockSpec(memory_space=pltpu.MemorySpace.VMEM)] * len(args),
        out_specs=pl.BlockSpec(memory_space=pltpu.MemorySpace.VMEM),
    )(*args)


# ------------------------- params (torch layout + pack) ---------------------- #

def make_positional_encoding(d_model, max_len):
    position = jnp.arange(max_len, dtype=jnp.float32)[:, None]
    div_term = jnp.exp(jnp.arange(0, d_model, 2, dtype=jnp.float32)
                       * -(math.log(10000.0) / d_model))
    pe = jnp.zeros((max_len, d_model), dtype=jnp.float32)
    pe = pe.at[:, 0::2].set(jnp.sin(position * div_term))
    pe = pe.at[:, 1::2].set(jnp.cos(position * div_term))
    return pe


def init_linear(key, out_d, in_d):
    # PyTorch-style uniform(-1/sqrt(in), 1/sqrt(in)); weight stored (out, in).
    kw, kb = jax.random.split(key)
    bound = 1.0 / math.sqrt(in_d)
    w = jax.random.uniform(kw, (out_d, in_d), jnp.float32, -bound, bound)
    b = jax.random.uniform(kb, (out_d,), jnp.float32, -bound, bound)
    return w, b


def init_params(key, num_layers, d_model, num_joints, data_size, num_frames):
    in_dim = num_joints * data_size
    d_ff = 4 * d_model
    keys = jax.random.split(key, 3 + num_layers)

    params = {}
    params["emb_w"], params["emb_b"] = init_linear(keys[0], d_model, in_dim)
    params["fc1_w"], params["fc1_b"] = init_linear(keys[1], d_model,
                                                   num_joints * d_model)
    params["out_w"], params["out_b"] = init_linear(keys[2], data_size, d_model)
    params["pe"] = make_positional_encoding(
        d_model, data_size * num_joints * num_frames)

    layers = []
    for li in range(num_layers):
        lk = jax.random.split(keys[3 + li], 6)
        lp = {}
        lp["wq"], lp["bq"] = init_linear(lk[0], d_model, d_model)
        lp["wk"], lp["bk"] = init_linear(lk[1], d_model, d_model)
        lp["wv"], lp["bv"] = init_linear(lk[2], d_model, d_model)
        lp["wo"], lp["bo"] = init_linear(lk[3], d_model, d_model)
        lp["w1"], lp["b1"] = init_linear(lk[4], d_ff, d_model)
        lp["w2"], lp["b2"] = init_linear(lk[5], d_model, d_ff)
        lp["g1"] = jnp.ones((d_model,), jnp.float32)
        lp["be1"] = jnp.zeros((d_model,), jnp.float32)
        lp["g2"] = jnp.ones((d_model,), jnp.float32)
        lp["be2"] = jnp.zeros((d_model,), jnp.float32)
        layers.append(lp)
    params["layers"] = layers
    return params


def pack_params(params, num_joints, data_size):
    """Torch-layout params -> fused-kernel layout:
       - weights pre-transposed to (in, out)
       - Q/K/V fused into one (D, 3*128) tile-aligned matrix per layer
       - per-layer weights stacked along a leading layer axis
       - all global tensors packed into one slab (single DMA)
    """
    D = params["emb_w"].shape[0]
    F = params["emb_w"].shape[1]
    d_ff = params["layers"][0]["w1"].shape[0]
    S = num_joints
    assert data_size <= D <= d_ff, "packing assumes data_size <= d_model <= d_ff"
    qkv_stride = ((D + 127) // 128) * 128

    def row(v):
        return jnp.pad(v, (0, d_ff - v.shape[0]))

    # fc1 weight (D_out, S*D_in) -> "all joints at once" matrix with
    # Wcat[d, s*D + e] = fc1_w[e, s*D + d].
    w3 = params["fc1_w"].reshape(D, S, D).transpose(1, 2, 0)      # [s, d, e]
    fc1_wcat = w3.transpose(1, 0, 2).reshape(D, S * D)            # [d, s*D+e]

    pe_off, emb_off, outw_off, fc1_off, total = _slab_offsets(S, F, D)
    Wcols = max(S * D, D)
    slab = jnp.zeros((total, Wcols), jnp.float32)
    slab = slab.at[0, :D].set(params["fc1_b"])
    slab = slab.at[1, :data_size].set(params["out_b"])
    slab = slab.at[pe_off:pe_off + S, :D].set(
        params["pe"][:S] + params["emb_b"][None, :])              # pe + emb bias
    slab = slab.at[emb_off:emb_off + F, :D].set(params["emb_w"].T)
    slab = slab.at[outw_off:outw_off + D, :data_size].set(params["out_w"].T)
    slab = slab.at[fc1_off:fc1_off + D, :S * D].set(fc1_wcat)

    wqkv_l, wo_l, w1_l, w2_l, vecs_l = [], [], [], [], []
    for lp in params["layers"]:
        wqkv = jnp.zeros((D, 3 * qkv_stride), jnp.float32)
        wqkv = wqkv.at[:, 0:D].set(lp["wq"].T)
        wqkv = wqkv.at[:, qkv_stride:qkv_stride + D].set(lp["wk"].T)
        wqkv = wqkv.at[:, 2 * qkv_stride:2 * qkv_stride + D].set(lp["wv"].T)
        wqkv_l.append(wqkv)
        wo_l.append(lp["wo"].T)
        w1_l.append(lp["w1"].T)
        w2_l.append(lp["w2"].T)
        vecs_l.append(jnp.stack([
            row(lp["bq"]), row(lp["bk"]), row(lp["bv"]), row(lp["bo"]),
            row(lp["g1"]), row(lp["be1"]), lp["b1"], row(lp["b2"]),
            row(lp["g2"]), row(lp["be2"])]))

    return {
        "slab": slab,                        # (total, max(S*D, D))
        "wqkv": jnp.stack(wqkv_l),           # (L, D, 3*qkv_stride)
        "wo": jnp.stack(wo_l),               # (L, D, D)
        "w1": jnp.stack(w1_l),               # (L, D, d_ff)
        "w2": jnp.stack(w2_l),               # (L, d_ff, D)
        "vecs": jnp.stack(vecs_l),           # (L, 10, d_ff)
        "data_size": data_size,
    }


# ---------------------------------- main ------------------------------------ #

if __name__ == "__main__":
    num_layers = 2
    d_model = 32
    num_heads = 4
    num_joints = 8     # also the sequence length (required by x.view + fc1)
    data_size = 4
    num_frames = 5
    batch = 2

    assert d_model % num_heads == 0

    key = jax.random.PRNGKey(0)
    kp, kx = jax.random.split(key)
    params = init_params(kp, num_layers, d_model, num_joints, data_size,
                         num_frames)
    packed = pack_params(params, num_joints, data_size)

    x = jax.random.normal(
        kx, (batch, num_joints, num_joints * data_size), jnp.float32)

    out = pose_prediction_transformer(x, packed, num_heads)
    out = jax.block_until_ready(out)
    assert out.shape == (batch, data_size) and out.dtype == jnp.float32
    print("KERNEL_OK")
</pallas_src>

<mosaic_0001>
module attributes {stable_mosaic.version = 11 : i64} {
  func.func @_fused_forward_kernel(%arg0: memref<2x8x32xf32, #tpu.memory_space<vmem>>, %arg1: memref<112x256xf32, #tpu.memory_space<vmem>>, %arg2: memref<2x32x384xf32, #tpu.memory_space<vmem>>, %arg3: memref<2x32x32xf32, #tpu.memory_space<vmem>>, %arg4: memref<2x32x128xf32, #tpu.memory_space<vmem>>, %arg5: memref<2x128x32xf32, #tpu.memory_space<vmem>>, %arg6: memref<2x10x128xf32, #tpu.memory_space<vmem>>, %arg7: memref<2x4xf32, #tpu.memory_space<vmem>>) attributes {dimension_semantics = [], scalar_prefetch = 0 : i64, scratch_operands = 0 : i64, tpu.core_type = #tpu.core_type<tc>} {
    %c0 = arith.constant 0 : index
    %c0_0 = arith.constant 0 : index
    %0 = vector.load %arg1[%c0, %c0_0] : memref<112x256xf32, #tpu.memory_space<vmem>>, vector<1x32xf32>
    %c1 = arith.constant 1 : index
    %c0_1 = arith.constant 0 : index
    %1 = vector.load %arg1[%c1, %c0_1] : memref<112x256xf32, #tpu.memory_space<vmem>>, vector<1x4xf32>
    %c8 = arith.constant 8 : index
    %c0_2 = arith.constant 0 : index
    %2 = vector.load %arg1[%c8, %c0_2] : memref<112x256xf32, #tpu.memory_space<vmem>>, vector<8x32xf32>
    %c16 = arith.constant 16 : index
    %c0_3 = arith.constant 0 : index
    %3 = vector.load %arg1[%c16, %c0_3] : memref<112x256xf32, #tpu.memory_space<vmem>>, vector<32x32xf32>
    %c48 = arith.constant 48 : index
    %c0_4 = arith.constant 0 : index
    %4 = vector.load %arg1[%c48, %c0_4] : memref<112x256xf32, #tpu.memory_space<vmem>>, vector<32x4xf32>
    %c80 = arith.constant 80 : index
    %c0_5 = arith.constant 0 : index
    %5 = vector.load %arg1[%c80, %c0_5] : memref<112x256xf32, #tpu.memory_space<vmem>>, vector<32x256xf32>
    %6 = tpu.iota {dimensions = array<i32: 0>} : vector<16x16xi32>
    %c3_i32 = arith.constant 3 : i32
    %7 = vector.broadcast %c3_i32 : i32 to vector<16x16xi32>
    %8 = arith.shrsi %6, %7 : vector<16x16xi32>
    %9 = tpu.iota {dimensions = array<i32: 1>} : vector<16x16xi32>
    %c3_i32_6 = arith.constant 3 : i32
    %10 = vector.broadcast %c3_i32_6 : i32 to vector<16x16xi32>
    %11 = arith.shrsi %9, %10 : vector<16x16xi32>
    %12 = arith.cmpi eq, %8, %11 : vector<16x16xi32>
    %c0_7 = arith.constant 0 : index
    %c0_8 = arith.constant 0 : index
    %c0_9 = arith.constant 0 : index
    %13 = vector.load %arg0[%c0_7, %c0_8, %c0_9] : memref<2x8x32xf32, #tpu.memory_space<vmem>>, vector<2x8x32xf32>
    %14 = vector.shape_cast %13 : vector<2x8x32xf32> to vector<16x32xf32>
    %cst = arith.constant dense<0.000000e+00> : vector<16x32xf32>
    %15 = tpu.matmul %14, %3, %cst {dimension_numbers = #tpu.dot_dimension_numbers<[1], [0], [0], [1], [0, 0, 1, 1], [], []>} : vector<16x32xf32>, vector<32x32xf32>, vector<16x32xf32> -> vector<16x32xf32>
    %16 = vector.shape_cast %15 : vector<16x32xf32> to vector<2x8x32xf32>
    %17 = vector.shape_cast %2 : vector<8x32xf32> to vector<1x8x32xf32>
    %18 = vector.broadcast %17 : vector<1x8x32xf32> to vector<2x8x32xf32>
    %19 = arith.addf %16, %18 : vector<2x8x32xf32>
    %20 = vector.shape_cast %19 : vector<2x8x32xf32> to vector<16x32xf32>
    %c0_10 = arith.constant 0 : index
    %c0_11 = arith.constant 0 : index
    %c0_12 = arith.constant 0 : index
    %21 = vector.load %arg6[%c0_10, %c0_11, %c0_12] : memref<2x10x128xf32, #tpu.memory_space<vmem>>, vector<1x10x128xf32>
    %22 = vector.shape_cast %21 : vector<1x10x128xf32> to vector<10x128xf32>
    %23 = vector.extract_strided_slice %22 {offsets = [0, 0], sizes = [1, 32], strides = [1, 1]} : vector<10x128xf32> to vector<1x32xf32>
    %24 = vector.extract_strided_slice %22 {offsets = [1, 0], sizes = [1, 32], strides = [1, 1]} : vector<10x128xf32> to vector<1x32xf32>
    %25 = vector.extract_strided_slice %22 {offsets = [2, 0], sizes = [1, 32], strides = [1, 1]} : vector<10x128xf32> to vector<1x32xf32>
    %26 = vector.extract_strided_slice %22 {offsets = [3, 0], sizes = [1, 32], strides = [1, 1]} : vector<10x128xf32> to vector<1x32xf32>
    %27 = vector.extract_strided_slice %22 {offsets = [4, 0], sizes = [1, 32], strides = [1, 1]} : vector<10x128xf32> to vector<1x32xf32>
    %28 = vector.extract_strided_slice %22 {offsets = [5, 0], sizes = [1, 32], strides = [1, 1]} : vector<10x128xf32> to vector<1x32xf32>
    %29 = vector.extract_strided_slice %22 {offsets = [6, 0], sizes = [1, 128], strides = [1, 1]} : vector<10x128xf32> to vector<1x128xf32>
    %30 = vector.extract_strided_slice %22 {offsets = [7, 0], sizes = [1, 32], strides = [1, 1]} : vector<10x128xf32> to vector<1x32xf32>
    %31 = vector.extract_strided_slice %22 {offsets = [8, 0], sizes = [1, 32], strides = [1, 1]} : vector<10x128xf32> to vector<1x32xf32>
    %32 = vector.extract_strided_slice %22 {offsets = [9, 0], sizes = [1, 32], strides = [1, 1]} : vector<10x128xf32> to vector<1x32xf32>
    %c0_13 = arith.constant 0 : index
    %c0_14 = arith.constant 0 : index
    %c0_15 = arith.constant 0 : index
    %33 = vector.load %arg2[%c0_13, %c0_14, %c0_15] : memref<2x32x384xf32, #tpu.memory_space<vmem>>, vector<1x32x384xf32>
    %34 = vector.shape_cast %33 : vector<1x32x384xf32> to vector<32x384xf32>
    %cst_16 = arith.constant dense<0.000000e+00> : vector<16x384xf32>
    %35 = tpu.matmul %20, %34, %cst_16 {dimension_numbers = #tpu.dot_dimension_numbers<[1], [0], [0], [1], [0, 0, 1, 1], [], []>} : vector<16x32xf32>, vector<32x384xf32>, vector<16x384xf32> -> vector<16x384xf32>
    %36 = vector.extract_strided_slice %35 {offsets = [0, 0], sizes = [16, 32], strides = [1, 1]} : vector<16x384xf32> to vector<16x32xf32>
    %37 = vector.broadcast %23 : vector<1x32xf32> to vector<16x32xf32>
    %38 = arith.addf %36, %37 : vector<16x32xf32>
    %39 = vector.extract_strided_slice %35 {offsets = [0, 128], sizes = [16, 32], strides = [1, 1]} : vector<16x384xf32> to vector<16x32xf32>
    %40 = vector.broadcast %24 : vector<1x32xf32> to vector<16x32xf32>
    %41 = arith.addf %39, %40 : vector<16x32xf32>
    %42 = vector.extract_strided_slice %35 {offsets = [0, 256], sizes = [16, 32], strides = [1, 1]} : vector<16x384xf32> to vector<16x32xf32>
    %43 = vector.broadcast %25 : vector<1x32xf32> to vector<16x32xf32>
    %44 = arith.addf %42, %43 : vector<16x32xf32>
    %45 = vector.extract_strided_slice %38 {offsets = [0, 0], sizes = [16, 8], strides = [1, 1]} : vector<16x32xf32> to vector<16x8xf32>
    %46 = vector.extract_strided_slice %38 {offsets = [0, 8], sizes = [16, 8], strides = [1, 1]} : vector<16x32xf32> to vector<16x8xf32>
    %47 = vector.extract_strided_slice %38 {offsets = [0, 16], sizes = [16, 8], strides = [1, 1]} : vector<16x32xf32> to vector<16x8xf32>
    %48 = vector.extract_strided_slice %38 {offsets = [0, 24], sizes = [16, 8], strides = [1, 1]} : vector<16x32xf32> to vector<16x8xf32>
    %49 = vector.shape_cast %45 : vector<16x8xf32> to vector<1x16x8xf32>
    %50 = vector.shape_cast %46 : vector<16x8xf32> to vector<1x16x8xf32>
    %51 = vector.shape_cast %47 : vector<16x8xf32> to vector<1x16x8xf32>
    %52 = vector.shape_cast %48 : vector<16x8xf32> to vector<1x16x8xf32>
    %53 = tpu.concatenate %49, %50, %51, %52 in 0 : vector<1x16x8xf32>, vector<1x16x8xf32>, vector<1x16x8xf32>, vector<1x16x8xf32> -> vector<4x16x8xf32>
    %54 = vector.extract_strided_slice %41 {offsets = [0, 0], sizes = [16, 8], strides = [1, 1]} : vector<16x32xf32> to vector<16x8xf32>
    %55 = vector.extract_strided_slice %41 {offsets = [0, 8], sizes = [16, 8], strides = [1, 1]} : vector<16x32xf32> to vector<16x8xf32>
    %56 = vector.extract_strided_slice %41 {offsets = [0, 16], sizes = [16, 8], strides = [1, 1]} : vector<16x32xf32> to vector<16x8xf32>
    %57 = vector.extract_strided_slice %41 {offsets = [0, 24], sizes = [16, 8], strides = [1, 1]} : vector<16x32xf32> to vector<16x8xf32>
    %58 = vector.shape_cast %54 : vector<16x8xf32> to vector<1x16x8xf32>
    %59 = vector.shape_cast %55 : vector<16x8xf32> to vector<1x16x8xf32>
    %60 = vector.shape_cast %56 : vector<16x8xf32> to vector<1x16x8xf32>
    %61 = vector.shape_cast %57 : vector<16x8xf32> to vector<1x16x8xf32>
    %62 = tpu.concatenate %58, %59, %60, %61 in 0 : vector<1x16x8xf32>, vector<1x16x8xf32>, vector<1x16x8xf32>, vector<1x16x8xf32> -> vector<4x16x8xf32>
    %63 = vector.extract_strided_slice %44 {offsets = [0, 0], sizes = [16, 8], strides = [1, 1]} : vector<16x32xf32> to vector<16x8xf32>
    %64 = vector.extract_strided_slice %44 {offsets = [0, 8], sizes = [16, 8], strides = [1, 1]} : vector<16x32xf32> to vector<16x8xf32>
    %65 = vector.extract_strided_slice %44 {offsets = [0, 16], sizes = [16, 8], strides = [1, 1]} : vector<16x32xf32> to vector<16x8xf32>
    %66 = vector.extract_strided_slice %44 {offsets = [0, 24], sizes = [16, 8], strides = [1, 1]} : vector<16x32xf32> to vector<16x8xf32>
    %67 = vector.shape_cast %63 : vector<16x8xf32> to vector<1x16x8xf32>
    %68 = vector.shape_cast %64 : vector<16x8xf32> to vector<1x16x8xf32>
    %69 = vector.shape_cast %65 : vector<16x8xf32> to vector<1x16x8xf32>
    %70 = vector.shape_cast %66 : vector<16x8xf32> to vector<1x16x8xf32>
    %71 = tpu.concatenate %67, %68, %69, %70 in 0 : vector<1x16x8xf32>, vector<1x16x8xf32>, vector<1x16x8xf32>, vector<1x16x8xf32> -> vector<4x16x8xf32>
    "tpu.trace_start"() <{level = 10 : i32, message = "hqd,hkd->hqk"}> : () -> ()
    %cst_17 = arith.constant dense<0.000000e+00> : vector<4x16x16xf32>
    %72 = tpu.matmul %53, %62, %cst_17 {dimension_numbers = #tpu.dot_dimension_numbers<[2], [2], [1], [1], [0, 0, 0, 1, 1, 1], [0], [0]>} : vector<4x16x8xf32>, vector<4x16x8xf32>, vector<4x16x16xf32> -> vector<4x16x16xf32>
    "tpu.trace_stop"() : () -> ()
    %cst_18 = arith.constant 0.353553385 : f32
    %73 = vector.broadcast %cst_18 : f32 to vector<4x16x16xf32>
    %74 = arith.mulf %72, %73 : vector<4x16x16xf32>
    %75 = vector.shape_cast %12 : vector<16x16xi1> to vector<1x16x16xi1>
    %cst_19 = arith.constant -1.000000e+30 : f32
    %76 = vector.shape_cast %75 : vector<1x16x16xi1> to vector<1x16x16xi1>
    %77 = vector.broadcast %76 : vector<1x16x16xi1> to vector<4x16x16xi1>
    %78 = vector.broadcast %cst_19 : f32 to vector<4x16x16xf32>
    %79 = arith.select %77, %74, %78 : vector<4x16x16xi1>, vector<4x16x16xf32>
    %cst_20 = arith.constant dense<0xFF800000> : vector<4x16xf32>
    %80 = vector.multi_reduction <maximumf>, %79, %cst_20 [2] : vector<4x16x16xf32> to vector<4x16xf32>
    %81 = vector.shape_cast %80 : vector<4x16xf32> to vector<4x16x1xf32>
    %82 = vector.broadcast %81 : vector<4x16x1xf32> to vector<4x16x16xf32>
    %83 = arith.subf %79, %82 : vector<4x16x16xf32>
    %84 = math.exp %83 : vector<4x16x16xf32>
    %cst_21 = arith.constant dense<0.000000e+00> : vector<4x16xf32>
    %85 = vector.multi_reduction <add>, %84, %cst_21 [2] : vector<4x16x16xf32> to vector<4x16xf32>
    %86 = vector.shape_cast %85 : vector<4x16xf32> to vector<4x16x1xf32>
    %87 = vector.broadcast %86 : vector<4x16x1xf32> to vector<4x16x16xf32>
    %88 = arith.divf %84, %87 : vector<4x16x16xf32>
    "tpu.trace_start"() <{level = 10 : i32, message = "hqk,hkd->hqd"}> : () -> ()
    %cst_22 = arith.constant dense<0.000000e+00> : vector<4x16x8xf32>
    %89 = tpu.matmul %88, %71, %cst_22 {dimension_numbers = #tpu.dot_dimension_numbers<[2], [1], [1], [2], [0, 0, 0, 1, 1, 2], [0], [0]>} : vector<4x16x16xf32>, vector<4x16x8xf32>, vector<4x16x8xf32> -> vector<4x16x8xf32>
    "tpu.trace_stop"() : () -> ()
    %90 = vector.extract_strided_slice %89 {offsets = [0, 0, 0], sizes = [1, 16, 8], strides = [1, 1, 1]} : vector<4x16x8xf32> to vector<1x16x8xf32>
    %91 = vector.shape_cast %90 : vector<1x16x8xf32> to vector<16x8xf32>
    %92 = vector.extract_strided_slice %89 {offsets = [1, 0, 0], sizes = [1, 16, 8], strides = [1, 1, 1]} : vector<4x16x8xf32> to vector<1x16x8xf32>
    %93 = vector.shape_cast %92 : vector<1x16x8xf32> to vector<16x8xf32>
    %94 = vector.extract_strided_slice %89 {offsets = [2, 0, 0], sizes = [1, 16, 8], strides = [1, 1, 1]} : vector<4x16x8xf32> to vector<1x16x8xf32>
    %95 = vector.shape_cast %94 : vector<1x16x8xf32> to vector<16x8xf32>
    %96 = vector.extract_strided_slice %89 {offsets = [3, 0, 0], sizes = [1, 16, 8], strides = [1, 1, 1]} : vector<4x16x8xf32> to vector<1x16x8xf32>
    %97 = vector.shape_cast %96 : vector<1x16x8xf32> to vector<16x8xf32>
    %98 = tpu.concatenate %91, %93, %95, %97 in 1 : vector<16x8xf32>, vector<16x8xf32>, vector<16x8xf32>, vector<16x8xf32> -> vector<16x32xf32>
    %c0_23 = arith.constant 0 : index
    %c0_24 = arith.constant 0 : index
    %c0_25 = arith.constant 0 : index
    %99 = vector.load %arg3[%c0_23, %c0_24, %c0_25] : memref<2x32x32xf32, #tpu.memory_space<vmem>>, vector<1x32x32xf32>
    %100 = vector.shape_cast %99 : vector<1x32x32xf32> to vector<32x32xf32>
    %cst_26 = arith.constant dense<0.000000e+00> : vector<16x32xf32>
    %101 = tpu.matmul %98, %100, %cst_26 {dimension_numbers = #tpu.dot_dimension_numbers<[1], [0], [0], [1], [0, 0, 1, 1], [], []>} : vector<16x32xf32>, vector<32x32xf32>, vector<16x32xf32> -> vector<16x32xf32>
    %102 = vector.broadcast %26 : vector<1x32xf32> to vector<16x32xf32>
    %103 = arith.addf %101, %102 : vector<16x32xf32>
    %104 = arith.addf %20, %103 : vector<16x32xf32>
    %cst_27 = arith.constant dense<0.000000e+00> : vector<16xf32>
    %105 = vector.multi_reduction <add>, %104, %cst_27 [1] : vector<16x32xf32> to vector<16xf32>
    %106 = vector.shape_cast %105 : vector<16xf32> to vector<16x1xf32>
    %cst_28 = arith.constant 3.200000e+01 : f32
    %107 = vector.broadcast %cst_28 : f32 to vector<16x1xf32>
    %108 = arith.divf %106, %107 : vector<16x1xf32>
    %109 = vector.broadcast %108 : vector<16x1xf32> to vector<16x32xf32>
    %110 = arith.subf %104, %109 : vector<16x32xf32>
    %111 = arith.mulf %110, %110 : vector<16x32xf32>
    %cst_29 = arith.constant dense<0.000000e+00> : vector<16xf32>
    %112 = vector.multi_reduction <add>, %111, %cst_29 [1] : vector<16x32xf32> to vector<16xf32>
    %113 = vector.shape_cast %112 : vector<16xf32> to vector<16x1xf32>
    %cst_30 = arith.constant 3.200000e+01 : f32
    %114 = vector.broadcast %cst_30 : f32 to vector<16x1xf32>
    %115 = arith.divf %113, %114 : vector<16x1xf32>
    %116 = vector.broadcast %108 : vector<16x1xf32> to vector<16x32xf32>
    %117 = arith.subf %104, %116 : vector<16x32xf32>
    %cst_31 = arith.constant 9.99999974E-6 : f32
    %118 = vector.broadcast %cst_31 : f32 to vector<16x1xf32>
    %119 = arith.addf %115, %118 : vector<16x1xf32>
    %120 = math.rsqrt %119 : vector<16x1xf32>
    %121 = vector.broadcast %120 : vector<16x1xf32> to vector<16x32xf32>
    %122 = arith.mulf %117, %121 : vector<16x32xf32>
    %123 = vector.broadcast %27 : vector<1x32xf32> to vector<16x32xf32>
    %124 = arith.mulf %122, %123 : vector<16x32xf32>
    %125 = vector.broadcast %28 : vector<1x32xf32> to vector<16x32xf32>
    %126 = arith.addf %124, %125 : vector<16x32xf32>
    %c0_32 = arith.constant 0 : index
    %c0_33 = arith.constant 0 : index
    %c0_34 = arith.constant 0 : index
    %127 = vector.load %arg4[%c0_32, %c0_33, %c0_34] : memref<2x32x128xf32, #tpu.memory_space<vmem>>, vector<1x32x128xf32>
    %128 = vector.shape_cast %127 : vector<1x32x128xf32> to vector<32x128xf32>
    %cst_35 = arith.constant dense<0.000000e+00> : vector<16x128xf32>
    %129 = tpu.matmul %126, %128, %cst_35 {dimension_numbers = #tpu.dot_dimension_numbers<[1], [0], [0], [1], [0, 0, 1, 1], [], []>} : vector<16x32xf32>, vector<32x128xf32>, vector<16x128xf32> -> vector<16x128xf32>
    %130 = vector.broadcast %29 : vector<1x128xf32> to vector<16x128xf32>
    %131 = arith.addf %129, %130 : vector<16x128xf32>
    %cst_36 = arith.constant 0.000000e+00 : f32
    %132 = vector.broadcast %cst_36 : f32 to vector<16x128xf32>
    %133 = arith.maximumf %131, %132 : vector<16x128xf32>
    %c0_37 = arith.constant 0 : index
    %c0_38 = arith.constant 0 : index
    %c0_39 = arith.constant 0 : index
    %134 = vector.load %arg5[%c0_37, %c0_38, %c0_39] : memref<2x128x32xf32, #tpu.memory_space<vmem>>, vector<1x128x32xf32>
    %135 = vector.shape_cast %134 : vector<1x128x32xf32> to vector<128x32xf32>
    %cst_40 = arith.constant dense<0.000000e+00> : vector<16x32xf32>
    %136 = tpu.matmul %133, %135, %cst_40 {dimension_numbers = #tpu.dot_dimension_numbers<[1], [0], [0], [1], [0, 0, 1, 1], [], []>} : vector<16x128xf32>, vector<128x32xf32>, vector<16x32xf32> -> vector<16x32xf32>
    %137 = vector.broadcast %30 : vector<1x32xf32> to vector<16x32xf32>
    %138 = arith.addf %136, %137 : vector<16x32xf32>
    %139 = arith.addf %126, %138 : vector<16x32xf32>
    %cst_41 = arith.constant dense<0.000000e+00> : vector<16xf32>
    %140 = vector.multi_reduction <add>, %139, %cst_41 [1] : vector<16x32xf32> to vector<16xf32>
    %141 = vector.shape_cast %140 : vector<16xf32> to vector<16x1xf32>
    %cst_42 = arith.constant 3.200000e+01 : f32
    %142 = vector.broadcast %cst_42 : f32 to vector<16x1xf32>
    %143 = arith.divf %141, %142 : vector<16x1xf32>
    %144 = vector.broadcast %143 : vector<16x1xf32> to vector<16x32xf32>
    %145 = arith.subf %139, %144 : vector<16x32xf32>
    %146 = arith.mulf %145, %145 : vector<16x32xf32>
    %cst_43 = arith.constant dense<0.000000e+00> : vector<16xf32>
    %147 = vector.multi_reduction <add>, %146, %cst_43 [1] : vector<16x32xf32> to vector<16xf32>
    %148 = vector.shape_cast %147 : vector<16xf32> to vector<16x1xf32>
    %cst_44 = arith.constant 3.200000e+01 : f32
    %149 = vector.broadcast %cst_44 : f32 to vector<16x1xf32>
    %150 = arith.divf %148, %149 : vector<16x1xf32>
    %151 = vector.broadcast %143 : vector<16x1xf32> to vector<16x32xf32>
    %152 = arith.subf %139, %151 : vector<16x32xf32>
    %cst_45 = arith.constant 9.99999974E-6 : f32
    %153 = vector.broadcast %cst_45 : f32 to vector<16x1xf32>
    %154 = arith.addf %150, %153 : vector<16x1xf32>
    %155 = math.rsqrt %154 : vector<16x1xf32>
    %156 = vector.broadcast %155 : vector<16x1xf32> to vector<16x32xf32>
    %157 = arith.mulf %152, %156 : vector<16x32xf32>
    %158 = vector.broadcast %31 : vector<1x32xf32> to vector<16x32xf32>
    %159 = arith.mulf %157, %158 : vector<16x32xf32>
    %160 = vector.broadcast %32 : vector<1x32xf32> to vector<16x32xf32>
    %161 = arith.addf %159, %160 : vector<16x32xf32>
    %c1_46 = arith.constant 1 : index
    %c0_47 = arith.constant 0 : index
    %c0_48 = arith.constant 0 : index
    %162 = vector.load %arg6[%c1_46, %c0_47, %c0_48] : memref<2x10x128xf32, #tpu.memory_space<vmem>>, vector<1x10x128xf32>
    %163 = vector.shape_cast %162 : vector<1x10x128xf32> to vector<10x128xf32>
    %164 = vector.extract_strided_slice %163 {offsets = [0, 0], sizes = [1, 32], strides = [1, 1]} : vector<10x128xf32> to vector<1x32xf32>
    %165 = vector.extract_strided_slice %163 {offsets = [1, 0], sizes = [1, 32], strides = [1, 1]} : vector<10x128xf32> to vector<1x32xf32>
    %166 = vector.extract_strided_slice %163 {offsets = [2, 0], sizes = [1, 32], strides = [1, 1]} : vector<10x128xf32> to vector<1x32xf32>
    %167 = vector.extract_strided_slice %163 {offsets = [3, 0], sizes = [1, 32], strides = [1, 1]} : vector<10x128xf32> to vector<1x32xf32>
    %168 = vector.extract_strided_slice %163 {offsets = [4, 0], sizes = [1, 32], strides = [1, 1]} : vector<10x128xf32> to vector<1x32xf32>
    %169 = vector.extract_strided_slice %163 {offsets = [5, 0], sizes = [1, 32], strides = [1, 1]} : vector<10x128xf32> to vector<1x32xf32>
    %170 = vector.extract_strided_slice %163 {offsets = [6, 0], sizes = [1, 128], strides = [1, 1]} : vector<10x128xf32> to vector<1x128xf32>
    %171 = vector.extract_strided_slice %163 {offsets = [7, 0], sizes = [1, 32], strides = [1, 1]} : vector<10x128xf32> to vector<1x32xf32>
    %172 = vector.extract_strided_slice %163 {offsets = [8, 0], sizes = [1, 32], strides = [1, 1]} : vector<10x128xf32> to vector<1x32xf32>
    %173 = vector.extract_strided_slice %163 {offsets = [9, 0], sizes = [1, 32], strides = [1, 1]} : vector<10x128xf32> to vector<1x32xf32>
    %c1_49 = arith.constant 1 : index
    %c0_50 = arith.constant 0 : index
    %c0_51 = arith.constant 0 : index
    %174 = vector.load %arg2[%c1_49, %c0_50, %c0_51] : memref<2x32x384xf32, #tpu.memory_space<vmem>>, vector<1x32x384xf32>
    %175 = vector.shape_cast %174 : vector<1x32x384xf32> to vector<32x384xf32>
    %cst_52 = arith.constant dense<0.000000e+00> : vector<16x384xf32>
    %176 = tpu.matmul %161, %175, %cst_52 {dimension_numbers = #tpu.dot_dimension_numbers<[1], [0], [0], [1], [0, 0, 1, 1], [], []>} : vector<16x32xf32>, vector<32x384xf32>, vector<16x384xf32> -> vector<16x384xf32>
    %177 = vector.extract_strided_slice %176 {offsets = [0, 0], sizes = [16, 32], strides = [1, 1]} : vector<16x384xf32> to vector<16x32xf32>
    %178 = vector.broadcast %164 : vector<1x32xf32> to vector<16x32xf32>
    %179 = arith.addf %177, %178 : vector<16x32xf32>
    %180 = vector.extract_strided_slice %176 {offsets = [0, 128], sizes = [16, 32], strides = [1, 1]} : vector<16x384xf32> to vector<16x32xf32>
    %181 = vector.broadcast %165 : vector<1x32xf32> to vector<16x32xf32>
    %182 = arith.addf %180, %181 : vector<16x32xf32>
    %183 = vector.extract_strided_slice %176 {offsets = [0, 256], sizes = [16, 32], strides = [1, 1]} : vector<16x384xf32> to vector<16x32xf32>
    %184 = vector.broadcast %166 : vector<1x32xf32> to vector<16x32xf32>
    %185 = arith.addf %183, %184 : vector<16x32xf32>
    %186 = vector.extract_strided_slice %179 {offsets = [0, 0], sizes = [16, 8], strides = [1, 1]} : vector<16x32xf32> to vector<16x8xf32>
    %187 = vector.extract_strided_slice %179 {offsets = [0, 8], sizes = [16, 8], strides = [1, 1]} : vector<16x32xf32> to vector<16x8xf32>
    %188 = vector.extract_strided_slice %179 {offsets = [0, 16], sizes = [16, 8], strides = [1, 1]} : vector<16x32xf32> to vector<16x8xf32>
    %189 = vector.extract_strided_slice %179 {offsets = [0, 24], sizes = [16, 8], strides = [1, 1]} : vector<16x32xf32> to vector<16x8xf32>
    %190 = vector.shape_cast %186 : vector<16x8xf32> to vector<1x16x8xf32>
    %191 = vector.shape_cast %187 : vector<16x8xf32> to vector<1x16x8xf32>
    %192 = vector.shape_cast %188 : vector<16x8xf32> to vector<1x16x8xf32>
    %193 = vector.shape_cast %189 : vector<16x8xf32> to vector<1x16x8xf32>
    %194 = tpu.concatenate %190, %191, %192, %193 in 0 : vector<1x16x8xf32>, vector<1x16x8xf32>, vector<1x16x8xf32>, vector<1x16x8xf32> -> vector<4x16x8xf32>
    %195 = vector.extract_strided_slice %182 {offsets = [0, 0], sizes = [16, 8], strides = [1, 1]} : vector<16x32xf32> to vector<16x8xf32>
    %196 = vector.extract_strided_slice %182 {offsets = [0, 8], sizes = [16, 8], strides = [1, 1]} : vector<16x32xf32> to vector<16x8xf32>
    %197 = vector.extract_strided_slice %182 {offsets = [0, 16], sizes = [16, 8], strides = [1, 1]} : vector<16x32xf32> to vector<16x8xf32>
    %198 = vector.extract_strided_slice %182 {offsets = [0, 24], sizes = [16, 8], strides = [1, 1]} : vector<16x32xf32> to vector<16x8xf32>
    %199 = vector.shape_cast %195 : vector<16x8xf32> to vector<1x16x8xf32>
    %200 = vector.shape_cast %196 : vector<16x8xf32> to vector<1x16x8xf32>
    %201 = vector.shape_cast %197 : vector<16x8xf32> to vector<1x16x8xf32>
    %202 = vector.shape_cast %198 : vector<16x8xf32> to vector<1x16x8xf32>
    %203 = tpu.concatenate %199, %200, %201, %202 in 0 : vector<1x16x8xf32>, vector<1x16x8xf32>, vector<1x16x8xf32>, vector<1x16x8xf32> -> vector<4x16x8xf32>
    %204 = vector.extract_strided_slice %185 {offsets = [0, 0], sizes = [16, 8], strides = [1, 1]} : vector<16x32xf32> to vector<16x8xf32>
    %205 = vector.extract_strided_slice %185 {offsets = [0, 8], sizes = [16, 8], strides = [1, 1]} : vector<16x32xf32> to vector<16x8xf32>
    %206 = vector.extract_strided_slice %185 {offsets = [0, 16], sizes = [16, 8], strides = [1, 1]} : vector<16x32xf32> to vector<16x8xf32>
    %207 = vector.extract_strided_slice %185 {offsets = [0, 24], sizes = [16, 8], strides = [1, 1]} : vector<16x32xf32> to vector<16x8xf32>
    %208 = vector.shape_cast %204 : vector<16x8xf32> to vector<1x16x8xf32>
    %209 = vector.shape_cast %205 : vector<16x8xf32> to vector<1x16x8xf32>
    %210 = vector.shape_cast %206 : vector<16x8xf32> to vector<1x16x8xf32>
    %211 = vector.shape_cast %207 : vector<16x8xf32> to vector<1x16x8xf32>
    %212 = tpu.concatenate %208, %209, %210, %211 in 0 : vector<1x16x8xf32>, vector<1x16x8xf32>, vector<1x16x8xf32>, vector<1x16x8xf32> -> vector<4x16x8xf32>
    "tpu.trace_start"() <{level = 10 : i32, message = "hqd,hkd->hqk"}> : () -> ()
    %cst_53 = arith.constant dense<0.000000e+00> : vector<4x16x16xf32>
    %213 = tpu.matmul %194, %203, %cst_53 {dimension_numbers = #tpu.dot_dimension_numbers<[2], [2], [1], [1], [0, 0, 0, 1, 1, 1], [0], [0]>} : vector<4x16x8xf32>, vector<4x16x8xf32>, vector<4x16x16xf32> -> vector<4x16x16xf32>
    "tpu.trace_stop"() : () -> ()
    %cst_54 = arith.constant 0.353553385 : f32
    %214 = vector.broadcast %cst_54 : f32 to vector<4x16x16xf32>
    %215 = arith.mulf %213, %214 : vector<4x16x16xf32>
    %216 = vector.shape_cast %12 : vector<16x16xi1> to vector<1x16x16xi1>
    %cst_55 = arith.constant -1.000000e+30 : f32
    %217 = vector.shape_cast %216 : vector<1x16x16xi1> to vector<1x16x16xi1>
    %218 = vector.broadcast %217 : vector<1x16x16xi1> to vector<4x16x16xi1>
    %219 = vector.broadcast %cst_55 : f32 to vector<4x16x16xf32>
    %220 = arith.select %218, %215, %219 : vector<4x16x16xi1>, vector<4x16x16xf32>
    %cst_56 = arith.constant dense<0xFF800000> : vector<4x16xf32>
    %221 = vector.multi_reduction <maximumf>, %220, %cst_56 [2] : vector<4x16x16xf32> to vector<4x16xf32>
    %222 = vector.shape_cast %221 : vector<4x16xf32> to vector<4x16x1xf32>
    %223 = vector.broadcast %222 : vector<4x16x1xf32> to vector<4x16x16xf32>
    %224 = arith.subf %220, %223 : vector<4x16x16xf32>
    %225 = math.exp %224 : vector<4x16x16xf32>
    %cst_57 = arith.constant dense<0.000000e+00> : vector<4x16xf32>
    %226 = vector.multi_reduction <add>, %225, %cst_57 [2] : vector<4x16x16xf32> to vector<4x16xf32>
    %227 = vector.shape_cast %226 : vector<4x16xf32> to vector<4x16x1xf32>
    %228 = vector.broadcast %227 : vector<4x16x1xf32> to vector<4x16x16xf32>
    %229 = arith.divf %225, %228 : vector<4x16x16xf32>
    "tpu.trace_start"() <{level = 10 : i32, message = "hqk,hkd->hqd"}> : () -> ()
    %cst_58 = arith.constant dense<0.000000e+00> : vector<4x16x8xf32>
    %230 = tpu.matmul %229, %212, %cst_58 {dimension_numbers = #tpu.dot_dimension_numbers<[2], [1], [1], [2], [0, 0, 0, 1, 1, 2], [0], [0]>} : vector<4x16x16xf32>, vector<4x16x8xf32>, vector<4x16x8xf32> -> vector<4x16x8xf32>
    "tpu.trace_stop"() : () -> ()
    %231 = vector.extract_strided_slice %230 {offsets = [0, 0, 0], sizes = [1, 16, 8], strides = [1, 1, 1]} : vector<4x16x8xf32> to vector<1x16x8xf32>
    %232 = vector.shape_cast %231 : vector<1x16x8xf32> to vector<16x8xf32>
    %233 = vector.extract_strided_slice %230 {offsets = [1, 0, 0], sizes = [1, 16, 8], strides = [1, 1, 1]} : vector<4x16x8xf32> to vector<1x16x8xf32>
    %234 = vector.shape_cast %233 : vector<1x16x8xf32> to vector<16x8xf32>
    %235 = vector.extract_strided_slice %230 {offsets = [2, 0, 0], sizes = [1, 16, 8], strides = [1, 1, 1]} : vector<4x16x8xf32> to vector<1x16x8xf32>
    %236 = vector.shape_cast %235 : vector<1x16x8xf32> to vector<16x8xf32>
    %237 = vector.extract_strided_slice %230 {offsets = [3, 0, 0], sizes = [1, 16, 8], strides = [1, 1, 1]} : vector<4x16x8xf32> to vector<1x16x8xf32>
    %238 = vector.shape_cast %237 : vector<1x16x8xf32> to vector<16x8xf32>
    %239 = tpu.concatenate %232, %234, %236, %238 in 1 : vector<16x8xf32>, vector<16x8xf32>, vector<16x8xf32>, vector<16x8xf32> -> vector<16x32xf32>
    %c1_59 = arith.constant 1 : index
    %c0_60 = arith.constant 0 : index
    %c0_61 = arith.constant 0 : index
    %240 = vector.load %arg3[%c1_59, %c0_60, %c0_61] : memref<2x32x32xf32, #tpu.memory_space<vmem>>, vector<1x32x32xf32>
    %241 = vector.shape_cast %240 : vector<1x32x32xf32> to vector<32x32xf32>
    %cst_62 = arith.constant dense<0.000000e+00> : vector<16x32xf32>
    %242 = tpu.matmul %239, %241, %cst_62 {dimension_numbers = #tpu.dot_dimension_numbers<[1], [0], [0], [1], [0, 0, 1, 1], [], []>} : vector<16x32xf32>, vector<32x32xf32>, vector<16x32xf32> -> vector<16x32xf32>
    %243 = vector.broadcast %167 : vector<1x32xf32> to vector<16x32xf32>
    %244 = arith.addf %242, %243 : vector<16x32xf32>
    %245 = arith.addf %161, %244 : vector<16x32xf32>
    %cst_63 = arith.constant dense<0.000000e+00> : vector<16xf32>
    %246 = vector.multi_reduction <add>, %245, %cst_63 [1] : vector<16x32xf32> to vector<16xf32>
    %247 = vector.shape_cast %246 : vector<16xf32> to vector<16x1xf32>
    %cst_64 = arith.constant 3.200000e+01 : f32
    %248 = vector.broadcast %cst_64 : f32 to vector<16x1xf32>
    %249 = arith.divf %247, %248 : vector<16x1xf32>
    %250 = vector.broadcast %249 : vector<16x1xf32> to vector<16x32xf32>
    %251 = arith.subf %245, %250 : vector<16x32xf32>
    %252 = arith.mulf %251, %251 : vector<16x32xf32>
    %cst_65 = arith.constant dense<0.000000e+00> : vector<16xf32>
    %253 = vector.multi_reduction <add>, %252, %cst_65 [1] : vector<16x32xf32> to vector<16xf32>
    %254 = vector.shape_cast %253 : vector<16xf32> to vector<16x1xf32>
    %cst_66 = arith.constant 3.200000e+01 : f32
    %255 = vector.broadcast %cst_66 : f32 to vector<16x1xf32>
    %256 = arith.divf %254, %255 : vector<16x1xf32>
    %257 = vector.broadcast %249 : vector<16x1xf32> to vector<16x32xf32>
    %258 = arith.subf %245, %257 : vector<16x32xf32>
    %cst_67 = arith.constant 9.99999974E-6 : f32
    %259 = vector.broadcast %cst_67 : f32 to vector<16x1xf32>
    %260 = arith.addf %256, %259 : vector<16x1xf32>
    %261 = math.rsqrt %260 : vector<16x1xf32>
    %262 = vector.broadcast %261 : vector<16x1xf32> to vector<16x32xf32>
    %263 = arith.mulf %258, %262 : vector<16x32xf32>
    %264 = vector.broadcast %168 : vector<1x32xf32> to vector<16x32xf32>
    %265 = arith.mulf %263, %264 : vector<16x32xf32>
    %266 = vector.broadcast %169 : vector<1x32xf32> to vector<16x32xf32>
    %267 = arith.addf %265, %266 : vector<16x32xf32>
    %c1_68 = arith.constant 1 : index
    %c0_69 = arith.constant 0 : index
    %c0_70 = arith.constant 0 : index
    %268 = vector.load %arg4[%c1_68, %c0_69, %c0_70] : memref<2x32x128xf32, #tpu.memory_space<vmem>>, vector<1x32x128xf32>
    %269 = vector.shape_cast %268 : vector<1x32x128xf32> to vector<32x128xf32>
    %cst_71 = arith.constant dense<0.000000e+00> : vector<16x128xf32>
    %270 = tpu.matmul %267, %269, %cst_71 {dimension_numbers = #tpu.dot_dimension_numbers<[1], [0], [0], [1], [0, 0, 1, 1], [], []>} : vector<16x32xf32>, vector<32x128xf32>, vector<16x128xf32> -> vector<16x128xf32>
    %271 = vector.broadcast %170 : vector<1x128xf32> to vector<16x128xf32>
    %272 = arith.addf %270, %271 : vector<16x128xf32>
    %cst_72 = arith.constant 0.000000e+00 : f32
    %273 = vector.broadcast %cst_72 : f32 to vector<16x128xf32>
    %274 = arith.maximumf %272, %273 : vector<16x128xf32>
    %c1_73 = arith.constant 1 : index
    %c0_74 = arith.constant 0 : index
    %c0_75 = arith.constant 0 : index
    %275 = vector.load %arg5[%c1_73, %c0_74, %c0_75] : memref<2x128x32xf32, #tpu.memory_space<vmem>>, vector<1x128x32xf32>
    %276 = vector.shape_cast %275 : vector<1x128x32xf32> to vector<128x32xf32>
    %cst_76 = arith.constant dense<0.000000e+00> : vector<16x32xf32>
    %277 = tpu.matmul %274, %276, %cst_76 {dimension_numbers = #tpu.dot_dimension_numbers<[1], [0], [0], [1], [0, 0, 1, 1], [], []>} : vector<16x128xf32>, vector<128x32xf32>, vector<16x32xf32> -> vector<16x32xf32>
    %278 = vector.broadcast %171 : vector<1x32xf32> to vector<16x32xf32>
    %279 = arith.addf %277, %278 : vector<16x32xf32>
    %280 = arith.addf %267, %279 : vector<16x32xf32>
    %cst_77 = arith.constant dense<0.000000e+00> : vector<16xf32>
    %281 = vector.multi_reduction <add>, %280, %cst_77 [1] : vector<16x32xf32> to vector<16xf32>
    %282 = vector.shape_cast %281 : vector<16xf32> to vector<16x1xf32>
    %cst_78 = arith.constant 3.200000e+01 : f32
    %283 = vector.broadcast %cst_78 : f32 to vector<16x1xf32>
    %284 = arith.divf %282, %283 : vector<16x1xf32>
    %285 = vector.broadcast %284 : vector<16x1xf32> to vector<16x32xf32>
    %286 = arith.subf %280, %285 : vector<16x32xf32>
    %287 = arith.mulf %286, %286 : vector<16x32xf32>
    %cst_79 = arith.constant dense<0.000000e+00> : vector<16xf32>
    %288 = vector.multi_reduction <add>, %287, %cst_79 [1] : vector<16x32xf32> to vector<16xf32>
    %289 = vector.shape_cast %288 : vector<16xf32> to vector<16x1xf32>
    %cst_80 = arith.constant 3.200000e+01 : f32
    %290 = vector.broadcast %cst_80 : f32 to vector<16x1xf32>
    %291 = arith.divf %289, %290 : vector<16x1xf32>
    %292 = vector.broadcast %284 : vector<16x1xf32> to vector<16x32xf32>
    %293 = arith.subf %280, %292 : vector<16x32xf32>
    %cst_81 = arith.constant 9.99999974E-6 : f32
    %294 = vector.broadcast %cst_81 : f32 to vector<16x1xf32>
    %295 = arith.addf %291, %294 : vector<16x1xf32>
    %296 = math.rsqrt %295 : vector<16x1xf32>
    %297 = vector.broadcast %296 : vector<16x1xf32> to vector<16x32xf32>
    %298 = arith.mulf %293, %297 : vector<16x32xf32>
    %299 = vector.broadcast %172 : vector<1x32xf32> to vector<16x32xf32>
    %300 = arith.mulf %298, %299 : vector<16x32xf32>
    %301 = vector.broadcast %173 : vector<1x32xf32> to vector<16x32xf32>
    %302 = arith.addf %300, %301 : vector<16x32xf32>
    %cst_82 = arith.constant dense<0.000000e+00> : vector<16x256xf32>
    %303 = tpu.matmul %302, %5, %cst_82 {dimension_numbers = #tpu.dot_dimension_numbers<[1], [0], [0], [1], [0, 0, 1, 1], [], []>} : vector<16x32xf32>, vector<32x256xf32>, vector<16x256xf32> -> vector<16x256xf32>
    %304 = tpu.iota {dimensions = array<i32: 0>} : vector<16x256xi32>
    %c7_i32 = arith.constant 7 : i32
    %305 = vector.broadcast %c7_i32 : i32 to vector<16x256xi32>
    %306 = arith.andi %304, %305 : vector<16x256xi32>
    %307 = tpu.iota {dimensions = array<i32: 1>} : vector<16x256xi32>
    %c5_i32 = arith.constant 5 : i32
    %308 = vector.broadcast %c5_i32 : i32 to vector<16x256xi32>
    %309 = arith.shrsi %307, %308 : vector<16x256xi32>
    %310 = arith.cmpi eq, %306, %309 : vector<16x256xi32>
    %cst_83 = arith.constant 0.000000e+00 : f32
    %311 = vector.broadcast %cst_83 : f32 to vector<16x256xf32>
    %312 = arith.select %310, %303, %311 : vector<16x256xi1>, vector<16x256xf32>
    %313 = vector.shape_cast %312 : vector<16x256xf32> to vector<2x8x256xf32>
    %cst_84 = arith.constant dense<0.000000e+00> : vector<2x256xf32>
    %314 = vector.multi_reduction <add>, %313, %cst_84 [1] : vector<2x8x256xf32> to vector<2x256xf32>
    %315 = tpu.iota {dimensions = array<i32: 0>} : vector<32x32xi32>
    %316 = tpu.iota {dimensions = array<i32: 1>} : vector<32x32xi32>
    %317 = arith.cmpi eq, %315, %316 : vector<32x32xi32>
    %318 = arith.extui %317 : vector<32x32xi1> to vector<32x32xi32>
    %319 = arith.sitofp %318 : vector<32x32xi32> to vector<32x32xf32>
    %320 = tpu.concatenate %319, %319, %319, %319, %319, %319, %319, %319 in 0 : vector<32x32xf32>, vector<32x32xf32>, vector<32x32xf32>, vector<32x32xf32>, vector<32x32xf32>, vector<32x32xf32>, vector<32x32xf32>, vector<32x32xf32> -> vector<256x32xf32>
    %cst_85 = arith.constant dense<0.000000e+00> : vector<2x32xf32>
    %321 = tpu.matmul %314, %320, %cst_85 {dimension_numbers = #tpu.dot_dimension_numbers<[1], [0], [0], [1], [0, 0, 1, 1], [], []>} : vector<2x256xf32>, vector<256x32xf32>, vector<2x32xf32> -> vector<2x32xf32>
    %322 = vector.broadcast %0 : vector<1x32xf32> to vector<2x32xf32>
    %323 = arith.addf %321, %322 : vector<2x32xf32>
    %cst_86 = arith.constant dense<0.000000e+00> : vector<2x4xf32>
    %324 = tpu.matmul %323, %4, %cst_86 {dimension_numbers = #tpu.dot_dimension_numbers<[1], [0], [0], [1], [0, 0, 1, 1], [], []>} : vector<2x32xf32>, vector<32x4xf32>, vector<2x4xf32> -> vector<2x4xf32>
    %325 = vector.broadcast %1 : vector<1x4xf32> to vector<2x4xf32>
    %326 = arith.addf %324, %325 : vector<2x4xf32>
    %c0_87 = arith.constant 0 : index
    %c0_88 = arith.constant 0 : index
    %327 = vector.load %arg7[%c0_87, %c0_88] : memref<2x4xf32, #tpu.memory_space<vmem>>, vector<2x4xf32>
    tpu.vector_store %arg7[%c0_87, %c0_88], %326 {strides = array<i32>} : memref<2x4xf32, #tpu.memory_space<vmem>>, vector<2x4xf32>,
    return
  }
}

</mosaic_0001>

<llo_original>
// kernel: tpu_custom_call.1
$region0: #{tpu_custom_call.1}
  #allocation0 [shape = 'u32[]', space=smem, size = 0x4, offset = 0x4, fixed_abs, tag = 'smem constant byte address 0x4 - core index']
  #allocation1 [shape = 'u32[144,128]{1,0:T(1,128)}', space=vmem, size = 0x12000, scoped, tag = 'internal scratch']
  %s0 = inlined_call_operand.vmem [shape: f32[2,8,32], index: 0, kind: input, shape index: {}]
  %s1 = inlined_call_operand.vmem [shape: f32[112,256], index: 1, kind: input, shape index: {}]
  %s2 = inlined_call_operand.hbm [shape: f32[2,32,384], index: 2, kind: input, shape index: {}]
  %s3 = inlined_call_operand.vmem [shape: f32[2,32,32], index: 3, kind: input, shape index: {}]
  %s4 = inlined_call_operand.vmem [shape: f32[2,32,128], index: 4, kind: input, shape index: {}]
  %s5 = inlined_call_operand.vmem [shape: f32[2,128,32], index: 5, kind: input, shape index: {}]
  %s6 = inlined_call_operand.vmem [shape: f32[2,10,128], index: 6, kind: input, shape index: {}]
  %s7 = inlined_call_operand.hbm [shape: f32[2,4], index: 7, kind: output, shape index: {}]
  %s8 = sld [smem:[#allocation0]]
  $region42: #{tpu_custom_call.1} parent=0
    _
  %s10 = ssub.s32 1, %s8
  %s11 = scalar_select 0, %s10, %s8
  $region1: #{tpu_custom_call.1} parent=0
    #allocation2 [shape = 'u8[98304]{0}', space=vmem, size = 0x18000, scoped, tag = 'input window, operand 2, single buffered']
    #allocation3 [shape = 's32[1]{0}', space=sflag, size = 0x4, scoped, tag = 'scoped memory for tpu_custom_call.1']
    #allocation4 [shape = 's32[1]{0}', space=sflag, size = 0x4, scoped, tag = 'scoped memory for tpu_custom_call.1']
    #allocation5 [shape = 'u8[1024]{0}', space=vmem, size = 0x400, scoped, tag = 'output window, operand 0, single buffered']
    %12 = vsyncpa [#allocation3], 0
    %13 = vsyncpa [#allocation4], 0
    // Predicated region
    $region2: #{tpu_custom_call.1} parent=1 // pred_check
      _
    $region3: #{tpu_custom_call.1} parent=1 // pred_check_branch
      %15 = sbr.rel (0) target = $region5
    $region4: #{tpu_custom_call.1} parent=1 // pred_region
      _
    $region5: #{tpu_custom_call.1} parent=1 // pred_fallthru
      _
    // Predicated region
    $region6: #{tpu_custom_call.1} parent=1 // pred_check
      _
    $region7: #{tpu_custom_call.1} parent=1 // pred_check_branch
      %17 = sbr.rel (0) target = $region9
    $region8: #{tpu_custom_call.1} parent=1 // pred_region
      _
    $region9: #{tpu_custom_call.1} parent=1 // pred_fallthru
      _
    // Predicated region
    $region10: #{tpu_custom_call.1} parent=1 // pred_check
      _
    $region11: #{tpu_custom_call.1} parent=1 // pred_check_branch
      %19 = sbr.rel (0) target = $region13
    $region12: #{tpu_custom_call.1} parent=1 // pred_region
      %s21 = ssub.s32 3072, 3072
      %22 = vsyncadd [#allocation3], %s21
      %s23 = sshll.u32 [#allocation2], 4
      %s24 = int_to_ptr.vmem [resolvable:$true] %s23
      %29 = dma.hbm_to_vmem [thread:$0]  %s2, 3072, %s24, [#allocation3], 384, 384, 24
    $region13: #{tpu_custom_call.1} parent=1 // pred_fallthru
      _
    // Predicated region
    $region14: #{tpu_custom_call.1} parent=1 // pred_check
      _
    $region15: #{tpu_custom_call.1} parent=1 // pred_check_branch
      %31 = sbr.rel (0) target = $region17
    $region16: #{tpu_custom_call.1} parent=1 // pred_region
      _
    $region17: #{tpu_custom_call.1} parent=1 // pred_fallthru
      _
    // Predicated region
    $region18: #{tpu_custom_call.1} parent=1 // pred_check
      _
    $region19: #{tpu_custom_call.1} parent=1 // pred_check_branch
      %33 = sbr.rel (0) target = $region21
    $region20: #{tpu_custom_call.1} parent=1 // pred_region
      _
    $region21: #{tpu_custom_call.1} parent=1 // pred_fallthru
      _
    // Predicated region
    $region22: #{tpu_custom_call.1} parent=1 // pred_check
      _
    $region23: #{tpu_custom_call.1} parent=1 // pred_check_branch
      %35 = sbr.rel (0) target = $region25
    $region24: #{tpu_custom_call.1} parent=1 // pred_region
      _
    $region25: #{tpu_custom_call.1} parent=1 // pred_fallthru
      _
    // Predicated region
    $region26: #{tpu_custom_call.1} parent=1 // pred_check
      _
    $region27: #{tpu_custom_call.1} parent=1 // pred_check_branch
      %37 = sbr.rel (0) target = $region29
    $region28: #{tpu_custom_call.1} parent=1 // pred_region
      _
    $region29: #{tpu_custom_call.1} parent=1 // pred_fallthru
      _
    // Predicated region
    $region30: #{tpu_custom_call.1} parent=1 // pred_check
      _
    $region31: #{tpu_custom_call.1} parent=1 // pred_check_branch
      %39 = sbr.rel (0) target = $region33
    $region32: #{tpu_custom_call.1} parent=1 // pred_region
      %40 = dma.done [#allocation3], 3072
    $region33: #{tpu_custom_call.1} parent=1 // pred_fallthru
      _
    %v41 = vld [vmem:[%s1] ss:$0 sm:$0xff]
    %v42 = vld [vmem:[%s1 + $0x1] ss:$0 sm:$0xff]
    %v43 = vld [vmem:[%s1 + $0x10] sm:$0xff]
    %v44 = vld [vmem:[%s1 + $0x20] sm:$0xff]
    %v45 = vld [vmem:[%s1 + $0x30] sm:$0xff]
    %v46 = vld [vmem:[%s1 + $0x40] sm:$0xff]
    %v47 = vld [vmem:[%s1 + $0x50] sm:$0xff]
    %v48 = vld [vmem:[%s1 + $0x60] sm:$0xff]
    %v49 = vld [vmem:[%s1 + $0x70] sm:$0xff]
    %v50 = vld [vmem:[%s1 + $0x80] sm:$0xff]
    %v51 = vld [vmem:[%s1 + $0x90] sm:$0xff]
    %v52 = vld [vmem:[%s1 + $0xa0] sm:$0xff]
    %v53 = vld [vmem:[%s1 + $0xa8] sm:$0xff]
    %v54 = vld [vmem:[%s1 + $0xb0] sm:$0xff]
    %v55 = vld [vmem:[%s1 + $0xb8] sm:$0xff]
    %v56 = vld [vmem:[%s1 + $0xc0] sm:$0xff]
    %v57 = vld [vmem:[%s1 + $0xc8] sm:$0xff]
    %v58 = vld [vmem:[%s1 + $0xd0] sm:$0xff]
    %v59 = vld [vmem:[%s1 + $0xd8] sm:$0xff]
    %v60 = vlaneseq
    %v61 = vshrl.u32 %v60, 7
    %v62 = vadd.s32 %v61, 8
    %v63 = vshra.s32 %v61, 3
    %v64 = vshra.s32 %v62, 3
    %v65 = vlaneseq
    %v66 = vand.u32 %v65, 127
    %v67 = vshra.s32 %v66, 3
    %vm68 = vcmp.eq.s32.totalorder %v63, %v67
    %vm69 = vcmp.eq.s32.totalorder %v64, %v67
    %v70 = vld [vmem:[%s0] sm:$0xff]
    %v71 = vld [vmem:[%s0 + $0x8] sm:$0xff]
    %vm72 = vcmask 261120
    %v74 = vsel %vm72, %v70, 0
    %v77 = vsel %vm72, %v71, 0
    %79 = vmatprep.subr.mxu0 0.0
    %80 = vmatpush1.msra.mxu0 0.0
    %81 = vmatprep.subr.mxu0 0.0
    %82 = vmatpush1.msra.mxu0 0.0
    %83 = vmatprep.subr.mxu0 0.0
    %84 = vmatpush1.msra.mxu0 0.0
    %85 = vmatprep.subr.mxu0 0.0
    %86 = vmatpush1.msra.mxu0 0.0
    %87 = vmatprep.subr.mxu0 0.0
    %88 = vmatpush1.msra.mxu0 0.0
    %89 = vmatprep.subr.mxu0 0.0
    %90 = vmatpush1.msra.mxu0 0.0
    %91 = vmatprep.subr.mxu0 0.0
    %92 = vmatpush1.msra.mxu0 0.0
    %93 = vmatprep.subr.mxu0 0.0
    %94 = vmatpush1.msra.mxu0 0.0
    %95 = vmatprep.subr.mxu0 0.0
    %96 = vmatpush1.msra.mxu0 0.0
    %97 = vmatprep.subr.mxu0 0.0
    %98 = vmatpush1.msra.mxu0 0.0
    %99 = vmatprep.subr.mxu0 0.0
    %100 = vmatpush1.msra.mxu0 0.0
    %101 = vmatprep.subr.mxu0 0.0
    %102 = vmatpush1.msra.mxu0 0.0
    %103 = vmatprep.subr.mxu0 0.0
    %104 = vmatpush1.msra.mxu0 %v47
    %105 = vmatprep.subr.mxu0 0.0
    %106 = vmatpush1.msra.mxu0 %v46
    %107 = vmatprep.subr.mxu0 0.0
    %108 = vmatpush1.msra.mxu0 %v45
    %109 = vmatprep.subr.mxu0 0.0
    %110 = vmatpush1.msra.mxu0 %v44
    %111 = vmatprep.subr.mxu0 0.0
    %112 = vmatpush2.msra.mxu0 0.0
    %113 = vmatprep.subr.mxu0 0.0
    %114 = vmatpush2.msra.mxu0 0.0
    %115 = vmatprep.subr.mxu0 0.0
    %116 = vmatpush2.msra.mxu0 0.0
    %117 = vmatprep.subr.mxu0 0.0
    %118 = vmatpush2.msra.mxu0 0.0
    %119 = vmatprep.subr.mxu0 0.0
    %120 = vmatpush2.msra.mxu0 0.0
    %121 = vmatprep.subr.mxu0 0.0
    %122 = vmatpush2.msra.mxu0 0.0
    %123 = vmatprep.subr.mxu0 0.0
    %124 = vmatpush2.msra.mxu0 0.0
    %125 = vmatprep.subr.mxu0 0.0
    %126 = vmatpush2.msra.mxu0 0.0
    %127 = vmatprep.subr.mxu0 0.0
    %128 = vmatpush2.msra.mxu0 0.0
    %129 = vmatprep.subr.mxu0 0.0
    %130 = vmatpush2.msra.mxu0 0.0
    %131 = vmatprep.subr.mxu0 0.0
    %132 = vmatpush2.msra.mxu0 0.0
    %133 = vmatprep.subr.mxu0 0.0
    %134 = vmatpush2.msra.mxu0 0.0
    %135 = vmatprep.subr.mxu0 0.0
    %136 = vmatpush2.msra.mxu0 0.0
    %137 = vmatprep.subr.mxu0 0.0
    %138 = vmatpush2.msra.mxu0 0.0
    %139 = vmatprep.subr.mxu0 0.0
    %140 = vmatpush2.msra.mxu0 0.0
    %141 = vmatprep.subr.mxu0 0.0
    %142 = vmatpush2.msra.mxu0 0.0
    %143 = vmatprep.mubr.f32.mxu0 0.0
    %144 = vmatmul.mubr.f32.gmra.mxu0 %v74
    %v145 = vpop.f32.mrf.mxu0
    %v146 = vadd.f32 0.0, %v145
    %v147 = vpop.f32.mrf.mxu0
    %148 = vmatprep.mubr.f32.mxu0 0.0
    %149 = vmatmul.mubr.f32.gmra.mxu0 %v77
    %v150 = vpop.f32.mrf.mxu0
    %v151 = vadd.f32 0.0, %v150
    %v152 = vpop.f32.mrf.mxu0
    %153 = vdwg.mxu0
    %v154 = vadd.f32 %v146, %v43
    %v155 = vadd.f32 %v151, %v43
    %v156 = vld [vmem:[%s6] sm:$0xff]
    %v157 = vld [vmem:[%s6 + $0x8] sm:$0x3]
    %v158 = vld [vmem:[#allocation2] sm:$0xff]
    %v159 = vld [vmem:[#allocation2 + $0x8] sm:$0xff]
    %v160 = vld [vmem:[#allocation2 + $0x10] sm:$0xff]
    %v161 = vld [vmem:[#allocation2 + $0x18] sm:$0xff]
    %v162 = vld [vmem:[#allocation2 + $0x20] sm:$0xff]
    %v163 = vld [vmem:[#allocation2 + $0x28] sm:$0xff]
    %v164 = vld [vmem:[#allocation2 + $0x30] sm:$0xff]
    %v165 = vld [vmem:[#allocation2 + $0x38] sm:$0xff]
    %v166 = vld [vmem:[#allocation2 + $0x40] sm:$0xff]
    %v167 = vld [vmem:[#allocation2 + $0x48] sm:$0xff]
    %v168 = vld [vmem:[#allocation2 + $0x50] sm:$0xff]
    %v169 = vld [vmem:[#allocation2 + $0x58] sm:$0xff]
    %v171 = vsel %vm72, %v154, 0
    %v174 = vsel %vm72, %v155, 0
    %176 = vmatprep.subr.mxu0 0.0
    %177 = vmatpush1.msra.mxu0 0.0
    %178 = vmatprep.subr.mxu0 0.0
    %179 = vmatpush1.msra.mxu0 0.0
    %180 = vmatprep.subr.mxu0 0.0
    %181 = vmatpush1.msra.mxu0 0.0
    %182 = vmatprep.subr.mxu0 0.0
    %183 = vmatpush1.msra.mxu0 0.0
    %184 = vmatprep.subr.mxu0 0.0
    %185 = vmatpush1.msra.mxu0 0.0
    %186 = vmatprep.subr.mxu0 0.0
    %187 = vmatpush1.msra.mxu0 0.0
    %188 = vmatprep.subr.mxu0 0.0
    %189 = vmatpush1.msra.mxu0 0.0
    %190 = vmatprep.subr.mxu0 0.0
    %191 = vmatpush1.msra.mxu0 0.0
    %192 = vmatprep.subr.mxu0 0.0
    %193 = vmatpush1.msra.mxu0 0.0
    %194 = vmatprep.subr.mxu0 0.0
    %195 = vmatpush1.msra.mxu0 0.0
    %196 = vmatprep.subr.mxu0 0.0
    %197 = vmatpush1.msra.mxu0 0.0
    %198 = vmatprep.subr.mxu0 0.0
    %199 = vmatpush1.msra.mxu0 0.0
    %200 = vmatprep.subr.mxu0 %v168
    %201 = vmatpush1.msra.mxu0 %v167
    %202 = vmatprep.subr.mxu0 %v165
    %203 = vmatpush1.msra.mxu0 %v164
    %204 = vmatprep.subr.mxu0 %v162
    %205 = vmatpush1.msra.mxu0 %v161
    %206 = vmatprep.subr.mxu0 %v159
    %207 = vmatpush1.msra.mxu0 %v158
    %208 = vmatprep.subr.mxu0 0.0
    %209 = vmatpush2.msra.mxu0 0.0
    %210 = vmatprep.subr.mxu0 0.0
    %211 = vmatpush2.msra.mxu0 0.0
    %212 = vmatprep.subr.mxu0 0.0
    %213 = vmatpush2.msra.mxu0 0.0
    %214 = vmatprep.subr.mxu0 0.0
    %215 = vmatpush2.msra.mxu0 0.0
    %216 = vmatprep.subr.mxu0 0.0
    %217 = vmatpush2.msra.mxu0 0.0
    %218 = vmatprep.subr.mxu0 0.0
    %219 = vmatpush2.msra.mxu0 0.0
    %220 = vmatprep.subr.mxu0 0.0
    %221 = vmatpush2.msra.mxu0 0.0
    %222 = vmatprep.subr.mxu0 0.0
    %223 = vmatpush2.msra.mxu0 0.0
    %224 = vmatprep.subr.mxu0 0.0
    %225 = vmatpush2.msra.mxu0 0.0
    %226 = vmatprep.subr.mxu0 0.0
    %227 = vmatpush2.msra.mxu0 0.0
    %228 = vmatprep.subr.mxu0 0.0
    %229 = vmatpush2.msra.mxu0 0.0
    %230 = vmatprep.subr.mxu0 0.0
    %231 = vmatpush2.msra.mxu0 0.0
    %232 = vmatprep.subr.mxu0 0.0
    %233 = vmatpush2.msra.mxu0 0.0
    %234 = vmatprep.subr.mxu0 0.0
    %235 = vmatpush2.msra.mxu0 0.0
    %236 = vmatprep.subr.mxu0 0.0
    %237 = vmatpush2.msra.mxu0 0.0
    %238 = vmatprep.subr.mxu0 0.0
    %239 = vmatpush2.msra.mxu0 0.0
    %240 = vmatprep.mubr.f32.mxu0 0.0
    %241 = vmatmul.mubr.f32.gmra.mxu0 %v171
    %v242 = vpop.f32.mrf.mxu0
    %v243 = vadd.f32 0.0, %v242
    %v244 = vpop.f32.mrf.mxu0
    %v245 = vadd.f32 0.0, %v244
    %246 = vmatprep.mubr.f32.mxu0 0.0
    %247 = vmatmul.mubr.f32.gmra.mxu0 %v174
    %v248 = vpop.f32.mrf.mxu0
    %v249 = vadd.f32 0.0, %v248
    %v250 = vpop.f32.mrf.mxu0
    %v251 = vadd.f32 0.0, %v250
    %252 = vdwg.mxu0
    %253 = vmatprep.subr.mxu0 0.0
    %254 = vmatpush1.msra.mxu0 0.0
    %255 = vmatprep.subr.mxu0 0.0
    %256 = vmatpush1.msra.mxu0 0.0
    %257 = vmatprep.subr.mxu0 0.0
    %258 = vmatpush1.msra.mxu0 0.0
    %259 = vmatprep.subr.mxu0 0.0
    %260 = vmatpush1.msra.mxu0 0.0
    %261 = vmatprep.subr.mxu0 0.0
    %262 = vmatpush1.msra.mxu0 0.0
    %263 = vmatprep.subr.mxu0 0.0
    %264 = vmatpush1.msra.mxu0 0.0
    %265 = vmatprep.subr.mxu0 0.0
    %266 = vmatpush1.msra.mxu0 0.0
    %267 = vmatprep.subr.mxu0 0.0
    %268 = vmatpush1.msra.mxu0 0.0
    %269 = vmatprep.subr.mxu0 0.0
    %270 = vmatpush1.msra.mxu0 0.0
    %271 = vmatprep.subr.mxu0 0.0
    %272 = vmatpush1.msra.mxu0 0.0
    %273 = vmatprep.subr.mxu0 0.0
    %274 = vmatpush1.msra.mxu0 0.0
    %275 = vmatprep.subr.mxu0 0.0
    %276 = vmatpush1.msra.mxu0 0.0
    %277 = vmatprep.subr.mxu0 0.0
    %278 = vmatpush1.msra.mxu0 %v169
    %279 = vmatprep.subr.mxu0 0.0
    %280 = vmatpush1.msra.mxu0 %v166
    %281 = vmatprep.subr.mxu0 0.0
    %282 = vmatpush1.msra.mxu0 %v163
    %283 = vmatprep.subr.mxu0 0.0
    %284 = vmatpush1.msra.mxu0 %v160
    %285 = vmatprep.subr.mxu0 0.0
    %286 = vmatpush2.msra.mxu0 0.0
    %287 = vmatprep.subr.mxu0 0.0
    %288 = vmatpush2.msra.mxu0 0.0
    %289 = vmatprep.subr.mxu0 0.0
    %290 = vmatpush2.msra.mxu0 0.0
    %291 = vmatprep.subr.mxu0 0.0
    %292 = vmatpush2.msra.mxu0 0.0
    %293 = vmatprep.subr.mxu0 0.0
    %294 = vmatpush2.msra.mxu0 0.0
    %295 = vmatprep.subr.mxu0 0.0
    %296 = vmatpush2.msra.mxu0 0.0
    %297 = vmatprep.subr.mxu0 0.0
    %298 = vmatpush2.msra.mxu0 0.0
    %299 = vmatprep.subr.mxu0 0.0
    %300 = vmatpush2.msra.mxu0 0.0
    %301 = vmatprep.subr.mxu0 0.0
    %302 = vmatpush2.msra.mxu0 0.0
    %303 = vmatprep.subr.mxu0 0.0
    %304 = vmatpush2.msra.mxu0 0.0
    %305 = vmatprep.subr.mxu0 0.0
    %306 = vmatpush2.msra.mxu0 0.0
    %307 = vmatprep.subr.mxu0 0.0
    %308 = vmatpush2.msra.mxu0 0.0
    %309 = vmatprep.subr.mxu0 0.0
    %310 = vmatpush2.msra.mxu0 0.0
    %311 = vmatprep.subr.mxu0 0.0
    %312 = vmatpush2.msra.mxu0 0.0
    %313 = vmatprep.subr.mxu0 0.0
    %314 = vmatpush2.msra.mxu0 0.0
    %315 = vmatprep.subr.mxu0 0.0
    %316 = vmatpush2.msra.mxu0 0.0
    %317 = vmatprep.mubr.f32.mxu0 0.0
    %318 = vmatmul.mubr.f32.gmra.mxu0 %v171
    %v319 = vpop.f32.mrf.mxu0
    %v320 = vadd.f32 0.0, %v319
    %v321 = vpop.f32.mrf.mxu0
    %322 = vmatprep.mubr.f32.mxu0 0.0
    %323 = vmatmul.mubr.f32.gmra.mxu0 %v174
    %v324 = vpop.f32.mrf.mxu0
    %v325 = vadd.f32 0.0, %v324
    %v326 = vpop.f32.mrf.mxu0
    %327 = vdwg.mxu0
    %v328 = vlaneseq
    %v329 = vshrl.u32 %v328, 7
    %v330 = vsub.s32 0, %v329
    %v331 = vrot.slane %v156, %v330
    %v332 = vadd.f32 %v243, %v331
    %v333 = vadd.f32 %v249, %v331
    %v334 = vlaneseq
    %v335 = vshrl.u32 %v334, 7
    %v336 = vsub.s32 1, %v335
    %v337 = vrot.slane %v156, %v336
    %v338 = vadd.f32 %v245, %v337
    %v339 = vadd.f32 %v251, %v337
    %v340 = vlaneseq
    %v341 = vshrl.u32 %v340, 7
    %v342 = vsub.s32 2, %v341
    %v343 = vrot.slane %v156, %v342
    %v344 = vadd.f32 %v320, %v343
    %v345 = vadd.f32 %v325, %v343
    %348 = vrot.lane.b32.xlu0 %v332, 120
    %v349 = vpop.permute.xlu0 %348
    %350 = vrot.lane.b32.xlu0 %v333, 120
    %v351 = vpop.permute.xlu0 %350
    %352 = vrot.lane.b32.xlu0 %v332, 112
    %v353 = vpop.permute.xlu0 %352
    %354 = vrot.lane.b32.xlu0 %v333, 112
    %v355 = vpop.permute.xlu0 %354
    %356 = vrot.lane.b32.xlu0 %v332, 104
    %v357 = vpop.permute.xlu0 %356
    %358 = vrot.lane.b32.xlu0 %v333, 104
    %v359 = vpop.permute.xlu0 %358
    %362 = vrot.lane.b32.xlu0 %v338, 120
    %v363 = vpop.permute.xlu0 %362
    %364 = vrot.lane.b32.xlu0 %v339, 120
    %v365 = vpop.permute.xlu0 %364
    %366 = vrot.lane.b32.xlu0 %v338, 112
    %v367 = vpop.permute.xlu0 %366
    %368 = vrot.lane.b32.xlu0 %v339, 112
    %v369 = vpop.permute.xlu0 %368
    %370 = vrot.lane.b32.xlu0 %v338, 104
    %v371 = vpop.permute.xlu0 %370
    %372 = vrot.lane.b32.xlu0 %v339, 104
    %v373 = vpop.permute.xlu0 %372
    %376 = vrot.lane.b32.xlu0 %v344, 120
    %v377 = vpop.permute.xlu0 %376
    %378 = vrot.lane.b32.xlu0 %v345, 120
    %v379 = vpop.permute.xlu0 %378
    %382 = vrot.lane.b32.xlu0 %v344, 112
    %v383 = vpop.permute.xlu0 %382
    %384 = vrot.lane.b32.xlu0 %v345, 112
    %v385 = vpop.permute.xlu0 %384
    %388 = vrot.lane.b32.xlu0 %v344, 104
    %v389 = vpop.permute.xlu0 %388
    %390 = vrot.lane.b32.xlu0 %v345, 104
    %v391 = vpop.permute.xlu0 %390
    %vm394 = vcmask 64512
    %v395 = vsel %vm394, %v332, 0
    %v397 = vsel %vm394, %v333, 0
    %v399 = vsel %vm394, %v338, 0
    %v401 = vsel %vm394, %v339, 0
    %403 = vmatprep.subr.mxu0 0.0
    %404 = vmatpush1.xpose.msra.mxu0 0.0
    %405 = vmatprep.subr.mxu0 0.0
    %406 = vmatpush1.xpose.msra.mxu0 0.0
    %407 = vmatprep.subr.mxu0 0.0
    %408 = vmatpush1.xpose.msra.mxu0 0.0
    %409 = vmatprep.subr.mxu0 0.0
    %410 = vmatpush1.xpose.msra.mxu0 0.0
    %411 = vmatprep.subr.mxu0 0.0
    %412 = vmatpush1.xpose.msra.mxu0 0.0
    %413 = vmatprep.subr.mxu0 0.0
    %414 = vmatpush1.xpose.msra.mxu0 0.0
    %415 = vmatprep.subr.mxu0 0.0
    %416 = vmatpush1.xpose.msra.mxu0 0.0
    %417 = vmatprep.subr.mxu0 0.0
    %418 = vmatpush1.xpose.msra.mxu0 0.0
    %419 = vmatprep.subr.mxu0 0.0
    %420 = vmatpush1.xpose.msra.mxu0 0.0
    %421 = vmatprep.subr.mxu0 0.0
    %422 = vmatpush1.xpose.msra.mxu0 0.0
    %423 = vmatprep.subr.mxu0 0.0
    %424 = vmatpush1.xpose.msra.mxu0 0.0
    %425 = vmatprep.subr.mxu0 0.0
    %426 = vmatpush1.xpose.msra.mxu0 0.0
    %427 = vmatprep.subr.mxu0 0.0
    %428 = vmatpush1.xpose.msra.mxu0 0.0
    %429 = vmatprep.subr.mxu0 0.0
    %430 = vmatpush1.xpose.msra.mxu0 0.0
    %431 = vmatprep.subr.mxu0 0.0
    %432 = vmatpush1.xpose.msra.mxu0 %v401
    %433 = vmatprep.subr.mxu0 0.0
    %434 = vmatpush1.xpose.msra.mxu0 %v399
    %435 = vmatprep.subr.mxu0 0.0
    %436 = vmatpush2.xpose.msra.mxu0 0.0
    %437 = vmatprep.subr.mxu0 0.0
    %438 = vmatpush2.xpose.msra.mxu0 0.0
    %439 = vmatprep.subr.mxu0 0.0
    %440 = vmatpush2.xpose.msra.mxu0 0.0
    %441 = vmatprep.subr.mxu0 0.0
    %442 = vmatpush2.xpose.msra.mxu0 0.0
    %443 = vmatprep.subr.mxu0 0.0
    %444 = vmatpush2.xpose.msra.mxu0 0.0
    %445 = vmatprep.subr.mxu0 0.0
    %446 = vmatpush2.xpose.msra.mxu0 0.0
    %447 = vmatprep.subr.mxu0 0.0
    %448 = vmatpush2.xpose.msra.mxu0 0.0
    %449 = vmatprep.subr.mxu0 0.0
    %450 = vmatpush2.xpose.msra.mxu0 0.0
    %451 = vmatprep.subr.mxu0 0.0
    %452 = vmatpush2.xpose.msra.mxu0 0.0
    %453 = vmatprep.subr.mxu0 0.0
    %454 = vmatpush2.xpose.msra.mxu0 0.0
    %455 = vmatprep.subr.mxu0 0.0
    %456 = vmatpush2.xpose.msra.mxu0 0.0
    %457 = vmatprep.subr.mxu0 0.0
    %458 = vmatpush2.xpose.msra.mxu0 0.0
    %459 = vmatprep.subr.mxu0 0.0
    %460 = vmatpush2.xpose.msra.mxu0 0.0
    %461 = vmatprep.subr.mxu0 0.0
    %462 = vmatpush2.xpose.msra.mxu0 0.0
    %463 = vmatprep.subr.mxu0 0.0
    %464 = vmatpush2.xpose.msra.mxu0 0.0
    %465 = vmatprep.subr.mxu0 0.0
    %466 = vmatpush2.xpose.msra.mxu0 0.0
    %467 = vmatprep.mubr.f32.mxu0 0.0
    %468 = vmatmul.mubr.f32.gmra.mxu0 %v395
    %v469 = vpop.f32.mrf.mxu0
    %v470 = vadd.f32 0.0, %v469
    %v471 = vpop.f32.mrf.mxu0
    %472 = vmatprep.mubr.f32.mxu0 0.0
    %473 = vmatmul.mubr.f32.gmra.mxu0 %v397
    %v474 = vpop.f32.mrf.mxu0
    %v475 = vadd.f32 0.0, %v474
    %v476 = vpop.f32.mrf.mxu0
    %477 = vdwg.mxu0
    %v478 = vsel %vm394, %v349, 0
    %v480 = vsel %vm394, %v351, 0
    %v482 = vsel %vm394, %v363, 0
    %v484 = vsel %vm394, %v365, 0
    %486 = vmatprep.subr.mxu0 0.0
    %487 = vmatpush1.xpose.msra.mxu0 0.0
    %488 = vmatprep.subr.mxu0 0.0
    %489 = vmatpush1.xpose.msra.mxu0 0.0
    %490 = vmatprep.subr.mxu0 0.0
    %491 = vmatpush1.xpose.msra.mxu0 0.0
    %492 = vmatprep.subr.mxu0 0.0
    %493 = vmatpush1.xpose.msra.mxu0 0.0
    %494 = vmatprep.subr.mxu0 0.0
    %495 = vmatpush1.xpose.msra.mxu0 0.0
    %496 = vmatprep.subr.mxu0 0.0
    %497 = vmatpush1.xpose.msra.mxu0 0.0
    %498 = vmatprep.subr.mxu0 0.0
    %499 = vmatpush1.xpose.msra.mxu0 0.0
    %500 = vmatprep.subr.mxu0 0.0
    %501 = vmatpush1.xpose.msra.mxu0 0.0
    %502 = vmatprep.subr.mxu0 0.0
    %503 = vmatpush1.xpose.msra.mxu0 0.0
    %504 = vmatprep.subr.mxu0 0.0
    %505 = vmatpush1.xpose.msra.mxu0 0.0
    %506 = vmatprep.subr.mxu0 0.0
    %507 = vmatpush1.xpose.msra.mxu0 0.0
    %508 = vmatprep.subr.mxu0 0.0
    %509 = vmatpush1.xpose.msra.mxu0 0.0
    %510 = vmatprep.subr.mxu0 0.0
    %511 = vmatpush1.xpose.msra.mxu0 0.0
    %512 = vmatprep.subr.mxu0 0.0
    %513 = vmatpush1.xpose.msra.mxu0 0.0
    %514 = vmatprep.subr.mxu0 0.0
    %515 = vmatpush1.xpose.msra.mxu0 %v484
    %516 = vmatprep.subr.mxu0 0.0
    %517 = vmatpush1.xpose.msra.mxu0 %v482
    %518 = vmatprep.subr.mxu0 0.0
    %519 = vmatpush2.xpose.msra.mxu0 0.0
    %520 = vmatprep.subr.mxu0 0.0
    %521 = vmatpush2.xpose.msra.mxu0 0.0
    %522 = vmatprep.subr.mxu0 0.0
    %523 = vmatpush2.xpose.msra.mxu0 0.0
    %524 = vmatprep.subr.mxu0 0.0
    %525 = vmatpush2.xpose.msra.mxu0 0.0
    %526 = vmatprep.subr.mxu0 0.0
    %527 = vmatpush2.xpose.msra.mxu0 0.0
    %528 = vmatprep.subr.mxu0 0.0
    %529 = vmatpush2.xpose.msra.mxu0 0.0
    %530 = vmatprep.subr.mxu0 0.0
    %531 = vmatpush2.xpose.msra.mxu0 0.0
    %532 = vmatprep.subr.mxu0 0.0
    %533 = vmatpush2.xpose.msra.mxu0 0.0
    %534 = vmatprep.subr.mxu0 0.0
    %535 = vmatpush2.xpose.msra.mxu0 0.0
    %536 = vmatprep.subr.mxu0 0.0
    %537 = vmatpush2.xpose.msra.mxu0 0.0
    %538 = vmatprep.subr.mxu0 0.0
    %539 = vmatpush2.xpose.msra.mxu0 0.0
    %540 = vmatprep.subr.mxu0 0.0
    %541 = vmatpush2.xpose.msra.mxu0 0.0
    %542 = vmatprep.subr.mxu0 0.0
    %543 = vmatpush2.xpose.msra.mxu0 0.0
    %544 = vmatprep.subr.mxu0 0.0
    %545 = vmatpush2.xpose.msra.mxu0 0.0
    %546 = vmatprep.subr.mxu0 0.0
    %547 = vmatpush2.xpose.msra.mxu0 0.0
    %548 = vmatprep.subr.mxu0 0.0
    %549 = vmatpush2.xpose.msra.mxu0 0.0
    %550 = vmatprep.mubr.f32.mxu0 0.0
    %551 = vmatmul.mubr.f32.gmra.mxu0 %v478
    %v552 = vpop.f32.mrf.mxu0
    %v553 = vadd.f32 0.0, %v552
    %v554 = vpop.f32.mrf.mxu0
    %555 = vmatprep.mubr.f32.mxu0 0.0
    %556 = vmatmul.mubr.f32.gmra.mxu0 %v480
    %v557 = vpop.f32.mrf.mxu0
    %v558 = vadd.f32 0.0, %v557
    %v559 = vpop.f32.mrf.mxu0
    %560 = vdwg.mxu0
    %v561 = vsel %vm394, %v353, 0
    %v563 = vsel %vm394, %v355, 0
    %v565 = vsel %vm394, %v367, 0
    %v567 = vsel %vm394, %v369, 0
    %569 = vmatprep.subr.mxu0 0.0
    %570 = vmatpush1.xpose.msra.mxu0 0.0
    %571 = vmatprep.subr.mxu0 0.0
    %572 = vmatpush1.xpose.msra.mxu0 0.0
    %573 = vmatprep.subr.mxu0 0.0
    %574 = vmatpush1.xpose.msra.mxu0 0.0
    %575 = vmatprep.subr.mxu0 0.0
    %576 = vmatpush1.xpose.msra.mxu0 0.0
    %577 = vmatprep.subr.mxu0 0.0
    %578 = vmatpush1.xpose.msra.mxu0 0.0
    %579 = vmatprep.subr.mxu0 0.0
    %580 = vmatpush1.xpose.msra.mxu0 0.0
    %581 = vmatprep.subr.mxu0 0.0
    %582 = vmatpush1.xpose.msra.mxu0 0.0
    %583 = vmatprep.subr.mxu0 0.0
    %584 = vmatpush1.xpose.msra.mxu0 0.0
    %585 = vmatprep.subr.mxu0 0.0
    %586 = vmatpush1.xpose.msra.mxu0 0.0
    %587 = vmatprep.subr.mxu0 0.0
    %588 = vmatpush1.xpose.msra.mxu0 0.0
    %589 = vmatprep.subr.mxu0 0.0
    %590 = vmatpush1.xpose.msra.mxu0 0.0
    %591 = vmatprep.subr.mxu0 0.0
    %592 = vmatpush1.xpose.msra.mxu0 0.0
    %593 = vmatprep.subr.mxu0 0.0
    %594 = vmatpush1.xpose.msra.mxu0 0.0
    %595 = vmatprep.subr.mxu0 0.0
    %596 = vmatpush1.xpose.msra.mxu0 0.0
    %597 = vmatprep.subr.mxu0 0.0
    %598 = vmatpush1.xpose.msra.mxu0 %v567
    %599 = vmatprep.subr.mxu0 0.0
    %600 = vmatpush1.xpose.msra.mxu0 %v565
    %601 = vmatprep.subr.mxu0 0.0
    %602 = vmatpush2.xpose.msra.mxu0 0.0
    %603 = vmatprep.subr.mxu0 0.0
    %604 = vmatpush2.xpose.msra.mxu0 0.0
    %605 = vmatprep.subr.mxu0 0.0
    %606 = vmatpush2.xpose.msra.mxu0 0.0
    %607 = vmatprep.subr.mxu0 0.0
    %608 = vmatpush2.xpose.msra.mxu0 0.0
    %609 = vmatprep.subr.mxu0 0.0
    %610 = vmatpush2.xpose.msra.mxu0 0.0
    %611 = vmatprep.subr.mxu0 0.0
    %612 = vmatpush2.xpose.msra.mxu0 0.0
    %613 = vmatprep.subr.mxu0 0.0
    %614 = vmatpush2.xpose.msra.mxu0 0.0
    %615 = vmatprep.subr.mxu0 0.0
    %616 = vmatpush2.xpose.msra.mxu0 0.0
    %617 = vmatprep.subr.mxu0 0.0
    %618 = vmatpush2.xpose.msra.mxu0 0.0
    %619 = vmatprep.subr.mxu0 0.0
    %620 = vmatpush2.xpose.msra.mxu0 0.0
    %621 = vmatprep.subr.mxu0 0.0
    %622 = vmatpush2.xpose.msra.mxu0 0.0
    %623 = vmatprep.subr.mxu0 0.0
    %624 = vmatpush2.xpose.msra.mxu0 0.0
    %625 = vmatprep.subr.mxu0 0.0
    %626 = vmatpush2.xpose.msra.mxu0 0.0
    %627 = vmatprep.subr.mxu0 0.0
    %628 = vmatpush2.xpose.msra.mxu0 0.0
    %629 = vmatprep.subr.mxu0 0.0
    %630 = vmatpush2.xpose.msra.mxu0 0.0
    %631 = vmatprep.subr.mxu0 0.0
    %632 = vmatpush2.xpose.msra.mxu0 0.0
    %633 = vmatprep.mubr.f32.mxu0 0.0
    %634 = vmatmul.mubr.f32.gmra.mxu0 %v561
    %v635 = vpop.f32.mrf.mxu0
    %v636 = vadd.f32 0.0, %v635
    %v637 = vpop.f32.mrf.mxu0
    %638 = vmatprep.mubr.f32.mxu0 0.0
    %639 = vmatmul.mubr.f32.gmra.mxu0 %v563
    %v640 = vpop.f32.mrf.mxu0
    %v641 = vadd.f32 0.0, %v640
    %v642 = vpop.f32.mrf.mxu0
    %643 = vdwg.mxu0
    %v644 = vsel %vm394, %v357, 0
    %v646 = vsel %vm394, %v359, 0
    %v648 = vsel %vm394, %v371, 0
    %v650 = vsel %vm394, %v373, 0
    %652 = vmatprep.subr.mxu0 0.0
    %653 = vmatpush1.xpose.msra.mxu0 0.0
    %654 = vmatprep.subr.mxu0 0.0
    %655 = vmatpush1.xpose.msra.mxu0 0.0
    %656 = vmatprep.subr.mxu0 0.0
    %657 = vmatpush1.xpose.msra.mxu0 0.0
    %658 = vmatprep.subr.mxu0 0.0
    %659 = vmatpush1.xpose.msra.mxu0 0.0
    %660 = vmatprep.subr.mxu0 0.0
    %661 = vmatpush1.xpose.msra.mxu0 0.0
    %662 = vmatprep.subr.mxu0 0.0
    %663 = vmatpush1.xpose.msra.mxu0 0.0
    %664 = vmatprep.subr.mxu0 0.0
    %665 = vmatpush1.xpose.msra.mxu0 0.0
    %666 = vmatprep.subr.mxu0 0.0
    %667 = vmatpush1.xpose.msra.mxu0 0.0
    %668 = vmatprep.subr.mxu0 0.0
    %669 = vmatpush1.xpose.msra.mxu0 0.0
    %670 = vmatprep.subr.mxu0 0.0
    %671 = vmatpush1.xpose.msra.mxu0 0.0
    %672 = vmatprep.subr.mxu0 0.0
    %673 = vmatpush1.xpose.msra.mxu0 0.0
    %674 = vmatprep.subr.mxu0 0.0
    %675 = vmatpush1.xpose.msra.mxu0 0.0
    %676 = vmatprep.subr.mxu0 0.0
    %677 = vmatpush1.xpose.msra.mxu0 0.0
    %678 = vmatprep.subr.mxu0 0.0
    %679 = vmatpush1.xpose.msra.mxu0 0.0
    %680 = vmatprep.subr.mxu0 0.0
    %681 = vmatpush1.xpose.msra.mxu0 %v650
    %682 = vmatprep.subr.mxu0 0.0
    %683 = vmatpush1.xpose.msra.mxu0 %v648
    %684 = vmatprep.subr.mxu0 0.0
    %685 = vmatpush2.xpose.msra.mxu0 0.0
    %686 = vmatprep.subr.mxu0 0.0
    %687 = vmatpush2.xpose.msra.mxu0 0.0
    %688 = vmatprep.subr.mxu0 0.0
    %689 = vmatpush2.xpose.msra.mxu0 0.0
    %690 = vmatprep.subr.mxu0 0.0
    %691 = vmatpush2.xpose.msra.mxu0 0.0
    %692 = vmatprep.subr.mxu0 0.0
    %693 = vmatpush2.xpose.msra.mxu0 0.0
    %694 = vmatprep.subr.mxu0 0.0
    %695 = vmatpush2.xpose.msra.mxu0 0.0
    %696 = vmatprep.subr.mxu0 0.0
    %697 = vmatpush2.xpose.msra.mxu0 0.0
    %698 = vmatprep.subr.mxu0 0.0
    %699 = vmatpush2.xpose.msra.mxu0 0.0
    %700 = vmatprep.subr.mxu0 0.0
    %701 = vmatpush2.xpose.msra.mxu0 0.0
    %702 = vmatprep.subr.mxu0 0.0
    %703 = vmatpush2.xpose.msra.mxu0 0.0
    %704 = vmatprep.subr.mxu0 0.0
    %705 = vmatpush2.xpose.msra.mxu0 0.0
    %706 = vmatprep.subr.mxu0 0.0
    %707 = vmatpush2.xpose.msra.mxu0 0.0
    %708 = vmatprep.subr.mxu0 0.0
    %709 = vmatpush2.xpose.msra.mxu0 0.0
    %710 = vmatprep.subr.mxu0 0.0
    %711 = vmatpush2.xpose.msra.mxu0 0.0
    %712 = vmatprep.subr.mxu0 0.0
    %713 = vmatpush2.xpose.msra.mxu0 0.0
    %714 = vmatprep.subr.mxu0 0.0
    %715 = vmatpush2.xpose.msra.mxu0 0.0
    %716 = vmatprep.mubr.f32.mxu0 0.0
    %717 = vmatmul.mubr.f32.gmra.mxu0 %v644
    %v718 = vpop.f32.mrf.mxu0
    %v719 = vadd.f32 0.0, %v718
    %v720 = vpop.f32.mrf.mxu0
    %721 = vmatprep.mubr.f32.mxu0 0.0
    %722 = vmatmul.mubr.f32.gmra.mxu0 %v646
    %v723 = vpop.f32.mrf.mxu0
    %v724 = vadd.f32 0.0, %v723
    %v725 = vpop.f32.mrf.mxu0
    %726 = vdwg.mxu0
    %v727 = vmul.f32 %v470, 0.35355338
    %v728 = vmul.f32 %v475, 0.35355338
    %v729 = vmul.f32 %v553, 0.35355338
    %v730 = vmul.f32 %v558, 0.35355338
    %v731 = vmul.f32 %v636, 0.35355338
    %v732 = vmul.f32 %v641, 0.35355338
    %v733 = vmul.f32 %v719, 0.35355338
    %v734 = vmul.f32 %v724, 0.35355338
    %v735 = vsel %vm68, 1, 0
    %v736 = vsel %vm69, 1, 0
    %vm737 = vcmp.eq.s32.totalorder %v735, 1
    %vm738 = vcmp.eq.s32.totalorder %v736, 1
    %v739 = vsel %vm737, %v727, -1e+30
    %v740 = vsel %vm738, %v728, -1e+30
    %v741 = vsel %vm737, %v729, -1e+30
    %v742 = vsel %vm738, %v730, -1e+30
    %v743 = vsel %vm737, %v731, -1e+30
    %v744 = vsel %vm738, %v732, -1e+30
    %v745 = vsel %vm737, %v733, -1e+30
    %v746 = vsel %vm738, %v734, -1e+30
    %vm747 = vcmask 130048
    %v748 = vsel %vm747, %v739, -inf
    %749 = vmax.xlane.f32.xlu0 %v748
    %v750 = vpop.xlane.xlu0 %749
    %v751 = vsel %vm747, %v740, -inf
    %752 = vmax.xlane.f32.xlu0 %v751
    %v753 = vpop.xlane.xlu0 %752
    %v754 = vsel %vm747, %v741, -inf
    %755 = vmax.xlane.f32.xlu0 %v754
    %v756 = vpop.xlane.xlu0 %755
    %v757 = vsel %vm747, %v742, -inf
    %758 = vmax.xlane.f32.xlu0 %v757
    %v759 = vpop.xlane.xlu0 %758
    %v760 = vsel %vm747, %v743, -inf
    %761 = vmax.xlane.f32.xlu0 %v760
    %v762 = vpop.xlane.xlu0 %761
    %v763 = vsel %vm747, %v744, -inf
    %764 = vmax.xlane.f32.xlu0 %v763
    %v765 = vpop.xlane.xlu0 %764
    %v766 = vsel %vm747, %v745, -inf
    %767 = vmax.xlane.f32.xlu0 %v766
    %v768 = vpop.xlane.xlu0 %767
    %v769 = vsel %vm747, %v746, -inf
    %770 = vmax.xlane.f32.xlu0 %v769
    %v771 = vpop.xlane.xlu0 %770
    %v772 = vsub.f32 %v739, %v750
    %v773 = vsub.f32 %v740, %v753
    %v774 = vsub.f32 %v741, %v756
    %v775 = vsub.f32 %v742, %v759
    %v776 = vsub.f32 %v743, %v762
    %v777 = vsub.f32 %v744, %v765
    %v778 = vsub.f32 %v745, %v768
    %v779 = vsub.f32 %v746, %v771
    %v780 = vmul.f32 %v772, 1.442695
    %v781 = vpow.pop %v780
    %v782 = vmul.f32 %v773, 1.442695
    %v783 = vpow.pop %v782
    %v784 = vmul.f32 %v774, 1.442695
    %v785 = vpow.pop %v784
    %v786 = vmul.f32 %v775, 1.442695
    %v787 = vpow.pop %v786
    %v788 = vmul.f32 %v776, 1.442695
    %v789 = vpow.pop %v788
    %v790 = vmul.f32 %v777, 1.442695
    %v791 = vpow.pop %v790
    %v792 = vmul.f32 %v778, 1.442695
    %v793 = vpow.pop %v792
    %v794 = vmul.f32 %v779, 1.442695
    %v795 = vpow.pop %v794
    %v796 = vsel %vm747, %v781, 0.0
    %797 = vadd.xlane.f32.xlu0 %v796
    %v798 = vpop.xlane.xlu0 %797
    %v799 = vsel %vm747, %v783, 0.0
    %800 = vadd.xlane.f32.xlu0 %v799
    %v801 = vpop.xlane.xlu0 %800
    %v802 = vsel %vm747, %v785, 0.0
    %803 = vadd.xlane.f32.xlu0 %v802
    %v804 = vpop.xlane.xlu0 %803
    %v805 = vsel %vm747, %v787, 0.0
    %806 = vadd.xlane.f32.xlu0 %v805
    %v807 = vpop.xlane.xlu0 %806
    %v808 = vsel %vm747, %v789, 0.0
    %809 = vadd.xlane.f32.xlu0 %v808
    %v810 = vpop.xlane.xlu0 %809
    %v811 = vsel %vm747, %v791, 0.0
    %812 = vadd.xlane.f32.xlu0 %v811
    %v813 = vpop.xlane.xlu0 %812
    %v814 = vsel %vm747, %v793, 0.0
    %815 = vadd.xlane.f32.xlu0 %v814
    %v816 = vpop.xlane.xlu0 %815
    %v817 = vsel %vm747, %v795, 0.0
    %818 = vadd.xlane.f32.xlu0 %v817
    %v819 = vpop.xlane.xlu0 %818
    %v820 = vrcp.pop %v798
    %v821 = vmul.f32 %v781, %v820
    %v822 = vrcp.pop %v801
    %v823 = vmul.f32 %v783, %v822
    %v824 = vrcp.pop %v804
    %v825 = vmul.f32 %v785, %v824
    %v826 = vrcp.pop %v807
    %v827 = vmul.f32 %v787, %v826
    %v828 = vrcp.pop %v810
    %v829 = vmul.f32 %v789, %v828
    %v830 = vrcp.pop %v813
    %v831 = vmul.f32 %v791, %v830
    %v832 = vrcp.pop %v816
    %v833 = vmul.f32 %v793, %v832
    %v834 = vrcp.pop %v819
    %v835 = vmul.f32 %v795, %v834
    %v837 = vsel %vm747, %v821, 0
    %v840 = vsel %vm747, %v823, 0
    %842 = vmatprep.subr.mxu0 0.0
    %843 = vmatpush1.msra.mxu0 0.0
    %844 = vmatprep.subr.mxu0 0.0
    %845 = vmatpush1.msra.mxu0 0.0
    %846 = vmatprep.subr.mxu0 0.0
    %847 = vmatpush1.msra.mxu0 0.0
    %848 = vmatprep.subr.mxu0 0.0
    %849 = vmatpush1.msra.mxu0 0.0
    %850 = vmatprep.subr.mxu0 0.0
    %851 = vmatpush1.msra.mxu0 0.0
    %852 = vmatprep.subr.mxu0 0.0
    %853 = vmatpush1.msra.mxu0 0.0
    %854 = vmatprep.subr.mxu0 0.0
    %855 = vmatpush1.msra.mxu0 0.0
    %856 = vmatprep.subr.mxu0 0.0
    %857 = vmatpush1.msra.mxu0 0.0
    %858 = vmatprep.subr.mxu0 0.0
    %859 = vmatpush1.msra.mxu0 0.0
    %860 = vmatprep.subr.mxu0 0.0
    %861 = vmatpush1.msra.mxu0 0.0
    %862 = vmatprep.subr.mxu0 0.0
    %863 = vmatpush1.msra.mxu0 0.0
    %864 = vmatprep.subr.mxu0 0.0
    %865 = vmatpush1.msra.mxu0 0.0
    %866 = vmatprep.subr.mxu0 0.0
    %867 = vmatpush1.msra.mxu0 0.0
    %868 = vmatprep.subr.mxu0 0.0
    %869 = vmatpush1.msra.mxu0 0.0
    %870 = vmatprep.subr.mxu0 0.0
    %871 = vmatpush1.msra.mxu0 %v345
    %872 = vmatprep.subr.mxu0 0.0
    %873 = vmatpush1.msra.mxu0 %v344
    %874 = vmatprep.subr.mxu0 0.0
    %875 = vmatpush2.msra.mxu0 0.0
    %876 = vmatprep.subr.mxu0 0.0
    %877 = vmatpush2.msra.mxu0 0.0
    %878 = vmatprep.subr.mxu0 0.0
    %879 = vmatpush2.msra.mxu0 0.0
    %880 = vmatprep.subr.mxu0 0.0
    %881 = vmatpush2.msra.mxu0 0.0
    %882 = vmatprep.subr.mxu0 0.0
    %883 = vmatpush2.msra.mxu0 0.0
    %884 = vmatprep.subr.mxu0 0.0
    %885 = vmatpush2.msra.mxu0 0.0
    %886 = vmatprep.subr.mxu0 0.0
    %887 = vmatpush2.msra.mxu0 0.0
    %888 = vmatprep.subr.mxu0 0.0
    %889 = vmatpush2.msra.mxu0 0.0
    %890 = vmatprep.subr.mxu0 0.0
    %891 = vmatpush2.msra.mxu0 0.0
    %892 = vmatprep.subr.mxu0 0.0
    %893 = vmatpush2.msra.mxu0 0.0
    %894 = vmatprep.subr.mxu0 0.0
    %895 = vmatpush2.msra.mxu0 0.0
    %896 = vmatprep.subr.mxu0 0.0
    %897 = vmatpush2.msra.mxu0 0.0
    %898 = vmatprep.subr.mxu0 0.0
    %899 = vmatpush2.msra.mxu0 0.0
    %900 = vmatprep.subr.mxu0 0.0
    %901 = vmatpush2.msra.mxu0 0.0
    %902 = vmatprep.subr.mxu0 0.0
    %903 = vmatpush2.msra.mxu0 0.0
    %904 = vmatprep.subr.mxu0 0.0
    %905 = vmatpush2.msra.mxu0 0.0
    %906 = vmatprep.mubr.f32.mxu0 0.0
    %907 = vmatmul.mubr.f32.gmra.mxu0 %v837
    %v908 = vpop.f32.mrf.mxu0
    %v909 = vadd.f32 0.0, %v908
    %v910 = vpop.f32.mrf.mxu0
    %911 = vmatprep.mubr.f32.mxu0 0.0
    %912 = vmatmul.mubr.f32.gmra.mxu0 %v840
    %v913 = vpop.f32.mrf.mxu0
    %v914 = vadd.f32 0.0, %v913
    %v915 = vpop.f32.mrf.mxu0
    %916 = vdwg.mxu0
    %v918 = vsel %vm747, %v825, 0
    %v921 = vsel %vm747, %v827, 0
    %923 = vmatprep.subr.mxu0 0.0
    %924 = vmatpush1.msra.mxu0 0.0
    %925 = vmatprep.subr.mxu0 0.0
    %926 = vmatpush1.msra.mxu0 0.0
    %927 = vmatprep.subr.mxu0 0.0
    %928 = vmatpush1.msra.mxu0 0.0
    %929 = vmatprep.subr.mxu0 0.0
    %930 = vmatpush1.msra.mxu0 0.0
    %931 = vmatprep.subr.mxu0 0.0
    %932 = vmatpush1.msra.mxu0 0.0
    %933 = vmatprep.subr.mxu0 0.0
    %934 = vmatpush1.msra.mxu0 0.0
    %935 = vmatprep.subr.mxu0 0.0
    %936 = vmatpush1.msra.mxu0 0.0
    %937 = vmatprep.subr.mxu0 0.0
    %938 = vmatpush1.msra.mxu0 0.0
    %939 = vmatprep.subr.mxu0 0.0
    %940 = vmatpush1.msra.mxu0 0.0
    %941 = vmatprep.subr.mxu0 0.0
    %942 = vmatpush1.msra.mxu0 0.0
    %943 = vmatprep.subr.mxu0 0.0
    %944 = vmatpush1.msra.mxu0 0.0
    %945 = vmatprep.subr.mxu0 0.0
    %946 = vmatpush1.msra.mxu0 0.0
    %947 = vmatprep.subr.mxu0 0.0
    %948 = vmatpush1.msra.mxu0 0.0
    %949 = vmatprep.subr.mxu0 0.0
    %950 = vmatpush1.msra.mxu0 0.0
    %951 = vmatprep.subr.mxu0 0.0
    %952 = vmatpush1.msra.mxu0 %v379
    %953 = vmatprep.subr.mxu0 0.0
    %954 = vmatpush1.msra.mxu0 %v377
    %955 = vmatprep.subr.mxu0 0.0
    %956 = vmatpush2.msra.mxu0 0.0
    %957 = vmatprep.subr.mxu0 0.0
    %958 = vmatpush2.msra.mxu0 0.0
    %959 = vmatprep.subr.mxu0 0.0
    %960 = vmatpush2.msra.mxu0 0.0
    %961 = vmatprep.subr.mxu0 0.0
    %962 = vmatpush2.msra.mxu0 0.0
    %963 = vmatprep.subr.mxu0 0.0
    %964 = vmatpush2.msra.mxu0 0.0
    %965 = vmatprep.subr.mxu0 0.0
    %966 = vmatpush2.msra.mxu0 0.0
    %967 = vmatprep.subr.mxu0 0.0
    %968 = vmatpush2.msra.mxu0 0.0
    %969 = vmatprep.subr.mxu0 0.0
    %970 = vmatpush2.msra.mxu0 0.0
    %971 = vmatprep.subr.mxu0 0.0
    %972 = vmatpush2.msra.mxu0 0.0
    %973 = vmatprep.subr.mxu0 0.0
    %974 = vmatpush2.msra.mxu0 0.0
    %975 = vmatprep.subr.mxu0 0.0
    %976 = vmatpush2.msra.mxu0 0.0
    %977 = vmatprep.subr.mxu0 0.0
    %978 = vmatpush2.msra.mxu0 0.0
    %979 = vmatprep.subr.mxu0 0.0
    %980 = vmatpush2.msra.mxu0 0.0
    %981 = vmatprep.subr.mxu0 0.0
    %982 = vmatpush2.msra.mxu0 0.0
    %983 = vmatprep.subr.mxu0 0.0
    %984 = vmatpush2.msra.mxu0 0.0
    %985 = vmatprep.subr.mxu0 0.0
    %986 = vmatpush2.msra.mxu0 0.0
    %987 = vmatprep.mubr.f32.mxu0 0.0
    %988 = vmatmul.mubr.f32.gmra.mxu0 %v918
    %v989 = vpop.f32.mrf.mxu0
    %v990 = vadd.f32 0.0, %v989
    %v991 = vpop.f32.mrf.mxu0
    %992 = vmatprep.mubr.f32.mxu0 0.0
    %993 = vmatmul.mubr.f32.gmra.mxu0 %v921
    %v994 = vpop.f32.mrf.mxu0
    %v995 = vadd.f32 0.0, %v994
    %v996 = vpop.f32.mrf.mxu0
    %997 = vdwg.mxu0
    %v999 = vsel %vm747, %v829, 0
    %v1002 = vsel %vm747, %v831, 0
    %1004 = vmatprep.subr.mxu0 0.0
    %1005 = vmatpush1.msra.mxu0 0.0
    %1006 = vmatprep.subr.mxu0 0.0
    %1007 = vmatpush1.msra.mxu0 0.0
    %1008 = vmatprep.subr.mxu0 0.0
    %1009 = vmatpush1.msra.mxu0 0.0
    %1010 = vmatprep.subr.mxu0 0.0
    %1011 = vmatpush1.msra.mxu0 0.0
    %1012 = vmatprep.subr.mxu0 0.0
    %1013 = vmatpush1.msra.mxu0 0.0
    %1014 = vmatprep.subr.mxu0 0.0
    %1015 = vmatpush1.msra.mxu0 0.0
    %1016 = vmatprep.subr.mxu0 0.0
    %1017 = vmatpush1.msra.mxu0 0.0
    %1018 = vmatprep.subr.mxu0 0.0
    %1019 = vmatpush1.msra.mxu0 0.0
    %1020 = vmatprep.subr.mxu0 0.0
    %1021 = vmatpush1.msra.mxu0 0.0
    %1022 = vmatprep.subr.mxu0 0.0
    %1023 = vmatpush1.msra.mxu0 0.0
    %1024 = vmatprep.subr.mxu0 0.0
    %1025 = vmatpush1.msra.mxu0 0.0
    %1026 = vmatprep.subr.mxu0 0.0
    %1027 = vmatpush1.msra.mxu0 0.0
    %1028 = vmatprep.subr.mxu0 0.0
    %1029 = vmatpush1.msra.mxu0 0.0
    %1030 = vmatprep.subr.mxu0 0.0
    %1031 = vmatpush1.msra.mxu0 0.0
    %1032 = vmatprep.subr.mxu0 0.0
    %1033 = vmatpush1.msra.mxu0 %v385
    %1034 = vmatprep.subr.mxu0 0.0
    %1035 = vmatpush1.msra.mxu0 %v383
    %1036 = vmatprep.subr.mxu0 0.0
    %1037 = vmatpush2.msra.mxu0 0.0
    %1038 = vmatprep.subr.mxu0 0.0
    %1039 = vmatpush2.msra.mxu0 0.0
    %1040 = vmatprep.subr.mxu0 0.0
    %1041 = vmatpush2.msra.mxu0 0.0
    %1042 = vmatprep.subr.mxu0 0.0
    %1043 = vmatpush2.msra.mxu0 0.0
    %1044 = vmatprep.subr.mxu0 0.0
    %1045 = vmatpush2.msra.mxu0 0.0
    %1046 = vmatprep.subr.mxu0 0.0
    %1047 = vmatpush2.msra.mxu0 0.0
    %1048 = vmatprep.subr.mxu0 0.0
    %1049 = vmatpush2.msra.mxu0 0.0
    %1050 = vmatprep.subr.mxu0 0.0
    %1051 = vmatpush2.msra.mxu0 0.0
    %1052 = vmatprep.subr.mxu0 0.0
    %1053 = vmatpush2.msra.mxu0 0.0
    %1054 = vmatprep.subr.mxu0 0.0
    %1055 = vmatpush2.msra.mxu0 0.0
    %1056 = vmatprep.subr.mxu0 0.0
    %1057 = vmatpush2.msra.mxu0 0.0
    %1058 = vmatprep.subr.mxu0 0.0
    %1059 = vmatpush2.msra.mxu0 0.0
    %1060 = vmatprep.subr.mxu0 0.0
    %1061 = vmatpush2.msra.mxu0 0.0
    %1062 = vmatprep.subr.mxu0 0.0
    %1063 = vmatpush2.msra.mxu0 0.0
    %1064 = vmatprep.subr.mxu0 0.0
    %1065 = vmatpush2.msra.mxu0 0.0
    %1066 = vmatprep.subr.mxu0 0.0
    %1067 = vmatpush2.msra.mxu0 0.0
    %1068 = vmatprep.mubr.f32.mxu0 0.0
    %1069 = vmatmul.mubr.f32.gmra.mxu0 %v999
    %v1070 = vpop.f32.mrf.mxu0
    %v1071 = vadd.f32 0.0, %v1070
    %v1072 = vpop.f32.mrf.mxu0
    %1073 = vmatprep.mubr.f32.mxu0 0.0
    %1074 = vmatmul.mubr.f32.gmra.mxu0 %v1002
    %v1075 = vpop.f32.mrf.mxu0
    %v1076 = vadd.f32 0.0, %v1075
    %v1077 = vpop.f32.mrf.mxu0
    %1078 = vdwg.mxu0
    %v1080 = vsel %vm747, %v833, 0
    %v1083 = vsel %vm747, %v835, 0
    %1085 = vmatprep.subr.mxu0 0.0
    %1086 = vmatpush1.msra.mxu0 0.0
    %1087 = vmatprep.subr.mxu0 0.0
    %1088 = vmatpush1.msra.mxu0 0.0
    %1089 = vmatprep.subr.mxu0 0.0
    %1090 = vmatpush1.msra.mxu0 0.0
    %1091 = vmatprep.subr.mxu0 0.0
    %1092 = vmatpush1.msra.mxu0 0.0
    %1093 = vmatprep.subr.mxu0 0.0
    %1094 = vmatpush1.msra.mxu0 0.0
    %1095 = vmatprep.subr.mxu0 0.0
    %1096 = vmatpush1.msra.mxu0 0.0
    %1097 = vmatprep.subr.mxu0 0.0
    %1098 = vmatpush1.msra.mxu0 0.0
    %1099 = vmatprep.subr.mxu0 0.0
    %1100 = vmatpush1.msra.mxu0 0.0
    %1101 = vmatprep.subr.mxu0 0.0
    %1102 = vmatpush1.msra.mxu0 0.0
    %1103 = vmatprep.subr.mxu0 0.0
    %1104 = vmatpush1.msra.mxu0 0.0
    %1105 = vmatprep.subr.mxu0 0.0
    %1106 = vmatpush1.msra.mxu0 0.0
    %1107 = vmatprep.subr.mxu0 0.0
    %1108 = vmatpush1.msra.mxu0 0.0
    %1109 = vmatprep.subr.mxu0 0.0
    %1110 = vmatpush1.msra.mxu0 0.0
    %1111 = vmatprep.subr.mxu0 0.0
    %1112 = vmatpush1.msra.mxu0 0.0
    %1113 = vmatprep.subr.mxu0 0.0
    %1114 = vmatpush1.msra.mxu0 %v391
    %1115 = vmatprep.subr.mxu0 0.0
    %1116 = vmatpush1.msra.mxu0 %v389
    %1117 = vmatprep.subr.mxu0 0.0
    %1118 = vmatpush2.msra.mxu0 0.0
    %1119 = vmatprep.subr.mxu0 0.0
    %1120 = vmatpush2.msra.mxu0 0.0
    %1121 = vmatprep.subr.mxu0 0.0
    %1122 = vmatpush2.msra.mxu0 0.0
    %1123 = vmatprep.subr.mxu0 0.0
    %1124 = vmatpush2.msra.mxu0 0.0
    %1125 = vmatprep.subr.mxu0 0.0
    %1126 = vmatpush2.msra.mxu0 0.0
    %1127 = vmatprep.subr.mxu0 0.0
    %1128 = vmatpush2.msra.mxu0 0.0
    %1129 = vmatprep.subr.mxu0 0.0
    %1130 = vmatpush2.msra.mxu0 0.0
    %1131 = vmatprep.subr.mxu0 0.0
    %1132 = vmatpush2.msra.mxu0 0.0
    %1133 = vmatprep.subr.mxu0 0.0
    %1134 = vmatpush2.msra.mxu0 0.0
    %1135 = vmatprep.subr.mxu0 0.0
    %1136 = vmatpush2.msra.mxu0 0.0
    %1137 = vmatprep.subr.mxu0 0.0
    %1138 = vmatpush2.msra.mxu0 0.0
    %1139 = vmatprep.subr.mxu0 0.0
    %1140 = vmatpush2.msra.mxu0 0.0
    %1141 = vmatprep.subr.mxu0 0.0
    %1142 = vmatpush2.msra.mxu0 0.0
    %1143 = vmatprep.subr.mxu0 0.0
    %1144 = vmatpush2.msra.mxu0 0.0
    %1145 = vmatprep.subr.mxu0 0.0
    %1146 = vmatpush2.msra.mxu0 0.0
    %1147 = vmatprep.subr.mxu0 0.0
    %1148 = vmatpush2.msra.mxu0 0.0
    %1149 = vmatprep.mubr.f32.mxu0 0.0
    %1150 = vmatmul.mubr.f32.gmra.mxu0 %v1080
    %v1151 = vpop.f32.mrf.mxu0
    %v1152 = vadd.f32 0.0, %v1151
    %v1153 = vpop.f32.mrf.mxu0
    %1154 = vmatprep.mubr.f32.mxu0 0.0
    %1155 = vmatmul.mubr.f32.gmra.mxu0 %v1083
    %v1156 = vpop.f32.mrf.mxu0
    %v1157 = vadd.f32 0.0, %v1156
    %v1158 = vpop.f32.mrf.mxu0
    %1159 = vdwg.mxu0
    %1162 = vrot.lane.b32.xlu0 %v990, 8
    %v1163 = vpop.permute.xlu0 %1162
    %1164 = vrot.lane.b32.xlu0 %v995, 8
    %v1165 = vpop.permute.xlu0 %1164
    %1170 = vrot.lane.b32.xlu0 %v1071, 16
    %v1171 = vpop.permute.xlu0 %1170
    %1172 = vrot.lane.b32.xlu0 %v1076, 16
    %v1173 = vpop.permute.xlu0 %1172
    %1178 = vrot.lane.b32.xlu0 %v1152, 24
    %v1179 = vpop.permute.xlu0 %1178
    %1180 = vrot.lane.b32.xlu0 %v1157, 24
    %v1181 = vpop.permute.xlu0 %1180
    %v1184 = vsel %vm394, %v909, %v1163
    %v1185 = vsel %vm394, %v914, %v1165
    %v1186 = vsel %vm747, %v1184, %v1171
    %v1187 = vsel %vm747, %v1185, %v1173
    %vm1188 = vcmask 195584
    %v1189 = vsel %vm1188, %v1186, %v1179
    %v1190 = vsel %vm1188, %v1187, %v1181
    %v1191 = vld [vmem:[%s3] sm:$0xff]
    %v1192 = vld [vmem:[%s3 + $0x8] sm:$0xff]
    %v1193 = vld [vmem:[%s3 + $0x10] sm:$0xff]
    %v1194 = vld [vmem:[%s3 + $0x18] sm:$0xff]
    %v1195 = vlaneseq
    %v1196 = vshrl.u32 %v1195, 7
    %v1197 = vsub.s32 3, %v1196
    %v1198 = vrot.slane %v156, %v1197
    %v1200 = vsel %vm72, %v1189, 0
    %v1203 = vsel %vm72, %v1190, 0
    %1205 = vmatprep.subr.mxu0 0.0
    %1206 = vmatpush1.msra.mxu0 0.0
    %1207 = vmatprep.subr.mxu0 0.0
    %1208 = vmatpush1.msra.mxu0 0.0
    %1209 = vmatprep.subr.mxu0 0.0
    %1210 = vmatpush1.msra.mxu0 0.0
    %1211 = vmatprep.subr.mxu0 0.0
    %1212 = vmatpush1.msra.mxu0 0.0
    %1213 = vmatprep.subr.mxu0 0.0
    %1214 = vmatpush1.msra.mxu0 0.0
    %1215 = vmatprep.subr.mxu0 0.0
    %1216 = vmatpush1.msra.mxu0 0.0
    %1217 = vmatprep.subr.mxu0 0.0
    %1218 = vmatpush1.msra.mxu0 0.0
    %1219 = vmatprep.subr.mxu0 0.0
    %1220 = vmatpush1.msra.mxu0 0.0
    %1221 = vmatprep.subr.mxu0 0.0
    %1222 = vmatpush1.msra.mxu0 0.0
    %1223 = vmatprep.subr.mxu0 0.0
    %1224 = vmatpush1.msra.mxu0 0.0
    %1225 = vmatprep.subr.mxu0 0.0
    %1226 = vmatpush1.msra.mxu0 0.0
    %1227 = vmatprep.subr.mxu0 0.0
    %1228 = vmatpush1.msra.mxu0 0.0
    %1229 = vmatprep.subr.mxu0 0.0
    %1230 = vmatpush1.msra.mxu0 %v1194
    %1231 = vmatprep.subr.mxu0 0.0
    %1232 = vmatpush1.msra.mxu0 %v1193
    %1233 = vmatprep.subr.mxu0 0.0
    %1234 = vmatpush1.msra.mxu0 %v1192
    %1235 = vmatprep.subr.mxu0 0.0
    %1236 = vmatpush1.msra.mxu0 %v1191
    %1237 = vmatprep.subr.mxu0 0.0
    %1238 = vmatpush2.msra.mxu0 0.0
    %1239 = vmatprep.subr.mxu0 0.0
    %1240 = vmatpush2.msra.mxu0 0.0
    %1241 = vmatprep.subr.mxu0 0.0
    %1242 = vmatpush2.msra.mxu0 0.0
    %1243 = vmatprep.subr.mxu0 0.0
    %1244 = vmatpush2.msra.mxu0 0.0
    %1245 = vmatprep.subr.mxu0 0.0
    %1246 = vmatpush2.msra.mxu0 0.0
    %1247 = vmatprep.subr.mxu0 0.0
    %1248 = vmatpush2.msra.mxu0 0.0
    %1249 = vmatprep.subr.mxu0 0.0
    %1250 = vmatpush2.msra.mxu0 0.0
    %1251 = vmatprep.subr.mxu0 0.0
    %1252 = vmatpush2.msra.mxu0 0.0
    %1253 = vmatprep.subr.mxu0 0.0
    %1254 = vmatpush2.msra.mxu0 0.0
    %1255 = vmatprep.subr.mxu0 0.0
    %1256 = vmatpush2.msra.mxu0 0.0
    %1257 = vmatprep.subr.mxu0 0.0
    %1258 = vmatpush2.msra.mxu0 0.0
    %1259 = vmatprep.subr.mxu0 0.0
    %1260 = vmatpush2.msra.mxu0 0.0
    %1261 = vmatprep.subr.mxu0 0.0
    %1262 = vmatpush2.msra.mxu0 0.0
    %1263 = vmatprep.subr.mxu0 0.0
    %1264 = vmatpush2.msra.mxu0 0.0
    %1265 = vmatprep.subr.mxu0 0.0
    %1266 = vmatpush2.msra.mxu0 0.0
    %1267 = vmatprep.subr.mxu0 0.0
    %1268 = vmatpush2.msra.mxu0 0.0
    %1269 = vmatprep.mubr.f32.mxu0 0.0
    %1270 = vmatmul.mubr.f32.gmra.mxu0 %v1200
    %v1271 = vpop.f32.mrf.mxu0
    %v1272 = vadd.f32 %v1198, %v1271
    %v1273 = vpop.f32.mrf.mxu0
    %1274 = vmatprep.mubr.f32.mxu0 0.0
    %1275 = vmatmul.mubr.f32.gmra.mxu0 %v1203
    %v1276 = vpop.f32.mrf.mxu0
    %v1277 = vadd.f32 %v1198, %v1276
    %v1278 = vpop.f32.mrf.mxu0
    %1279 = vdwg.mxu0
    %v1280 = vadd.f32 %v154, %v1272
    %v1281 = vadd.f32 %v155, %v1277
    %v1282 = vsel %vm72, %v1280, 0.0
    %1283 = vadd.xlane.f32.xlu0 %v1282
    %v1284 = vpop.xlane.xlu0 %1283
    %v1285 = vsel %vm72, %v1281, 0.0
    %1286 = vadd.xlane.f32.xlu0 %v1285
    %v1287 = vpop.xlane.xlu0 %1286
    %v1288 = vrcp.pop 32.0
    %v1289 = vmul.f32 %v1284, %v1288
    %v1290 = vmul.f32 %v1287, %v1288
    %v1291 = vsub.f32 %v1280, %v1289
    %v1292 = vsub.f32 %v1281, %v1290
    %v1293 = vmul.f32 %v1291, %v1291
    %v1294 = vmul.f32 %v1292, %v1292
    %v1295 = vsel %vm72, %v1293, 0.0
    %1296 = vadd.xlane.f32.xlu0 %v1295
    %v1297 = vpop.xlane.xlu0 %1296
    %v1298 = vsel %vm72, %v1294, 0.0
    %1299 = vadd.xlane.f32.xlu0 %v1298
    %v1300 = vpop.xlane.xlu0 %1299
    %v1301 = vmul.f32 %v1297, %v1288
    %v1302 = vmul.f32 %v1300, %v1288
    %v1303 = vadd.f32 %v1301, 1e-05
    %v1304 = vadd.f32 %v1302, 1e-05
    %v1305 = vrsqrt.pop %v1303
    %v1306 = vrsqrt.pop %v1304
    %v1307 = vmul.f32 %v1291, %v1305
    %v1308 = vmul.f32 %v1292, %v1306
    %v1309 = vlaneseq
    %v1310 = vshrl.u32 %v1309, 7
    %v1311 = vsub.s32 4, %v1310
    %v1312 = vrot.slane %v156, %v1311
    %v1313 = vmul.f32 %v1307, %v1312
    %v1314 = vmul.f32 %v1308, %v1312
    %v1315 = vlaneseq
    %v1316 = vshrl.u32 %v1315, 7
    %v1317 = vsub.s32 5, %v1316
    %v1318 = vrot.slane %v156, %v1317
    %v1319 = vadd.f32 %v1313, %v1318
    %v1320 = vadd.f32 %v1314, %v1318
    %v1321 = vld [vmem:[%s4] sm:$0xff]
    %v1322 = vld [vmem:[%s4 + $0x8] sm:$0xff]
    %v1323 = vld [vmem:[%s4 + $0x10] sm:$0xff]
    %v1324 = vld [vmem:[%s4 + $0x18] sm:$0xff]
    %v1325 = vlaneseq
    %v1326 = vshrl.u32 %v1325, 7
    %v1327 = vsub.s32 6, %v1326
    %v1328 = vrot.slane %v156, %v1327
    %v1330 = vsel %vm72, %v1319, 0
    %v1333 = vsel %vm72, %v1320, 0
    %1335 = vmatprep.subr.mxu0 0.0
    %1336 = vmatpush1.msra.mxu0 0.0
    %1337 = vmatprep.subr.mxu0 0.0
    %1338 = vmatpush1.msra.mxu0 0.0
    %1339 = vmatprep.subr.mxu0 0.0
    %1340 = vmatpush1.msra.mxu0 0.0
    %1341 = vmatprep.subr.mxu0 0.0
    %1342 = vmatpush1.msra.mxu0 0.0
    %1343 = vmatprep.subr.mxu0 0.0
    %1344 = vmatpush1.msra.mxu0 0.0
    %1345 = vmatprep.subr.mxu0 0.0
    %1346 = vmatpush1.msra.mxu0 0.0
    %1347 = vmatprep.subr.mxu0 0.0
    %1348 = vmatpush1.msra.mxu0 0.0
    %1349 = vmatprep.subr.mxu0 0.0
    %1350 = vmatpush1.msra.mxu0 0.0
    %1351 = vmatprep.subr.mxu0 0.0
    %1352 = vmatpush1.msra.mxu0 0.0
    %1353 = vmatprep.subr.mxu0 0.0
    %1354 = vmatpush1.msra.mxu0 0.0
    %1355 = vmatprep.subr.mxu0 0.0
    %1356 = vmatpush1.msra.mxu0 0.0
    %1357 = vmatprep.subr.mxu0 0.0
    %1358 = vmatpush1.msra.mxu0 0.0
    %1359 = vmatprep.subr.mxu0 0.0
    %1360 = vmatpush1.msra.mxu0 %v1324
    %1361 = vmatprep.subr.mxu0 0.0
    %1362 = vmatpush1.msra.mxu0 %v1323
    %1363 = vmatprep.subr.mxu0 0.0
    %1364 = vmatpush1.msra.mxu0 %v1322
    %1365 = vmatprep.subr.mxu0 0.0
    %1366 = vmatpush1.msra.mxu0 %v1321
    %1367 = vmatprep.subr.mxu0 0.0
    %1368 = vmatpush2.msra.mxu0 0.0
    %1369 = vmatprep.subr.mxu0 0.0
    %1370 = vmatpush2.msra.mxu0 0.0
    %1371 = vmatprep.subr.mxu0 0.0
    %1372 = vmatpush2.msra.mxu0 0.0
    %1373 = vmatprep.subr.mxu0 0.0
    %1374 = vmatpush2.msra.mxu0 0.0
    %1375 = vmatprep.subr.mxu0 0.0
    %1376 = vmatpush2.msra.mxu0 0.0
    %1377 = vmatprep.subr.mxu0 0.0
    %1378 = vmatpush2.msra.mxu0 0.0
    %1379 = vmatprep.subr.mxu0 0.0
    %1380 = vmatpush2.msra.mxu0 0.0
    %1381 = vmatprep.subr.mxu0 0.0
    %1382 = vmatpush2.msra.mxu0 0.0
    %1383 = vmatprep.subr.mxu0 0.0
    %1384 = vmatpush2.msra.mxu0 0.0
    %1385 = vmatprep.subr.mxu0 0.0
    %1386 = vmatpush2.msra.mxu0 0.0
    %1387 = vmatprep.subr.mxu0 0.0
    %1388 = vmatpush2.msra.mxu0 0.0
    %1389 = vmatprep.subr.mxu0 0.0
    %1390 = vmatpush2.msra.mxu0 0.0
    %1391 = vmatprep.subr.mxu0 0.0
    %1392 = vmatpush2.msra.mxu0 0.0
    %1393 = vmatprep.subr.mxu0 0.0
    %1394 = vmatpush2.msra.mxu0 0.0
    %1395 = vmatprep.subr.mxu0 0.0
    %1396 = vmatpush2.msra.mxu0 0.0
    %1397 = vmatprep.subr.mxu0 0.0
    %1398 = vmatpush2.msra.mxu0 0.0
    %1399 = vmatprep.mubr.f32.mxu0 0.0
    %1400 = vmatmul.mubr.f32.gmra.mxu0 %v1330
    %v1401 = vpop.f32.mrf.mxu0
    %v1402 = vadd.f32 %v1328, %v1401
    %v1403 = vpop.f32.mrf.mxu0
    %1404 = vmatprep.mubr.f32.mxu0 0.0
    %1405 = vmatmul.mubr.f32.gmra.mxu0 %v1333
    %v1406 = vpop.f32.mrf.mxu0
    %v1407 = vadd.f32 %v1328, %v1406
    %v1408 = vpop.f32.mrf.mxu0
    %1409 = vdwg.mxu0
    %v1410 = vmax.f32 %v1402, 0.0
    %v1411 = vmax.f32 %v1407, 0.0
    %v1412 = vld [vmem:[%s5] sm:$0xff]
    %v1413 = vld [vmem:[%s5 + $0x8] sm:$0xff]
    %v1414 = vld [vmem:[%s5 + $0x10] sm:$0xff]
    %v1415 = vld [vmem:[%s5 + $0x18] sm:$0xff]
    %v1416 = vld [vmem:[%s5 + $0x20] sm:$0xff]
    %v1417 = vld [vmem:[%s5 + $0x28] sm:$0xff]
    %v1418 = vld [vmem:[%s5 + $0x30] sm:$0xff]
    %v1419 = vld [vmem:[%s5 + $0x38] sm:$0xff]
    %v1420 = vld [vmem:[%s5 + $0x40] sm:$0xff]
    %v1421 = vld [vmem:[%s5 + $0x48] sm:$0xff]
    %v1422 = vld [vmem:[%s5 + $0x50] sm:$0xff]
    %v1423 = vld [vmem:[%s5 + $0x58] sm:$0xff]
    %v1424 = vld [vmem:[%s5 + $0x60] sm:$0xff]
    %v1425 = vld [vmem:[%s5 + $0x68] sm:$0xff]
    %v1426 = vld [vmem:[%s5 + $0x70] sm:$0xff]
    %v1427 = vld [vmem:[%s5 + $0x78] sm:$0xff]
    %v1428 = vlaneseq
    %v1429 = vshrl.u32 %v1428, 7
    %v1430 = vsub.s32 7, %v1429
    %v1431 = vrot.slane %v156, %v1430
    %1432 = vmatprep.subr.mxu0 0.0
    %1433 = vmatpush1.msra.mxu0 %v1427
    %1434 = vmatprep.subr.mxu0 0.0
    %1435 = vmatpush1.msra.mxu0 %v1426
    %1436 = vmatprep.subr.mxu0 0.0
    %1437 = vmatpush1.msra.mxu0 %v1425
    %1438 = vmatprep.subr.mxu0 0.0
    %1439 = vmatpush1.msra.mxu0 %v1424
    %1440 = vmatprep.subr.mxu0 0.0
    %1441 = vmatpush1.msra.mxu0 %v1423
    %1442 = vmatprep.subr.mxu0 0.0
    %1443 = vmatpush1.msra.mxu0 %v1422
    %1444 = vmatprep.subr.mxu0 0.0
    %1445 = vmatpush1.msra.mxu0 %v1421
    %1446 = vmatprep.subr.mxu0 0.0
    %1447 = vmatpush1.msra.mxu0 %v1420
    %1448 = vmatprep.subr.mxu0 0.0
    %1449 = vmatpush1.msra.mxu0 %v1419
    %1450 = vmatprep.subr.mxu0 0.0
    %1451 = vmatpush1.msra.mxu0 %v1418
    %1452 = vmatprep.subr.mxu0 0.0
    %1453 = vmatpush1.msra.mxu0 %v1417
    %1454 = vmatprep.subr.mxu0 0.0
    %1455 = vmatpush1.msra.mxu0 %v1416
    %1456 = vmatprep.subr.mxu0 0.0
    %1457 = vmatpush1.msra.mxu0 %v1415
    %1458 = vmatprep.subr.mxu0 0.0
    %1459 = vmatpush1.msra.mxu0 %v1414
    %1460 = vmatprep.subr.mxu0 0.0
    %1461 = vmatpush1.msra.mxu0 %v1413
    %1462 = vmatprep.subr.mxu0 0.0
    %1463 = vmatpush1.msra.mxu0 %v1412
    %1464 = vmatprep.subr.mxu0 0.0
    %1465 = vmatpush2.msra.mxu0 0.0
    %1466 = vmatprep.subr.mxu0 0.0
    %1467 = vmatpush2.msra.mxu0 0.0
    %1468 = vmatprep.subr.mxu0 0.0
    %1469 = vmatpush2.msra.mxu0 0.0
    %1470 = vmatprep.subr.mxu0 0.0
    %1471 = vmatpush2.msra.mxu0 0.0
    %1472 = vmatprep.subr.mxu0 0.0
    %1473 = vmatpush2.msra.mxu0 0.0
    %1474 = vmatprep.subr.mxu0 0.0
    %1475 = vmatpush2.msra.mxu0 0.0
    %1476 = vmatprep.subr.mxu0 0.0
    %1477 = vmatpush2.msra.mxu0 0.0
    %1478 = vmatprep.subr.mxu0 0.0
    %1479 = vmatpush2.msra.mxu0 0.0
    %1480 = vmatprep.subr.mxu0 0.0
    %1481 = vmatpush2.msra.mxu0 0.0
    %1482 = vmatprep.subr.mxu0 0.0
    %1483 = vmatpush2.msra.mxu0 0.0
    %1484 = vmatprep.subr.mxu0 0.0
    %1485 = vmatpush2.msra.mxu0 0.0
    %1486 = vmatprep.subr.mxu0 0.0
    %1487 = vmatpush2.msra.mxu0 0.0
    %1488 = vmatprep.subr.mxu0 0.0
    %1489 = vmatpush2.msra.mxu0 0.0
    %1490 = vmatprep.subr.mxu0 0.0
    %1491 = vmatpush2.msra.mxu0 0.0
    %1492 = vmatprep.subr.mxu0 0.0
    %1493 = vmatpush2.msra.mxu0 0.0
    %1494 = vmatprep.subr.mxu0 0.0
    %1495 = vmatpush2.msra.mxu0 0.0
    %1496 = vmatprep.mubr.f32.mxu0 0.0
    %1497 = vmatmul.mubr.f32.gmra.mxu0 %v1410
    %v1498 = vpop.f32.mrf.mxu0
    %v1499 = vadd.f32 %v1431, %v1498
    %v1500 = vpop.f32.mrf.mxu0
    %1501 = vmatprep.mubr.f32.mxu0 0.0
    %1502 = vmatmul.mubr.f32.gmra.mxu0 %v1411
    %v1503 = vpop.f32.mrf.mxu0
    %v1504 = vadd.f32 %v1431, %v1503
    %v1505 = vpop.f32.mrf.mxu0
    %1506 = vdwg.mxu0
    %v1507 = vadd.f32 %v1319, %v1499
    %v1508 = vadd.f32 %v1320, %v1504
    %v1509 = vsel %vm72, %v1507, 0.0
    %1510 = vadd.xlane.f32.xlu0 %v1509
    %v1511 = vpop.xlane.xlu0 %1510
    %v1512 = vsel %vm72, %v1508, 0.0
    %1513 = vadd.xlane.f32.xlu0 %v1512
    %v1514 = vpop.xlane.xlu0 %1513
    %v1515 = vmul.f32 %v1511, %v1288
    %v1516 = vmul.f32 %v1514, %v1288
    %v1517 = vsub.f32 %v1507, %v1515
    %v1518 = vsub.f32 %v1508, %v1516
    %v1519 = vmul.f32 %v1517, %v1517
    %v1520 = vmul.f32 %v1518, %v1518
    %v1521 = vsel %vm72, %v1519, 0.0
    %1522 = vadd.xlane.f32.xlu0 %v1521
    %v1523 = vpop.xlane.xlu0 %1522
    %v1524 = vsel %vm72, %v1520, 0.0
    %1525 = vadd.xlane.f32.xlu0 %v1524
    %v1526 = vpop.xlane.xlu0 %1525
    %v1527 = vmul.f32 %v1523, %v1288
    %v1528 = vmul.f32 %v1526, %v1288
    %v1529 = vadd.f32 %v1527, 1e-05
    %v1530 = vadd.f32 %v1528, 1e-05
    %v1531 = vrsqrt.pop %v1529
    %v1532 = vrsqrt.pop %v1530
    %v1533 = vmul.f32 %v1517, %v1531
    %v1534 = vmul.f32 %v1518, %v1532
    %v1535 = vlaneseq
    %v1536 = vshrl.u32 %v1535, 7
    %v1537 = vsub.s32 0, %v1536
    %v1538 = vrot.slane %v157, %v1537
    %v1539 = vmul.f32 %v1533, %v1538
    %v1540 = vmul.f32 %v1534, %v1538
    %v1541 = vlaneseq
    %v1542 = vshrl.u32 %v1541, 7
    %v1543 = vsub.s32 1, %v1542
    %v1544 = vrot.slane %v157, %v1543
    %v1545 = vadd.f32 %v1539, %v1544
    %v1546 = vadd.f32 %v1540, %v1544
    %s1547 = scalar_lea.vmem %s6, 16
    %v1548 = vld [vmem:[%s1547] sm:$0xff]
    %v1549 = vld [vmem:[%s1547 + $0x8] sm:$0x3]
    %s1550 = scalar_lea.vmem [#allocation2], 96
    %v1551 = vld [vmem:[%s1550] sm:$0xff]
    %v1552 = vld [vmem:[%s1550 + $0x8] sm:$0xff]
    %v1553 = vld [vmem:[%s1550 + $0x10] sm:$0xff]
    %v1554 = vld [vmem:[%s1550 + $0x18] sm:$0xff]
    %v1555 = vld [vmem:[%s1550 + $0x20] sm:$0xff]
    %v1556 = vld [vmem:[%s1550 + $0x28] sm:$0xff]
    %v1557 = vld [vmem:[%s1550 + $0x30] sm:$0xff]
    %v1558 = vld [vmem:[%s1550 + $0x38] sm:$0xff]
    %v1559 = vld [vmem:[%s1550 + $0x40] sm:$0xff]
    %v1560 = vld [vmem:[%s1550 + $0x48] sm:$0xff]
    %v1561 = vld [vmem:[%s1550 + $0x50] sm:$0xff]
    %v1562 = vld [vmem:[%s1550 + $0x58] sm:$0xff]
    %v1564 = vsel %vm72, %v1545, 0
    %v1567 = vsel %vm72, %v1546, 0
    %1569 = vmatprep.subr.mxu0 0.0
    %1570 = vmatpush1.msra.mxu0 0.0
    %1571 = vmatprep.subr.mxu0 0.0
    %1572 = vmatpush1.msra.mxu0 0.0
    %1573 = vmatprep.subr.mxu0 0.0
    %1574 = vmatpush1.msra.mxu0 0.0
    %1575 = vmatprep.subr.mxu0 0.0
    %1576 = vmatpush1.msra.mxu0 0.0
    %1577 = vmatprep.subr.mxu0 0.0
    %1578 = vmatpush1.msra.mxu0 0.0
    %1579 = vmatprep.subr.mxu0 0.0
    %1580 = vmatpush1.msra.mxu0 0.0
    %1581 = vmatprep.subr.mxu0 0.0
    %1582 = vmatpush1.msra.mxu0 0.0
    %1583 = vmatprep.subr.mxu0 0.0
    %1584 = vmatpush1.msra.mxu0 0.0
    %1585 = vmatprep.subr.mxu0 0.0
    %1586 = vmatpush1.msra.mxu0 0.0
    %1587 = vmatprep.subr.mxu0 0.0
    %1588 = vmatpush1.msra.mxu0 0.0
    %1589 = vmatprep.subr.mxu0 0.0
    %1590 = vmatpush1.msra.mxu0 0.0
    %1591 = vmatprep.subr.mxu0 0.0
    %1592 = vmatpush1.msra.mxu0 0.0
    %1593 = vmatprep.subr.mxu0 %v1561
    %1594 = vmatpush1.msra.mxu0 %v1560
    %1595 = vmatprep.subr.mxu0 %v1558
    %1596 = vmatpush1.msra.mxu0 %v1557
    %1597 = vmatprep.subr.mxu0 %v1555
    %1598 = vmatpush1.msra.mxu0 %v1554
    %1599 = vmatprep.subr.mxu0 %v1552
    %1600 = vmatpush1.msra.mxu0 %v1551
    %1601 = vmatprep.subr.mxu0 0.0
    %1602 = vmatpush2.msra.mxu0 0.0
    %1603 = vmatprep.subr.mxu0 0.0
    %1604 = vmatpush2.msra.mxu0 0.0
    %1605 = vmatprep.subr.mxu0 0.0
    %1606 = vmatpush2.msra.mxu0 0.0
    %1607 = vmatprep.subr.mxu0 0.0
    %1608 = vmatpush2.msra.mxu0 0.0
    %1609 = vmatprep.subr.mxu0 0.0
    %1610 = vmatpush2.msra.mxu0 0.0
    %1611 = vmatprep.subr.mxu0 0.0
    %1612 = vmatpush2.msra.mxu0 0.0
    %1613 = vmatprep.subr.mxu0 0.0
    %1614 = vmatpush2.msra.mxu0 0.0
    %1615 = vmatprep.subr.mxu0 0.0
    %1616 = vmatpush2.msra.mxu0 0.0
    %1617 = vmatprep.subr.mxu0 0.0
    %1618 = vmatpush2.msra.mxu0 0.0
    %1619 = vmatprep.subr.mxu0 0.0
    %1620 = vmatpush2.msra.mxu0 0.0
    %1621 = vmatprep.subr.mxu0 0.0
    %1622 = vmatpush2.msra.mxu0 0.0
    %1623 = vmatprep.subr.mxu0 0.0
    %1624 = vmatpush2.msra.mxu0 0.0
    %1625 = vmatprep.subr.mxu0 0.0
    %1626 = vmatpush2.msra.mxu0 0.0
    %1627 = vmatprep.subr.mxu0 0.0
    %1628 = vmatpush2.msra.mxu0 0.0
    %1629 = vmatprep.subr.mxu0 0.0
    %1630 = vmatpush2.msra.mxu0 0.0
    %1631 = vmatprep.subr.mxu0 0.0
    %1632 = vmatpush2.msra.mxu0 0.0
    %1633 = vmatprep.mubr.f32.mxu0 0.0
    %1634 = vmatmul.mubr.f32.gmra.mxu0 %v1564
    %v1635 = vpop.f32.mrf.mxu0
    %v1636 = vadd.f32 0.0, %v1635
    %v1637 = vpop.f32.mrf.mxu0
    %v1638 = vadd.f32 0.0, %v1637
    %1639 = vmatprep.mubr.f32.mxu0 0.0
    %1640 = vmatmul.mubr.f32.gmra.mxu0 %v1567
    %v1641 = vpop.f32.mrf.mxu0
    %v1642 = vadd.f32 0.0, %v1641
    %v1643 = vpop.f32.mrf.mxu0
    %v1644 = vadd.f32 0.0, %v1643
    %1645 = vdwg.mxu0
    %1646 = vmatprep.subr.mxu0 0.0
    %1647 = vmatpush1.msra.mxu0 0.0
    %1648 = vmatprep.subr.mxu0 0.0
    %1649 = vmatpush1.msra.mxu0 0.0
    %1650 = vmatprep.subr.mxu0 0.0
    %1651 = vmatpush1.msra.mxu0 0.0
    %1652 = vmatprep.subr.mxu0 0.0
    %1653 = vmatpush1.msra.mxu0 0.0
    %1654 = vmatprep.subr.mxu0 0.0
    %1655 = vmatpush1.msra.mxu0 0.0
    %1656 = vmatprep.subr.mxu0 0.0
    %1657 = vmatpush1.msra.mxu0 0.0
    %1658 = vmatprep.subr.mxu0 0.0
    %1659 = vmatpush1.msra.mxu0 0.0
    %1660 = vmatprep.subr.mxu0 0.0
    %1661 = vmatpush1.msra.mxu0 0.0
    %1662 = vmatprep.subr.mxu0 0.0
    %1663 = vmatpush1.msra.mxu0 0.0
    %1664 = vmatprep.subr.mxu0 0.0
    %1665 = vmatpush1.msra.mxu0 0.0
    %1666 = vmatprep.subr.mxu0 0.0
    %1667 = vmatpush1.msra.mxu0 0.0
    %1668 = vmatprep.subr.mxu0 0.0
    %1669 = vmatpush1.msra.mxu0 0.0
    %1670 = vmatprep.subr.mxu0 0.0
    %1671 = vmatpush1.msra.mxu0 %v1562
    %1672 = vmatprep.subr.mxu0 0.0
    %1673 = vmatpush1.msra.mxu0 %v1559
    %1674 = vmatprep.subr.mxu0 0.0
    %1675 = vmatpush1.msra.mxu0 %v1556
    %1676 = vmatprep.subr.mxu0 0.0
    %1677 = vmatpush1.msra.mxu0 %v1553
    %1678 = vmatprep.subr.mxu0 0.0
    %1679 = vmatpush2.msra.mxu0 0.0
    %1680 = vmatprep.subr.mxu0 0.0
    %1681 = vmatpush2.msra.mxu0 0.0
    %1682 = vmatprep.subr.mxu0 0.0
    %1683 = vmatpush2.msra.mxu0 0.0
    %1684 = vmatprep.subr.mxu0 0.0
    %1685 = vmatpush2.msra.mxu0 0.0
    %1686 = vmatprep.subr.mxu0 0.0
    %1687 = vmatpush2.msra.mxu0 0.0
    %1688 = vmatprep.subr.mxu0 0.0
    %1689 = vmatpush2.msra.mxu0 0.0
    %1690 = vmatprep.subr.mxu0 0.0
    %1691 = vmatpush2.msra.mxu0 0.0
    %1692 = vmatprep.subr.mxu0 0.0
    %1693 = vmatpush2.msra.mxu0 0.0
    %1694 = vmatprep.subr.mxu0 0.0
    %1695 = vmatpush2.msra.mxu0 0.0
    %1696 = vmatprep.subr.mxu0 0.0
    %1697 = vmatpush2.msra.mxu0 0.0
    %1698 = vmatprep.subr.mxu0 0.0
    %1699 = vmatpush2.msra.mxu0 0.0
    %1700 = vmatprep.subr.mxu0 0.0
    %1701 = vmatpush2.msra.mxu0 0.0
    %1702 = vmatprep.subr.mxu0 0.0
    %1703 = vmatpush2.msra.mxu0 0.0
    %1704 = vmatprep.subr.mxu0 0.0
    %1705 = vmatpush2.msra.mxu0 0.0
    %1706 = vmatprep.subr.mxu0 0.0
    %1707 = vmatpush2.msra.mxu0 0.0
    %1708 = vmatprep.subr.mxu0 0.0
    %1709 = vmatpush2.msra.mxu0 0.0
    %1710 = vmatprep.mubr.f32.mxu0 0.0
    %1711 = vmatmul.mubr.f32.gmra.mxu0 %v1564
    %v1712 = vpop.f32.mrf.mxu0
    %v1713 = vadd.f32 0.0, %v1712
    %v1714 = vpop.f32.mrf.mxu0
    %1715 = vmatprep.mubr.f32.mxu0 0.0
    %1716 = vmatmul.mubr.f32.gmra.mxu0 %v1567
    %v1717 = vpop.f32.mrf.mxu0
    %v1718 = vadd.f32 0.0, %v1717
    %v1719 = vpop.f32.mrf.mxu0
    %1720 = vdwg.mxu0
    %v1721 = vlaneseq
    %v1722 = vshrl.u32 %v1721, 7
    %v1723 = vsub.s32 0, %v1722
    %v1724 = vrot.slane %v1548, %v1723
    %v1725 = vadd.f32 %v1636, %v1724
    %v1726 = vadd.f32 %v1642, %v1724
    %v1727 = vlaneseq
    %v1728 = vshrl.u32 %v1727, 7
    %v1729 = vsub.s32 1, %v1728
    %v1730 = vrot.slane %v1548, %v1729
    %v1731 = vadd.f32 %v1638, %v1730
    %v1732 = vadd.f32 %v1644, %v1730
    %v1733 = vlaneseq
    %v1734 = vshrl.u32 %v1733, 7
    %v1735 = vsub.s32 2, %v1734
    %v1736 = vrot.slane %v1548, %v1735
    %v1737 = vadd.f32 %v1713, %v1736
    %v1738 = vadd.f32 %v1718, %v1736
    %1741 = vrot.lane.b32.xlu0 %v1725, 120
    %v1742 = vpop.permute.xlu0 %1741
    %1743 = vrot.lane.b32.xlu0 %v1726, 120
    %v1744 = vpop.permute.xlu0 %1743
    %1745 = vrot.lane.b32.xlu0 %v1725, 112
    %v1746 = vpop.permute.xlu0 %1745
    %1747 = vrot.lane.b32.xlu0 %v1726, 112
    %v1748 = vpop.permute.xlu0 %1747
    %1749 = vrot.lane.b32.xlu0 %v1725, 104
    %v1750 = vpop.permute.xlu0 %1749
    %1751 = vrot.lane.b32.xlu0 %v1726, 104
    %v1752 = vpop.permute.xlu0 %1751
    %1755 = vrot.lane.b32.xlu0 %v1731, 120
    %v1756 = vpop.permute.xlu0 %1755
    %1757 = vrot.lane.b32.xlu0 %v1732, 120
    %v1758 = vpop.permute.xlu0 %1757
    %1759 = vrot.lane.b32.xlu0 %v1731, 112
    %v1760 = vpop.permute.xlu0 %1759
    %1761 = vrot.lane.b32.xlu0 %v1732, 112
    %v1762 = vpop.permute.xlu0 %1761
    %1763 = vrot.lane.b32.xlu0 %v1731, 104
    %v1764 = vpop.permute.xlu0 %1763
    %1765 = vrot.lane.b32.xlu0 %v1732, 104
    %v1766 = vpop.permute.xlu0 %1765
    %1769 = vrot.lane.b32.xlu0 %v1737, 120
    %v1770 = vpop.permute.xlu0 %1769
    %1771 = vrot.lane.b32.xlu0 %v1738, 120
    %v1772 = vpop.permute.xlu0 %1771
    %1775 = vrot.lane.b32.xlu0 %v1737, 112
    %v1776 = vpop.permute.xlu0 %1775
    %1777 = vrot.lane.b32.xlu0 %v1738, 112
    %v1778 = vpop.permute.xlu0 %1777
    %1781 = vrot.lane.b32.xlu0 %v1737, 104
    %v1782 = vpop.permute.xlu0 %1781
    %1783 = vrot.lane.b32.xlu0 %v1738, 104
    %v1784 = vpop.permute.xlu0 %1783
    %v1787 = vsel %vm394, %v1725, 0
    %v1789 = vsel %vm394, %v1726, 0
    %v1791 = vsel %vm394, %v1731, 0
    %v1793 = vsel %vm394, %v1732, 0
    %1795 = vmatprep.subr.mxu0 0.0
    %1796 = vmatpush1.xpose.msra.mxu0 0.0
    %1797 = vmatprep.subr.mxu0 0.0
    %1798 = vmatpush1.xpose.msra.mxu0 0.0
    %1799 = vmatprep.subr.mxu0 0.0
    %1800 = vmatpush1.xpose.msra.mxu0 0.0
    %1801 = vmatprep.subr.mxu0 0.0
    %1802 = vmatpush1.xpose.msra.mxu0 0.0
    %1803 = vmatprep.subr.mxu0 0.0
    %1804 = vmatpush1.xpose.msra.mxu0 0.0
    %1805 = vmatprep.subr.mxu0 0.0
    %1806 = vmatpush1.xpose.msra.mxu0 0.0
    %1807 = vmatprep.subr.mxu0 0.0
    %1808 = vmatpush1.xpose.msra.mxu0 0.0
    %1809 = vmatprep.subr.mxu0 0.0
    %1810 = vmatpush1.xpose.msra.mxu0 0.0
    %1811 = vmatprep.subr.mxu0 0.0
    %1812 = vmatpush1.xpose.msra.mxu0 0.0
    %1813 = vmatprep.subr.mxu0 0.0
    %1814 = vmatpush1.xpose.msra.mxu0 0.0
    %1815 = vmatprep.subr.mxu0 0.0
    %1816 = vmatpush1.xpose.msra.mxu0 0.0
    %1817 = vmatprep.subr.mxu0 0.0
    %1818 = vmatpush1.xpose.msra.mxu0 0.0
    %1819 = vmatprep.subr.mxu0 0.0
    %1820 = vmatpush1.xpose.msra.mxu0 0.0
    %1821 = vmatprep.subr.mxu0 0.0
    %1822 = vmatpush1.xpose.msra.mxu0 0.0
    %1823 = vmatprep.subr.mxu0 0.0
    %1824 = vmatpush1.xpose.msra.mxu0 %v1793
    %1825 = vmatprep.subr.mxu0 0.0
    %1826 = vmatpush1.xpose.msra.mxu0 %v1791
    %1827 = vmatprep.subr.mxu0 0.0
    %1828 = vmatpush2.xpose.msra.mxu0 0.0
    %1829 = vmatprep.subr.mxu0 0.0
    %1830 = vmatpush2.xpose.msra.mxu0 0.0
    %1831 = vmatprep.subr.mxu0 0.0
    %1832 = vmatpush2.xpose.msra.mxu0 0.0
    %1833 = vmatprep.subr.mxu0 0.0
    %1834 = vmatpush2.xpose.msra.mxu0 0.0
    %1835 = vmatprep.subr.mxu0 0.0
    %1836 = vmatpush2.xpose.msra.mxu0 0.0
    %1837 = vmatprep.subr.mxu0 0.0
    %1838 = vmatpush2.xpose.msra.mxu0 0.0
    %1839 = vmatprep.subr.mxu0 0.0
    %1840 = vmatpush2.xpose.msra.mxu0 0.0
    %1841 = vmatprep.subr.mxu0 0.0
    %1842 = vmatpush2.xpose.msra.mxu0 0.0
    %1843 = vmatprep.subr.mxu0 0.0
    %1844 = vmatpush2.xpose.msra.mxu0 0.0
    %1845 = vmatprep.subr.mxu0 0.0
    %1846 = vmatpush2.xpose.msra.mxu0 0.0
    %1847 = vmatprep.subr.mxu0 0.0
    %1848 = vmatpush2.xpose.msra.mxu0 0.0
    %1849 = vmatprep.subr.mxu0 0.0
    %1850 = vmatpush2.xpose.msra.mxu0 0.0
    %1851 = vmatprep.subr.mxu0 0.0
    %1852 = vmatpush2.xpose.msra.mxu0 0.0
    %1853 = vmatprep.subr.mxu0 0.0
    %1854 = vmatpush2.xpose.msra.mxu0 0.0
    %1855 = vmatprep.subr.mxu0 0.0
    %1856 = vmatpush2.xpose.msra.mxu0 0.0
    %1857 = vmatprep.subr.mxu0 0.0
    %1858 = vmatpush2.xpose.msra.mxu0 0.0
    %1859 = vmatprep.mubr.f32.mxu0 0.0
    %1860 = vmatmul.mubr.f32.gmra.mxu0 %v1787
    %v1861 = vpop.f32.mrf.mxu0
    %v1862 = vadd.f32 0.0, %v1861
    %v1863 = vpop.f32.mrf.mxu0
    %1864 = vmatprep.mubr.f32.mxu0 0.0
    %1865 = vmatmul.mubr.f32.gmra.mxu0 %v1789
    %v1866 = vpop.f32.mrf.mxu0
    %v1867 = vadd.f32 0.0, %v1866
    %v1868 = vpop.f32.mrf.mxu0
    %1869 = vdwg.mxu0
    %v1870 = vsel %vm394, %v1742, 0
    %v1872 = vsel %vm394, %v1744, 0
    %v1874 = vsel %vm394, %v1756, 0
    %v1876 = vsel %vm394, %v1758, 0
    %1878 = vmatprep.subr.mxu0 0.0
    %1879 = vmatpush1.xpose.msra.mxu0 0.0
    %1880 = vmatprep.subr.mxu0 0.0
    %1881 = vmatpush1.xpose.msra.mxu0 0.0
    %1882 = vmatprep.subr.mxu0 0.0
    %1883 = vmatpush1.xpose.msra.mxu0 0.0
    %1884 = vmatprep.subr.mxu0 0.0
    %1885 = vmatpush1.xpose.msra.mxu0 0.0
    %1886 = vmatprep.subr.mxu0 0.0
    %1887 = vmatpush1.xpose.msra.mxu0 0.0
    %1888 = vmatprep.subr.mxu0 0.0
    %1889 = vmatpush1.xpose.msra.mxu0 0.0
    %1890 = vmatprep.subr.mxu0 0.0
    %1891 = vmatpush1.xpose.msra.mxu0 0.0
    %1892 = vmatprep.subr.mxu0 0.0
    %1893 = vmatpush1.xpose.msra.mxu0 0.0
    %1894 = vmatprep.subr.mxu0 0.0
    %1895 = vmatpush1.xpose.msra.mxu0 0.0
    %1896 = vmatprep.subr.mxu0 0.0
    %1897 = vmatpush1.xpose.msra.mxu0 0.0
    %1898 = vmatprep.subr.mxu0 0.0
    %1899 = vmatpush1.xpose.msra.mxu0 0.0
    %1900 = vmatprep.subr.mxu0 0.0
    %1901 = vmatpush1.xpose.msra.mxu0 0.0
    %1902 = vmatprep.subr.mxu0 0.0
    %1903 = vmatpush1.xpose.msra.mxu0 0.0
    %1904 = vmatprep.subr.mxu0 0.0
    %1905 = vmatpush1.xpose.msra.mxu0 0.0
    %1906 = vmatprep.subr.mxu0 0.0
    %1907 = vmatpush1.xpose.msra.mxu0 %v1876
    %1908 = vmatprep.subr.mxu0 0.0
    %1909 = vmatpush1.xpose.msra.mxu0 %v1874
    %1910 = vmatprep.subr.mxu0 0.0
    %1911 = vmatpush2.xpose.msra.mxu0 0.0
    %1912 = vmatprep.subr.mxu0 0.0
    %1913 = vmatpush2.xpose.msra.mxu0 0.0
    %1914 = vmatprep.subr.mxu0 0.0
    %1915 = vmatpush2.xpose.msra.mxu0 0.0
    %1916 = vmatprep.subr.mxu0 0.0
    %1917 = vmatpush2.xpose.msra.mxu0 0.0
    %1918 = vmatprep.subr.mxu0 0.0
    %1919 = vmatpush2.xpose.msra.mxu0 0.0
    %1920 = vmatprep.subr.mxu0 0.0
    %1921 = vmatpush2.xpose.msra.mxu0 0.0
    %1922 = vmatprep.subr.mxu0 0.0
    %1923 = vmatpush2.xpose.msra.mxu0 0.0
    %1924 = vmatprep.subr.mxu0 0.0
    %1925 = vmatpush2.xpose.msra.mxu0 0.0
    %1926 = vmatprep.subr.mxu0 0.0
    %1927 = vmatpush2.xpose.msra.mxu0 0.0
    %1928 = vmatprep.subr.mxu0 0.0
    %1929 = vmatpush2.xpose.msra.mxu0 0.0
    %1930 = vmatprep.subr.mxu0 0.0
    %1931 = vmatpush2.xpose.msra.mxu0 0.0
    %1932 = vmatprep.subr.mxu0 0.0
    %1933 = vmatpush2.xpose.msra.mxu0 0.0
    %1934 = vmatprep.subr.mxu0 0.0
    %1935 = vmatpush2.xpose.msra.mxu0 0.0
    %1936 = vmatprep.subr.mxu0 0.0
    %1937 = vmatpush2.xpose.msra.mxu0 0.0
    %1938 = vmatprep.subr.mxu0 0.0
    %1939 = vmatpush2.xpose.msra.mxu0 0.0
    %1940 = vmatprep.subr.mxu0 0.0
    %1941 = vmatpush2.xpose.msra.mxu0 0.0
    %1942 = vmatprep.mubr.f32.mxu0 0.0
    %1943 = vmatmul.mubr.f32.gmra.mxu0 %v1870
    %v1944 = vpop.f32.mrf.mxu0
    %v1945 = vadd.f32 0.0, %v1944
    %v1946 = vpop.f32.mrf.mxu0
    %1947 = vmatprep.mubr.f32.mxu0 0.0
    %1948 = vmatmul.mubr.f32.gmra.mxu0 %v1872
    %v1949 = vpop.f32.mrf.mxu0
    %v1950 = vadd.f32 0.0, %v1949
    %v1951 = vpop.f32.mrf.mxu0
    %1952 = vdwg.mxu0
    %v1953 = vsel %vm394, %v1746, 0
    %v1955 = vsel %vm394, %v1748, 0
    %v1957 = vsel %vm394, %v1760, 0
    %v1959 = vsel %vm394, %v1762, 0
    %1961 = vmatprep.subr.mxu0 0.0
    %1962 = vmatpush1.xpose.msra.mxu0 0.0
    %1963 = vmatprep.subr.mxu0 0.0
    %1964 = vmatpush1.xpose.msra.mxu0 0.0
    %1965 = vmatprep.subr.mxu0 0.0
    %1966 = vmatpush1.xpose.msra.mxu0 0.0
    %1967 = vmatprep.subr.mxu0 0.0
    %1968 = vmatpush1.xpose.msra.mxu0 0.0
    %1969 = vmatprep.subr.mxu0 0.0
    %1970 = vmatpush1.xpose.msra.mxu0 0.0
    %1971 = vmatprep.subr.mxu0 0.0
    %1972 = vmatpush1.xpose.msra.mxu0 0.0
    %1973 = vmatprep.subr.mxu0 0.0
    %1974 = vmatpush1.xpose.msra.mxu0 0.0
    %1975 = vmatprep.subr.mxu0 0.0
    %1976 = vmatpush1.xpose.msra.mxu0 0.0
    %1977 = vmatprep.subr.mxu0 0.0
    %1978 = vmatpush1.xpose.msra.mxu0 0.0
    %1979 = vmatprep.subr.mxu0 0.0
    %1980 = vmatpush1.xpose.msra.mxu0 0.0
    %1981 = vmatprep.subr.mxu0 0.0
    %1982 = vmatpush1.xpose.msra.mxu0 0.0
    %1983 = vmatprep.subr.mxu0 0.0
    %1984 = vmatpush1.xpose.msra.mxu0 0.0
    %1985 = vmatprep.subr.mxu0 0.0
    %1986 = vmatpush1.xpose.msra.mxu0 0.0
    %1987 = vmatprep.subr.mxu0 0.0
    %1988 = vmatpush1.xpose.msra.mxu0 0.0
    %1989 = vmatprep.subr.mxu0 0.0
    %1990 = vmatpush1.xpose.msra.mxu0 %v1959
    %1991 = vmatprep.subr.mxu0 0.0
    %1992 = vmatpush1.xpose.msra.mxu0 %v1957
    %1993 = vmatprep.subr.mxu0 0.0
    %1994 = vmatpush2.xpose.msra.mxu0 0.0
    %1995 = vmatprep.subr.mxu0 0.0
    %1996 = vmatpush2.xpose.msra.mxu0 0.0
    %1997 = vmatprep.subr.mxu0 0.0
    %1998 = vmatpush2.xpose.msra.mxu0 0.0
    %1999 = vmatprep.subr.mxu0 0.0
    %2000 = vmatpush2.xpose.msra.mxu0 0.0
    %2001 = vmatprep.subr.mxu0 0.0
    %2002 = vmatpush2.xpose.msra.mxu0 0.0
    %2003 = vmatprep.subr.mxu0 0.0
    %2004 = vmatpush2.xpose.msra.mxu0 0.0
    %2005 = vmatprep.subr.mxu0 0.0
    %2006 = vmatpush2.xpose.msra.mxu0 0.0
    %2007 = vmatprep.subr.mxu0 0.0
    %2008 = vmatpush2.xpose.msra.mxu0 0.0
    %2009 = vmatprep.subr.mxu0 0.0
    %2010 = vmatpush2.xpose.msra.mxu0 0.0
    %2011 = vmatprep.subr.mxu0 0.0
    %2012 = vmatpush2.xpose.msra.mxu0 0.0
    %2013 = vmatprep.subr.mxu0 0.0
    %2014 = vmatpush2.xpose.msra.mxu0 0.0
    %2015 = vmatprep.subr.mxu0 0.0
    %2016 = vmatpush2.xpose.msra.mxu0 0.0
    %2017 = vmatprep.subr.mxu0 0.0
    %2018 = vmatpush2.xpose.msra.mxu0 0.0
    %2019 = vmatprep.subr.mxu0 0.0
    %2020 = vmatpush2.xpose.msra.mxu0 0.0
    %2021 = vmatprep.subr.mxu0 0.0
    %2022 = vmatpush2.xpose.msra.mxu0 0.0
    %2023 = vmatprep.subr.mxu0 0.0
    %2024 = vmatpush2.xpose.msra.mxu0 0.0
    %2025 = vmatprep.mubr.f32.mxu0 0.0
    %2026 = vmatmul.mubr.f32.gmra.mxu0 %v1953
    %v2027 = vpop.f32.mrf.mxu0
    %v2028 = vadd.f32 0.0, %v2027
    %v2029 = vpop.f32.mrf.mxu0
    %2030 = vmatprep.mubr.f32.mxu0 0.0
    %2031 = vmatmul.mubr.f32.gmra.mxu0 %v1955
    %v2032 = vpop.f32.mrf.mxu0
    %v2033 = vadd.f32 0.0, %v2032
    %v2034 = vpop.f32.mrf.mxu0
    %2035 = vdwg.mxu0
    %v2036 = vsel %vm394, %v1750, 0
    %v2038 = vsel %vm394, %v1752, 0
    %v2040 = vsel %vm394, %v1764, 0
    %v2042 = vsel %vm394, %v1766, 0
    %2044 = vmatprep.subr.mxu0 0.0
    %2045 = vmatpush1.xpose.msra.mxu0 0.0
    %2046 = vmatprep.subr.mxu0 0.0
    %2047 = vmatpush1.xpose.msra.mxu0 0.0
    %2048 = vmatprep.subr.mxu0 0.0
    %2049 = vmatpush1.xpose.msra.mxu0 0.0
    %2050 = vmatprep.subr.mxu0 0.0
    %2051 = vmatpush1.xpose.msra.mxu0 0.0
    %2052 = vmatprep.subr.mxu0 0.0
    %2053 = vmatpush1.xpose.msra.mxu0 0.0
    %2054 = vmatprep.subr.mxu0 0.0
    %2055 = vmatpush1.xpose.msra.mxu0 0.0
    %2056 = vmatprep.subr.mxu0 0.0
    %2057 = vmatpush1.xpose.msra.mxu0 0.0
    %2058 = vmatprep.subr.mxu0 0.0
    %2059 = vmatpush1.xpose.msra.mxu0 0.0
    %2060 = vmatprep.subr.mxu0 0.0
    %2061 = vmatpush1.xpose.msra.mxu0 0.0
    %2062 = vmatprep.subr.mxu0 0.0
    %2063 = vmatpush1.xpose.msra.mxu0 0.0
    %2064 = vmatprep.subr.mxu0 0.0
    %2065 = vmatpush1.xpose.msra.mxu0 0.0
    %2066 = vmatprep.subr.mxu0 0.0
    %2067 = vmatpush1.xpose.msra.mxu0 0.0
    %2068 = vmatprep.subr.mxu0 0.0
    %2069 = vmatpush1.xpose.msra.mxu0 0.0
    %2070 = vmatprep.subr.mxu0 0.0
    %2071 = vmatpush1.xpose.msra.mxu0 0.0
    %2072 = vmatprep.subr.mxu0 0.0
    %2073 = vmatpush1.xpose.msra.mxu0 %v2042
    %2074 = vmatprep.subr.mxu0 0.0
    %2075 = vmatpush1.xpose.msra.mxu0 %v2040
    %2076 = vmatprep.subr.mxu0 0.0
    %2077 = vmatpush2.xpose.msra.mxu0 0.0
    %2078 = vmatprep.subr.mxu0 0.0
    %2079 = vmatpush2.xpose.msra.mxu0 0.0
    %2080 = vmatprep.subr.mxu0 0.0
    %2081 = vmatpush2.xpose.msra.mxu0 0.0
    %2082 = vmatprep.subr.mxu0 0.0
    %2083 = vmatpush2.xpose.msra.mxu0 0.0
    %2084 = vmatprep.subr.mxu0 0.0
    %2085 = vmatpush2.xpose.msra.mxu0 0.0
    %2086 = vmatprep.subr.mxu0 0.0
    %2087 = vmatpush2.xpose.msra.mxu0 0.0
    %2088 = vmatprep.subr.mxu0 0.0
    %2089 = vmatpush2.xpose.msra.mxu0 0.0
    %2090 = vmatprep.subr.mxu0 0.0
    %2091 = vmatpush2.xpose.msra.mxu0 0.0
    %2092 = vmatprep.subr.mxu0 0.0
    %2093 = vmatpush2.xpose.msra.mxu0 0.0
    %2094 = vmatprep.subr.mxu0 0.0
    %2095 = vmatpush2.xpose.msra.mxu0 0.0
    %2096 = vmatprep.subr.mxu0 0.0
    %2097 = vmatpush2.xpose.msra.mxu0 0.0
    %2098 = vmatprep.subr.mxu0 0.0
    %2099 = vmatpush2.xpose.msra.mxu0 0.0
    %2100 = vmatprep.subr.mxu0 0.0
    %2101 = vmatpush2.xpose.msra.mxu0 0.0
    %2102 = vmatprep.subr.mxu0 0.0
    %2103 = vmatpush2.xpose.msra.mxu0 0.0
    %2104 = vmatprep.subr.mxu0 0.0
    %2105 = vmatpush2.xpose.msra.mxu0 0.0
    %2106 = vmatprep.subr.mxu0 0.0
    %2107 = vmatpush2.xpose.msra.mxu0 0.0
    %2108 = vmatprep.mubr.f32.mxu0 0.0
    %2109 = vmatmul.mubr.f32.gmra.mxu0 %v2036
    %v2110 = vpop.f32.mrf.mxu0
    %v2111 = vadd.f32 0.0, %v2110
    %v2112 = vpop.f32.mrf.mxu0
    %2113 = vmatprep.mubr.f32.mxu0 0.0
    %2114 = vmatmul.mubr.f32.gmra.mxu0 %v2038
    %v2115 = vpop.f32.mrf.mxu0
    %v2116 = vadd.f32 0.0, %v2115
    %v2117 = vpop.f32.mrf.mxu0
    %2118 = vdwg.mxu0
    %v2119 = vmul.f32 %v1862, 0.35355338
    %v2120 = vmul.f32 %v1867, 0.35355338
    %v2121 = vmul.f32 %v1945, 0.35355338
    %v2122 = vmul.f32 %v1950, 0.35355338
    %v2123 = vmul.f32 %v2028, 0.35355338
    %v2124 = vmul.f32 %v2033, 0.35355338
    %v2125 = vmul.f32 %v2111, 0.35355338
    %v2126 = vmul.f32 %v2116, 0.35355338
    %v2127 = vsel %vm737, %v2119, -1e+30
    %v2128 = vsel %vm738, %v2120, -1e+30
    %v2129 = vsel %vm737, %v2121, -1e+30
    %v2130 = vsel %vm738, %v2122, -1e+30
    %v2131 = vsel %vm737, %v2123, -1e+30
    %v2132 = vsel %vm738, %v2124, -1e+30
    %v2133 = vsel %vm737, %v2125, -1e+30
    %v2134 = vsel %vm738, %v2126, -1e+30
    %v2135 = vsel %vm747, %v2127, -inf
    %2136 = vmax.xlane.f32.xlu0 %v2135
    %v2137 = vpop.xlane.xlu0 %2136
    %v2138 = vsel %vm747, %v2128, -inf
    %2139 = vmax.xlane.f32.xlu0 %v2138
    %v2140 = vpop.xlane.xlu0 %2139
    %v2141 = vsel %vm747, %v2129, -inf
    %2142 = vmax.xlane.f32.xlu0 %v2141
    %v2143 = vpop.xlane.xlu0 %2142
    %v2144 = vsel %vm747, %v2130, -inf
    %2145 = vmax.xlane.f32.xlu0 %v2144
    %v2146 = vpop.xlane.xlu0 %2145
    %v2147 = vsel %vm747, %v2131, -inf
    %2148 = vmax.xlane.f32.xlu0 %v2147
    %v2149 = vpop.xlane.xlu0 %2148
    %v2150 = vsel %vm747, %v2132, -inf
    %2151 = vmax.xlane.f32.xlu0 %v2150
    %v2152 = vpop.xlane.xlu0 %2151
    %v2153 = vsel %vm747, %v2133, -inf
    %2154 = vmax.xlane.f32.xlu0 %v2153
    %v2155 = vpop.xlane.xlu0 %2154
    %v2156 = vsel %vm747, %v2134, -inf
    %2157 = vmax.xlane.f32.xlu0 %v2156
    %v2158 = vpop.xlane.xlu0 %2157
    %v2159 = vsub.f32 %v2127, %v2137
    %v2160 = vsub.f32 %v2128, %v2140
    %v2161 = vsub.f32 %v2129, %v2143
    %v2162 = vsub.f32 %v2130, %v2146
    %v2163 = vsub.f32 %v2131, %v2149
    %v2164 = vsub.f32 %v2132, %v2152
    %v2165 = vsub.f32 %v2133, %v2155
    %v2166 = vsub.f32 %v2134, %v2158
    %v2167 = vmul.f32 %v2159, 1.442695
    %v2168 = vpow.pop %v2167
    %v2169 = vmul.f32 %v2160, 1.442695
    %v2170 = vpow.pop %v2169
    %v2171 = vmul.f32 %v2161, 1.442695
    %v2172 = vpow.pop %v2171
    %v2173 = vmul.f32 %v2162, 1.442695
    %v2174 = vpow.pop %v2173
    %v2175 = vmul.f32 %v2163, 1.442695
    %v2176 = vpow.pop %v2175
    %v2177 = vmul.f32 %v2164, 1.442695
    %v2178 = vpow.pop %v2177
    %v2179 = vmul.f32 %v2165, 1.442695
    %v2180 = vpow.pop %v2179
    %v2181 = vmul.f32 %v2166, 1.442695
    %v2182 = vpow.pop %v2181
    %v2183 = vsel %vm747, %v2168, 0.0
    %2184 = vadd.xlane.f32.xlu0 %v2183
    %v2185 = vpop.xlane.xlu0 %2184
    %v2186 = vsel %vm747, %v2170, 0.0
    %2187 = vadd.xlane.f32.xlu0 %v2186
    %v2188 = vpop.xlane.xlu0 %2187
    %v2189 = vsel %vm747, %v2172, 0.0
    %2190 = vadd.xlane.f32.xlu0 %v2189
    %v2191 = vpop.xlane.xlu0 %2190
    %v2192 = vsel %vm747, %v2174, 0.0
    %2193 = vadd.xlane.f32.xlu0 %v2192
    %v2194 = vpop.xlane.xlu0 %2193
    %v2195 = vsel %vm747, %v2176, 0.0
    %2196 = vadd.xlane.f32.xlu0 %v2195
    %v2197 = vpop.xlane.xlu0 %2196
    %v2198 = vsel %vm747, %v2178, 0.0
    %2199 = vadd.xlane.f32.xlu0 %v2198
    %v2200 = vpop.xlane.xlu0 %2199
    %v2201 = vsel %vm747, %v2180, 0.0
    %2202 = vadd.xlane.f32.xlu0 %v2201
    %v2203 = vpop.xlane.xlu0 %2202
    %v2204 = vsel %vm747, %v2182, 0.0
    %2205 = vadd.xlane.f32.xlu0 %v2204
    %v2206 = vpop.xlane.xlu0 %2205
    %v2207 = vrcp.pop %v2185
    %v2208 = vmul.f32 %v2168, %v2207
    %v2209 = vrcp.pop %v2188
    %v2210 = vmul.f32 %v2170, %v2209
    %v2211 = vrcp.pop %v2191
    %v2212 = vmul.f32 %v2172, %v2211
    %v2213 = vrcp.pop %v2194
    %v2214 = vmul.f32 %v2174, %v2213
    %v2215 = vrcp.pop %v2197
    %v2216 = vmul.f32 %v2176, %v2215
    %v2217 = vrcp.pop %v2200
    %v2218 = vmul.f32 %v2178, %v2217
    %v2219 = vrcp.pop %v2203
    %v2220 = vmul.f32 %v2180, %v2219
    %v2221 = vrcp.pop %v2206
    %v2222 = vmul.f32 %v2182, %v2221
    %v2224 = vsel %vm747, %v2208, 0
    %v2227 = vsel %vm747, %v2210, 0
    %2229 = vmatprep.subr.mxu0 0.0
    %2230 = vmatpush1.msra.mxu0 0.0
    %2231 = vmatprep.subr.mxu0 0.0
    %2232 = vmatpush1.msra.mxu0 0.0
    %2233 = vmatprep.subr.mxu0 0.0
    %2234 = vmatpush1.msra.mxu0 0.0
    %2235 = vmatprep.subr.mxu0 0.0
    %2236 = vmatpush1.msra.mxu0 0.0
    %2237 = vmatprep.subr.mxu0 0.0
    %2238 = vmatpush1.msra.mxu0 0.0
    %2239 = vmatprep.subr.mxu0 0.0
    %2240 = vmatpush1.msra.mxu0 0.0
    %2241 = vmatprep.subr.mxu0 0.0
    %2242 = vmatpush1.msra.mxu0 0.0
    %2243 = vmatprep.subr.mxu0 0.0
    %2244 = vmatpush1.msra.mxu0 0.0
    %2245 = vmatprep.subr.mxu0 0.0
    %2246 = vmatpush1.msra.mxu0 0.0
    %2247 = vmatprep.subr.mxu0 0.0
    %2248 = vmatpush1.msra.mxu0 0.0
    %2249 = vmatprep.subr.mxu0 0.0
    %2250 = vmatpush1.msra.mxu0 0.0
    %2251 = vmatprep.subr.mxu0 0.0
    %2252 = vmatpush1.msra.mxu0 0.0
    %2253 = vmatprep.subr.mxu0 0.0
    %2254 = vmatpush1.msra.mxu0 0.0
    %2255 = vmatprep.subr.mxu0 0.0
    %2256 = vmatpush1.msra.mxu0 0.0
    %2257 = vmatprep.subr.mxu0 0.0
    %2258 = vmatpush1.msra.mxu0 %v1738
    %2259 = vmatprep.subr.mxu0 0.0
    %2260 = vmatpush1.msra.mxu0 %v1737
    %2261 = vmatprep.subr.mxu0 0.0
    %2262 = vmatpush2.msra.mxu0 0.0
    %2263 = vmatprep.subr.mxu0 0.0
    %2264 = vmatpush2.msra.mxu0 0.0
    %2265 = vmatprep.subr.mxu0 0.0
    %2266 = vmatpush2.msra.mxu0 0.0
    %2267 = vmatprep.subr.mxu0 0.0
    %2268 = vmatpush2.msra.mxu0 0.0
    %2269 = vmatprep.subr.mxu0 0.0
    %2270 = vmatpush2.msra.mxu0 0.0
    %2271 = vmatprep.subr.mxu0 0.0
    %2272 = vmatpush2.msra.mxu0 0.0
    %2273 = vmatprep.subr.mxu0 0.0
    %2274 = vmatpush2.msra.mxu0 0.0
    %2275 = vmatprep.subr.mxu0 0.0
    %2276 = vmatpush2.msra.mxu0 0.0
    %2277 = vmatprep.subr.mxu0 0.0
    %2278 = vmatpush2.msra.mxu0 0.0
    %2279 = vmatprep.subr.mxu0 0.0
    %2280 = vmatpush2.msra.mxu0 0.0
    %2281 = vmatprep.subr.mxu0 0.0
    %2282 = vmatpush2.msra.mxu0 0.0
    %2283 = vmatprep.subr.mxu0 0.0
    %2284 = vmatpush2.msra.mxu0 0.0
    %2285 = vmatprep.subr.mxu0 0.0
    %2286 = vmatpush2.msra.mxu0 0.0
    %2287 = vmatprep.subr.mxu0 0.0
    %2288 = vmatpush2.msra.mxu0 0.0
    %2289 = vmatprep.subr.mxu0 0.0
    %2290 = vmatpush2.msra.mxu0 0.0
    %2291 = vmatprep.subr.mxu0 0.0
    %2292 = vmatpush2.msra.mxu0 0.0
    %2293 = vmatprep.mubr.f32.mxu0 0.0
    %2294 = vmatmul.mubr.f32.gmra.mxu0 %v2224
    %v2295 = vpop.f32.mrf.mxu0
    %v2296 = vadd.f32 0.0, %v2295
    %v2297 = vpop.f32.mrf.mxu0
    %2298 = vmatprep.mubr.f32.mxu0 0.0
    %2299 = vmatmul.mubr.f32.gmra.mxu0 %v2227
    %v2300 = vpop.f32.mrf.mxu0
    %v2301 = vadd.f32 0.0, %v2300
    %v2302 = vpop.f32.mrf.mxu0
    %2303 = vdwg.mxu0
    %v2305 = vsel %vm747, %v2212, 0
    %v2308 = vsel %vm747, %v2214, 0
    %2310 = vmatprep.subr.mxu0 0.0
    %2311 = vmatpush1.msra.mxu0 0.0
    %2312 = vmatprep.subr.mxu0 0.0
    %2313 = vmatpush1.msra.mxu0 0.0
    %2314 = vmatprep.subr.mxu0 0.0
    %2315 = vmatpush1.msra.mxu0 0.0
    %2316 = vmatprep.subr.mxu0 0.0
    %2317 = vmatpush1.msra.mxu0 0.0
    %2318 = vmatprep.subr.mxu0 0.0
    %2319 = vmatpush1.msra.mxu0 0.0
    %2320 = vmatprep.subr.mxu0 0.0
    %2321 = vmatpush1.msra.mxu0 0.0
    %2322 = vmatprep.subr.mxu0 0.0
    %2323 = vmatpush1.msra.mxu0 0.0
    %2324 = vmatprep.subr.mxu0 0.0
    %2325 = vmatpush1.msra.mxu0 0.0
    %2326 = vmatprep.subr.mxu0 0.0
    %2327 = vmatpush1.msra.mxu0 0.0
    %2328 = vmatprep.subr.mxu0 0.0
    %2329 = vmatpush1.msra.mxu0 0.0
    %2330 = vmatprep.subr.mxu0 0.0
    %2331 = vmatpush1.msra.mxu0 0.0
    %2332 = vmatprep.subr.mxu0 0.0
    %2333 = vmatpush1.msra.mxu0 0.0
    %2334 = vmatprep.subr.mxu0 0.0
    %2335 = vmatpush1.msra.mxu0 0.0
    %2336 = vmatprep.subr.mxu0 0.0
    %2337 = vmatpush1.msra.mxu0 0.0
    %2338 = vmatprep.subr.mxu0 0.0
    %2339 = vmatpush1.msra.mxu0 %v1772
    %2340 = vmatprep.subr.mxu0 0.0
    %2341 = vmatpush1.msra.mxu0 %v1770
    %2342 = vmatprep.subr.mxu0 0.0
    %2343 = vmatpush2.msra.mxu0 0.0
    %2344 = vmatprep.subr.mxu0 0.0
    %2345 = vmatpush2.msra.mxu0 0.0
    %2346 = vmatprep.subr.mxu0 0.0
    %2347 = vmatpush2.msra.mxu0 0.0
    %2348 = vmatprep.subr.mxu0 0.0
    %2349 = vmatpush2.msra.mxu0 0.0
    %2350 = vmatprep.subr.mxu0 0.0
    %2351 = vmatpush2.msra.mxu0 0.0
    %2352 = vmatprep.subr.mxu0 0.0
    %2353 = vmatpush2.msra.mxu0 0.0
    %2354 = vmatprep.subr.mxu0 0.0
    %2355 = vmatpush2.msra.mxu0 0.0
    %2356 = vmatprep.subr.mxu0 0.0
    %2357 = vmatpush2.msra.mxu0 0.0
    %2358 = vmatprep.subr.mxu0 0.0
    %2359 = vmatpush2.msra.mxu0 0.0
    %2360 = vmatprep.subr.mxu0 0.0
    %2361 = vmatpush2.msra.mxu0 0.0
    %2362 = vmatprep.subr.mxu0 0.0
    %2363 = vmatpush2.msra.mxu0 0.0
    %2364 = vmatprep.subr.mxu0 0.0
    %2365 = vmatpush2.msra.mxu0 0.0
    %2366 = vmatprep.subr.mxu0 0.0
    %2367 = vmatpush2.msra.mxu0 0.0
    %2368 = vmatprep.subr.mxu0 0.0
    %2369 = vmatpush2.msra.mxu0 0.0
    %2370 = vmatprep.subr.mxu0 0.0
    %2371 = vmatpush2.msra.mxu0 0.0
    %2372 = vmatprep.subr.mxu0 0.0
    %2373 = vmatpush2.msra.mxu0 0.0
    %2374 = vmatprep.mubr.f32.mxu0 0.0
    %2375 = vmatmul.mubr.f32.gmra.mxu0 %v2305
    %v2376 = vpop.f32.mrf.mxu0
    %v2377 = vadd.f32 0.0, %v2376
    %v2378 = vpop.f32.mrf.mxu0
    %2379 = vmatprep.mubr.f32.mxu0 0.0
    %2380 = vmatmul.mubr.f32.gmra.mxu0 %v2308
    %v2381 = vpop.f32.mrf.mxu0
    %v2382 = vadd.f32 0.0, %v2381
    %v2383 = vpop.f32.mrf.mxu0
    %2384 = vdwg.mxu0
    %v2386 = vsel %vm747, %v2216, 0
    %v2389 = vsel %vm747, %v2218, 0
    %2391 = vmatprep.subr.mxu0 0.0
    %2392 = vmatpush1.msra.mxu0 0.0
    %2393 = vmatprep.subr.mxu0 0.0
    %2394 = vmatpush1.msra.mxu0 0.0
    %2395 = vmatprep.subr.mxu0 0.0
    %2396 = vmatpush1.msra.mxu0 0.0
    %2397 = vmatprep.subr.mxu0 0.0
    %2398 = vmatpush1.msra.mxu0 0.0
    %2399 = vmatprep.subr.mxu0 0.0
    %2400 = vmatpush1.msra.mxu0 0.0
    %2401 = vmatprep.subr.mxu0 0.0
    %2402 = vmatpush1.msra.mxu0 0.0
    %2403 = vmatprep.subr.mxu0 0.0
    %2404 = vmatpush1.msra.mxu0 0.0
    %2405 = vmatprep.subr.mxu0 0.0
    %2406 = vmatpush1.msra.mxu0 0.0
    %2407 = vmatprep.subr.mxu0 0.0
    %2408 = vmatpush1.msra.mxu0 0.0
    %2409 = vmatprep.subr.mxu0 0.0
    %2410 = vmatpush1.msra.mxu0 0.0
    %2411 = vmatprep.subr.mxu0 0.0
    %2412 = vmatpush1.msra.mxu0 0.0
    %2413 = vmatprep.subr.mxu0 0.0
    %2414 = vmatpush1.msra.mxu0 0.0
    %2415 = vmatprep.subr.mxu0 0.0
    %2416 = vmatpush1.msra.mxu0 0.0
    %2417 = vmatprep.subr.mxu0 0.0
    %2418 = vmatpush1.msra.mxu0 0.0
    %2419 = vmatprep.subr.mxu0 0.0
    %2420 = vmatpush1.msra.mxu0 %v1778
    %2421 = vmatprep.subr.mxu0 0.0
    %2422 = vmatpush1.msra.mxu0 %v1776
    %2423 = vmatprep.subr.mxu0 0.0
    %2424 = vmatpush2.msra.mxu0 0.0
    %2425 = vmatprep.subr.mxu0 0.0
    %2426 = vmatpush2.msra.mxu0 0.0
    %2427 = vmatprep.subr.mxu0 0.0
    %2428 = vmatpush2.msra.mxu0 0.0
    %2429 = vmatprep.subr.mxu0 0.0
    %2430 = vmatpush2.msra.mxu0 0.0
    %2431 = vmatprep.subr.mxu0 0.0
    %2432 = vmatpush2.msra.mxu0 0.0
    %2433 = vmatprep.subr.mxu0 0.0
    %2434 = vmatpush2.msra.mxu0 0.0
    %2435 = vmatprep.subr.mxu0 0.0
    %2436 = vmatpush2.msra.mxu0 0.0
    %2437 = vmatprep.subr.mxu0 0.0
    %2438 = vmatpush2.msra.mxu0 0.0
    %2439 = vmatprep.subr.mxu0 0.0
    %2440 = vmatpush2.msra.mxu0 0.0
    %2441 = vmatprep.subr.mxu0 0.0
    %2442 = vmatpush2.msra.mxu0 0.0
    %2443 = vmatprep.subr.mxu0 0.0
    %2444 = vmatpush2.msra.mxu0 0.0
    %2445 = vmatprep.subr.mxu0 0.0
    %2446 = vmatpush2.msra.mxu0 0.0
    %2447 = vmatprep.subr.mxu0 0.0
    %2448 = vmatpush2.msra.mxu0 0.0
    %2449 = vmatprep.subr.mxu0 0.0
    %2450 = vmatpush2.msra.mxu0 0.0
    %2451 = vmatprep.subr.mxu0 0.0
    %2452 = vmatpush2.msra.mxu0 0.0
    %2453 = vmatprep.subr.mxu0 0.0
    %2454 = vmatpush2.msra.mxu0 0.0
    %2455 = vmatprep.mubr.f32.mxu0 0.0
    %2456 = vmatmul.mubr.f32.gmra.mxu0 %v2386
    %v2457 = vpop.f32.mrf.mxu0
    %v2458 = vadd.f32 0.0, %v2457
    %v2459 = vpop.f32.mrf.mxu0
    %2460 = vmatprep.mubr.f32.mxu0 0.0
    %2461 = vmatmul.mubr.f32.gmra.mxu0 %v2389
    %v2462 = vpop.f32.mrf.mxu0
    %v2463 = vadd.f32 0.0, %v2462
    %v2464 = vpop.f32.mrf.mxu0
    %2465 = vdwg.mxu0
    %v2467 = vsel %vm747, %v2220, 0
    %v2470 = vsel %vm747, %v2222, 0
    %2472 = vmatprep.subr.mxu0 0.0
    %2473 = vmatpush1.msra.mxu0 0.0
    %2474 = vmatprep.subr.mxu0 0.0
    %2475 = vmatpush1.msra.mxu0 0.0
    %2476 = vmatprep.subr.mxu0 0.0
    %2477 = vmatpush1.msra.mxu0 0.0
    %2478 = vmatprep.subr.mxu0 0.0
    %2479 = vmatpush1.msra.mxu0 0.0
    %2480 = vmatprep.subr.mxu0 0.0
    %2481 = vmatpush1.msra.mxu0 0.0
    %2482 = vmatprep.subr.mxu0 0.0
    %2483 = vmatpush1.msra.mxu0 0.0
    %2484 = vmatprep.subr.mxu0 0.0
    %2485 = vmatpush1.msra.mxu0 0.0
    %2486 = vmatprep.subr.mxu0 0.0
    %2487 = vmatpush1.msra.mxu0 0.0
    %2488 = vmatprep.subr.mxu0 0.0
    %2489 = vmatpush1.msra.mxu0 0.0
    %2490 = vmatprep.subr.mxu0 0.0
    %2491 = vmatpush1.msra.mxu0 0.0
    %2492 = vmatprep.subr.mxu0 0.0
    %2493 = vmatpush1.msra.mxu0 0.0
    %2494 = vmatprep.subr.mxu0 0.0
    %2495 = vmatpush1.msra.mxu0 0.0
    %2496 = vmatprep.subr.mxu0 0.0
    %2497 = vmatpush1.msra.mxu0 0.0
    %2498 = vmatprep.subr.mxu0 0.0
    %2499 = vmatpush1.msra.mxu0 0.0
    %2500 = vmatprep.subr.mxu0 0.0
    %2501 = vmatpush1.msra.mxu0 %v1784
    %2502 = vmatprep.subr.mxu0 0.0
    %2503 = vmatpush1.msra.mxu0 %v1782
    %2504 = vmatprep.subr.mxu0 0.0
    %2505 = vmatpush2.msra.mxu0 0.0
    %2506 = vmatprep.subr.mxu0 0.0
    %2507 = vmatpush2.msra.mxu0 0.0
    %2508 = vmatprep.subr.mxu0 0.0
    %2509 = vmatpush2.msra.mxu0 0.0
    %2510 = vmatprep.subr.mxu0 0.0
    %2511 = vmatpush2.msra.mxu0 0.0
    %2512 = vmatprep.subr.mxu0 0.0
    %2513 = vmatpush2.msra.mxu0 0.0
    %2514 = vmatprep.subr.mxu0 0.0
    %2515 = vmatpush2.msra.mxu0 0.0
    %2516 = vmatprep.subr.mxu0 0.0
    %2517 = vmatpush2.msra.mxu0 0.0
    %2518 = vmatprep.subr.mxu0 0.0
    %2519 = vmatpush2.msra.mxu0 0.0
    %2520 = vmatprep.subr.mxu0 0.0
    %2521 = vmatpush2.msra.mxu0 0.0
    %2522 = vmatprep.subr.mxu0 0.0
    %2523 = vmatpush2.msra.mxu0 0.0
    %2524 = vmatprep.subr.mxu0 0.0
    %2525 = vmatpush2.msra.mxu0 0.0
    %2526 = vmatprep.subr.mxu0 0.0
    %2527 = vmatpush2.msra.mxu0 0.0
    %2528 = vmatprep.subr.mxu0 0.0
    %2529 = vmatpush2.msra.mxu0 0.0
    %2530 = vmatprep.subr.mxu0 0.0
    %2531 = vmatpush2.msra.mxu0 0.0
    %2532 = vmatprep.subr.mxu0 0.0
    %2533 = vmatpush2.msra.mxu0 0.0
    %2534 = vmatprep.subr.mxu0 0.0
    %2535 = vmatpush2.msra.mxu0 0.0
    %2536 = vmatprep.mubr.f32.mxu0 0.0
    %2537 = vmatmul.mubr.f32.gmra.mxu0 %v2467
    %v2538 = vpop.f32.mrf.mxu0
    %v2539 = vadd.f32 0.0, %v2538
    %v2540 = vpop.f32.mrf.mxu0
    %2541 = vmatprep.mubr.f32.mxu0 0.0
    %2542 = vmatmul.mubr.f32.gmra.mxu0 %v2470
    %v2543 = vpop.f32.mrf.mxu0
    %v2544 = vadd.f32 0.0, %v2543
    %v2545 = vpop.f32.mrf.mxu0
    %2546 = vdwg.mxu0
    %2549 = vrot.lane.b32.xlu0 %v2377, 8
    %v2550 = vpop.permute.xlu0 %2549
    %2551 = vrot.lane.b32.xlu0 %v2382, 8
    %v2552 = vpop.permute.xlu0 %2551
    %2557 = vrot.lane.b32.xlu0 %v2458, 16
    %v2558 = vpop.permute.xlu0 %2557
    %2559 = vrot.lane.b32.xlu0 %v2463, 16
    %v2560 = vpop.permute.xlu0 %2559
    %2565 = vrot.lane.b32.xlu0 %v2539, 24
    %v2566 = vpop.permute.xlu0 %2565
    %2567 = vrot.lane.b32.xlu0 %v2544, 24
    %v2568 = vpop.permute.xlu0 %2567
    %v2571 = vsel %vm394, %v2296, %v2550
    %v2572 = vsel %vm394, %v2301, %v2552
    %v2573 = vsel %vm747, %v2571, %v2558
    %v2574 = vsel %vm747, %v2572, %v2560
    %v2575 = vsel %vm1188, %v2573, %v2566
    %v2576 = vsel %vm1188, %v2574, %v2568
    %s2577 = scalar_lea.vmem %s3, 32
    %v2578 = vld [vmem:[%s2577] sm:$0xff]
    %v2579 = vld [vmem:[%s2577 + $0x8] sm:$0xff]
    %v2580 = vld [vmem:[%s2577 + $0x10] sm:$0xff]
    %v2581 = vld [vmem:[%s2577 + $0x18] sm:$0xff]
    %v2582 = vlaneseq
    %v2583 = vshrl.u32 %v2582, 7
    %v2584 = vsub.s32 3, %v2583
    %v2585 = vrot.slane %v1548, %v2584
    %v2587 = vsel %vm72, %v2575, 0
    %v2590 = vsel %vm72, %v2576, 0
    %2592 = vmatprep.subr.mxu0 0.0
    %2593 = vmatpush1.msra.mxu0 0.0
    %2594 = vmatprep.subr.mxu0 0.0
    %2595 = vmatpush1.msra.mxu0 0.0
    %2596 = vmatprep.subr.mxu0 0.0
    %2597 = vmatpush1.msra.mxu0 0.0
    %2598 = vmatprep.subr.mxu0 0.0
    %2599 = vmatpush1.msra.mxu0 0.0
    %2600 = vmatprep.subr.mxu0 0.0
    %2601 = vmatpush1.msra.mxu0 0.0
    %2602 = vmatprep.subr.mxu0 0.0
    %2603 = vmatpush1.msra.mxu0 0.0
    %2604 = vmatprep.subr.mxu0 0.0
    %2605 = vmatpush1.msra.mxu0 0.0
    %2606 = vmatprep.subr.mxu0 0.0
    %2607 = vmatpush1.msra.mxu0 0.0
    %2608 = vmatprep.subr.mxu0 0.0
    %2609 = vmatpush1.msra.mxu0 0.0
    %2610 = vmatprep.subr.mxu0 0.0
    %2611 = vmatpush1.msra.mxu0 0.0
    %2612 = vmatprep.subr.mxu0 0.0
    %2613 = vmatpush1.msra.mxu0 0.0
    %2614 = vmatprep.subr.mxu0 0.0
    %2615 = vmatpush1.msra.mxu0 0.0
    %2616 = vmatprep.subr.mxu0 0.0
    %2617 = vmatpush1.msra.mxu0 %v2581
    %2618 = vmatprep.subr.mxu0 0.0
    %2619 = vmatpush1.msra.mxu0 %v2580
    %2620 = vmatprep.subr.mxu0 0.0
    %2621 = vmatpush1.msra.mxu0 %v2579
    %2622 = vmatprep.subr.mxu0 0.0
    %2623 = vmatpush1.msra.mxu0 %v2578
    %2624 = vmatprep.subr.mxu0 0.0
    %2625 = vmatpush2.msra.mxu0 0.0
    %2626 = vmatprep.subr.mxu0 0.0
    %2627 = vmatpush2.msra.mxu0 0.0
    %2628 = vmatprep.subr.mxu0 0.0
    %2629 = vmatpush2.msra.mxu0 0.0
    %2630 = vmatprep.subr.mxu0 0.0
    %2631 = vmatpush2.msra.mxu0 0.0
    %2632 = vmatprep.subr.mxu0 0.0
    %2633 = vmatpush2.msra.mxu0 0.0
    %2634 = vmatprep.subr.mxu0 0.0
    %2635 = vmatpush2.msra.mxu0 0.0
    %2636 = vmatprep.subr.mxu0 0.0
    %2637 = vmatpush2.msra.mxu0 0.0
    %2638 = vmatprep.subr.mxu0 0.0
    %2639 = vmatpush2.msra.mxu0 0.0
    %2640 = vmatprep.subr.mxu0 0.0
    %2641 = vmatpush2.msra.mxu0 0.0
    %2642 = vmatprep.subr.mxu0 0.0
    %2643 = vmatpush2.msra.mxu0 0.0
    %2644 = vmatprep.subr.mxu0 0.0
    %2645 = vmatpush2.msra.mxu0 0.0
    %2646 = vmatprep.subr.mxu0 0.0
    %2647 = vmatpush2.msra.mxu0 0.0
    %2648 = vmatprep.subr.mxu0 0.0
    %2649 = vmatpush2.msra.mxu0 0.0
    %2650 = vmatprep.subr.mxu0 0.0
    %2651 = vmatpush2.msra.mxu0 0.0
    %2652 = vmatprep.subr.mxu0 0.0
    %2653 = vmatpush2.msra.mxu0 0.0
    %2654 = vmatprep.subr.mxu0 0.0
    %2655 = vmatpush2.msra.mxu0 0.0
    %2656 = vmatprep.mubr.f32.mxu0 0.0
    %2657 = vmatmul.mubr.f32.gmra.mxu0 %v2587
    %v2658 = vpop.f32.mrf.mxu0
    %v2659 = vadd.f32 %v2585, %v2658
    %v2660 = vpop.f32.mrf.mxu0
    %2661 = vmatprep.mubr.f32.mxu0 0.0
    %2662 = vmatmul.mubr.f32.gmra.mxu0 %v2590
    %v2663 = vpop.f32.mrf.mxu0
    %v2664 = vadd.f32 %v2585, %v2663
    %v2665 = vpop.f32.mrf.mxu0
    %2666 = vdwg.mxu0
    %v2667 = vadd.f32 %v1545, %v2659
    %v2668 = vadd.f32 %v1546, %v2664
    %v2669 = vsel %vm72, %v2667, 0.0
    %2670 = vadd.xlane.f32.xlu0 %v2669
    %v2671 = vpop.xlane.xlu0 %2670
    %v2672 = vsel %vm72, %v2668, 0.0
    %2673 = vadd.xlane.f32.xlu0 %v2672
    %v2674 = vpop.xlane.xlu0 %2673
    %v2675 = vmul.f32 %v2671, %v1288
    %v2676 = vmul.f32 %v2674, %v1288
    %v2677 = vsub.f32 %v2667, %v2675
    %v2678 = vsub.f32 %v2668, %v2676
    %v2679 = vmul.f32 %v2677, %v2677
    %v2680 = vmul.f32 %v2678, %v2678
    %v2681 = vsel %vm72, %v2679, 0.0
    %2682 = vadd.xlane.f32.xlu0 %v2681
    %v2683 = vpop.xlane.xlu0 %2682
    %v2684 = vsel %vm72, %v2680, 0.0
    %2685 = vadd.xlane.f32.xlu0 %v2684
    %v2686 = vpop.xlane.xlu0 %2685
    %v2687 = vmul.f32 %v2683, %v1288
    %v2688 = vmul.f32 %v2686, %v1288
    %v2689 = vadd.f32 %v2687, 1e-05
    %v2690 = vadd.f32 %v2688, 1e-05
    %v2691 = vrsqrt.pop %v2689
    %v2692 = vrsqrt.pop %v2690
    %v2693 = vmul.f32 %v2677, %v2691
    %v2694 = vmul.f32 %v2678, %v2692
    %v2695 = vlaneseq
    %v2696 = vshrl.u32 %v2695, 7
    %v2697 = vsub.s32 4, %v2696
    %v2698 = vrot.slane %v1548, %v2697
    %v2699 = vmul.f32 %v2693, %v2698
    %v2700 = vmul.f32 %v2694, %v2698
    %v2701 = vlaneseq
    %v2702 = vshrl.u32 %v2701, 7
    %v2703 = vsub.s32 5, %v2702
    %v2704 = vrot.slane %v1548, %v2703
    %v2705 = vadd.f32 %v2699, %v2704
    %v2706 = vadd.f32 %v2700, %v2704
    %s2707 = scalar_lea.vmem %s4, 32
    %v2708 = vld [vmem:[%s2707] sm:$0xff]
    %v2709 = vld [vmem:[%s2707 + $0x8] sm:$0xff]
    %v2710 = vld [vmem:[%s2707 + $0x10] sm:$0xff]
    %v2711 = vld [vmem:[%s2707 + $0x18] sm:$0xff]
    %v2712 = vlaneseq
    %v2713 = vshrl.u32 %v2712, 7
    %v2714 = vsub.s32 6, %v2713
    %v2715 = vrot.slane %v1548, %v2714
    %v2717 = vsel %vm72, %v2705, 0
    %v2720 = vsel %vm72, %v2706, 0
    %2722 = vmatprep.subr.mxu0 0.0
    %2723 = vmatpush1.msra.mxu0 0.0
    %2724 = vmatprep.subr.mxu0 0.0
    %2725 = vmatpush1.msra.mxu0 0.0
    %2726 = vmatprep.subr.mxu0 0.0
    %2727 = vmatpush1.msra.mxu0 0.0
    %2728 = vmatprep.subr.mxu0 0.0
    %2729 = vmatpush1.msra.mxu0 0.0
    %2730 = vmatprep.subr.mxu0 0.0
    %2731 = vmatpush1.msra.mxu0 0.0
    %2732 = vmatprep.subr.mxu0 0.0
    %2733 = vmatpush1.msra.mxu0 0.0
    %2734 = vmatprep.subr.mxu0 0.0
    %2735 = vmatpush1.msra.mxu0 0.0
    %2736 = vmatprep.subr.mxu0 0.0
    %2737 = vmatpush1.msra.mxu0 0.0
    %2738 = vmatprep.subr.mxu0 0.0
    %2739 = vmatpush1.msra.mxu0 0.0
    %2740 = vmatprep.subr.mxu0 0.0
    %2741 = vmatpush1.msra.mxu0 0.0
    %2742 = vmatprep.subr.mxu0 0.0
    %2743 = vmatpush1.msra.mxu0 0.0
    %2744 = vmatprep.subr.mxu0 0.0
    %2745 = vmatpush1.msra.mxu0 0.0
    %2746 = vmatprep.subr.mxu0 0.0
    %2747 = vmatpush1.msra.mxu0 %v2711
    %2748 = vmatprep.subr.mxu0 0.0
    %2749 = vmatpush1.msra.mxu0 %v2710
    %2750 = vmatprep.subr.mxu0 0.0
    %2751 = vmatpush1.msra.mxu0 %v2709
    %2752 = vmatprep.subr.mxu0 0.0
    %2753 = vmatpush1.msra.mxu0 %v2708
    %2754 = vmatprep.subr.mxu0 0.0
    %2755 = vmatpush2.msra.mxu0 0.0
    %2756 = vmatprep.subr.mxu0 0.0
    %2757 = vmatpush2.msra.mxu0 0.0
    %2758 = vmatprep.subr.mxu0 0.0
    %2759 = vmatpush2.msra.mxu0 0.0
    %2760 = vmatprep.subr.mxu0 0.0
    %2761 = vmatpush2.msra.mxu0 0.0
    %2762 = vmatprep.subr.mxu0 0.0
    %2763 = vmatpush2.msra.mxu0 0.0
    %2764 = vmatprep.subr.mxu0 0.0
    %2765 = vmatpush2.msra.mxu0 0.0
    %2766 = vmatprep.subr.mxu0 0.0
    %2767 = vmatpush2.msra.mxu0 0.0
    %2768 = vmatprep.subr.mxu0 0.0
    %2769 = vmatpush2.msra.mxu0 0.0
    %2770 = vmatprep.subr.mxu0 0.0
    %2771 = vmatpush2.msra.mxu0 0.0
    %2772 = vmatprep.subr.mxu0 0.0
    %2773 = vmatpush2.msra.mxu0 0.0
    %2774 = vmatprep.subr.mxu0 0.0
    %2775 = vmatpush2.msra.mxu0 0.0
    %2776 = vmatprep.subr.mxu0 0.0
    %2777 = vmatpush2.msra.mxu0 0.0
    %2778 = vmatprep.subr.mxu0 0.0
    %2779 = vmatpush2.msra.mxu0 0.0
    %2780 = vmatprep.subr.mxu0 0.0
    %2781 = vmatpush2.msra.mxu0 0.0
    %2782 = vmatprep.subr.mxu0 0.0
    %2783 = vmatpush2.msra.mxu0 0.0
    %2784 = vmatprep.subr.mxu0 0.0
    %2785 = vmatpush2.msra.mxu0 0.0
    %2786 = vmatprep.mubr.f32.mxu0 0.0
    %2787 = vmatmul.mubr.f32.gmra.mxu0 %v2717
    %v2788 = vpop.f32.mrf.mxu0
    %v2789 = vadd.f32 %v2715, %v2788
    %v2790 = vpop.f32.mrf.mxu0
    %2791 = vmatprep.mubr.f32.mxu0 0.0
    %2792 = vmatmul.mubr.f32.gmra.mxu0 %v2720
    %v2793 = vpop.f32.mrf.mxu0
    %v2794 = vadd.f32 %v2715, %v2793
    %v2795 = vpop.f32.mrf.mxu0
    %2796 = vdwg.mxu0
    %v2797 = vmax.f32 %v2789, 0.0
    %v2798 = vmax.f32 %v2794, 0.0
    %s2799 = scalar_lea.vmem %s5, 128
    %v2800 = vld [vmem:[%s2799] sm:$0xff]
    %v2801 = vld [vmem:[%s2799 + $0x8] sm:$0xff]
    %v2802 = vld [vmem:[%s2799 + $0x10] sm:$0xff]
    %v2803 = vld [vmem:[%s2799 + $0x18] sm:$0xff]
    %v2804 = vld [vmem:[%s2799 + $0x20] sm:$0xff]
    %v2805 = vld [vmem:[%s2799 + $0x28] sm:$0xff]
    %v2806 = vld [vmem:[%s2799 + $0x30] sm:$0xff]
    %v2807 = vld [vmem:[%s2799 + $0x38] sm:$0xff]
    %v2808 = vld [vmem:[%s2799 + $0x40] sm:$0xff]
    %v2809 = vld [vmem:[%s2799 + $0x48] sm:$0xff]
    %v2810 = vld [vmem:[%s2799 + $0x50] sm:$0xff]
    %v2811 = vld [vmem:[%s2799 + $0x58] sm:$0xff]
    %v2812 = vld [vmem:[%s2799 + $0x60] sm:$0xff]
    %v2813 = vld [vmem:[%s2799 + $0x68] sm:$0xff]
    %v2814 = vld [vmem:[%s2799 + $0x70] sm:$0xff]
    %v2815 = vld [vmem:[%s2799 + $0x78] sm:$0xff]
    %v2816 = vlaneseq
    %v2817 = vshrl.u32 %v2816, 7
    %v2818 = vsub.s32 7, %v2817
    %v2819 = vrot.slane %v1548, %v2818
    %2820 = vmatprep.subr.mxu0 0.0
    %2821 = vmatpush1.msra.mxu0 %v2815
    %2822 = vmatprep.subr.mxu0 0.0
    %2823 = vmatpush1.msra.mxu0 %v2814
    %2824 = vmatprep.subr.mxu0 0.0
    %2825 = vmatpush1.msra.mxu0 %v2813
    %2826 = vmatprep.subr.mxu0 0.0
    %2827 = vmatpush1.msra.mxu0 %v2812
    %2828 = vmatprep.subr.mxu0 0.0
    %2829 = vmatpush1.msra.mxu0 %v2811
    %2830 = vmatprep.subr.mxu0 0.0
    %2831 = vmatpush1.msra.mxu0 %v2810
    %2832 = vmatprep.subr.mxu0 0.0
    %2833 = vmatpush1.msra.mxu0 %v2809
    %2834 = vmatprep.subr.mxu0 0.0
    %2835 = vmatpush1.msra.mxu0 %v2808
    %2836 = vmatprep.subr.mxu0 0.0
    %2837 = vmatpush1.msra.mxu0 %v2807
    %2838 = vmatprep.subr.mxu0 0.0
    %2839 = vmatpush1.msra.mxu0 %v2806
    %2840 = vmatprep.subr.mxu0 0.0
    %2841 = vmatpush1.msra.mxu0 %v2805
    %2842 = vmatprep.subr.mxu0 0.0
    %2843 = vmatpush1.msra.mxu0 %v2804
    %2844 = vmatprep.subr.mxu0 0.0
    %2845 = vmatpush1.msra.mxu0 %v2803
    %2846 = vmatprep.subr.mxu0 0.0
    %2847 = vmatpush1.msra.mxu0 %v2802
    %2848 = vmatprep.subr.mxu0 0.0
    %2849 = vmatpush1.msra.mxu0 %v2801
    %2850 = vmatprep.subr.mxu0 0.0
    %2851 = vmatpush1.msra.mxu0 %v2800
    %2852 = vmatprep.subr.mxu0 0.0
    %2853 = vmatpush2.msra.mxu0 0.0
    %2854 = vmatprep.subr.mxu0 0.0
    %2855 = vmatpush2.msra.mxu0 0.0
    %2856 = vmatprep.subr.mxu0 0.0
    %2857 = vmatpush2.msra.mxu0 0.0
    %2858 = vmatprep.subr.mxu0 0.0
    %2859 = vmatpush2.msra.mxu0 0.0
    %2860 = vmatprep.subr.mxu0 0.0
    %2861 = vmatpush2.msra.mxu0 0.0
    %2862 = vmatprep.subr.mxu0 0.0
    %2863 = vmatpush2.msra.mxu0 0.0
    %2864 = vmatprep.subr.mxu0 0.0
    %2865 = vmatpush2.msra.mxu0 0.0
    %2866 = vmatprep.subr.mxu0 0.0
    %2867 = vmatpush2.msra.mxu0 0.0
    %2868 = vmatprep.subr.mxu0 0.0
    %2869 = vmatpush2.msra.mxu0 0.0
    %2870 = vmatprep.subr.mxu0 0.0
    %2871 = vmatpush2.msra.mxu0 0.0
    %2872 = vmatprep.subr.mxu0 0.0
    %2873 = vmatpush2.msra.mxu0 0.0
    %2874 = vmatprep.subr.mxu0 0.0
    %2875 = vmatpush2.msra.mxu0 0.0
    %2876 = vmatprep.subr.mxu0 0.0
    %2877 = vmatpush2.msra.mxu0 0.0
    %2878 = vmatprep.subr.mxu0 0.0
    %2879 = vmatpush2.msra.mxu0 0.0
    %2880 = vmatprep.subr.mxu0 0.0
    %2881 = vmatpush2.msra.mxu0 0.0
    %2882 = vmatprep.subr.mxu0 0.0
    %2883 = vmatpush2.msra.mxu0 0.0
    %2884 = vmatprep.mubr.f32.mxu0 0.0
    %2885 = vmatmul.mubr.f32.gmra.mxu0 %v2797
    %v2886 = vpop.f32.mrf.mxu0
    %v2887 = vadd.f32 %v2819, %v2886
    %v2888 = vpop.f32.mrf.mxu0
    %2889 = vmatprep.mubr.f32.mxu0 0.0
    %2890 = vmatmul.mubr.f32.gmra.mxu0 %v2798
    %v2891 = vpop.f32.mrf.mxu0
    %v2892 = vadd.f32 %v2819, %v2891
    %v2893 = vpop.f32.mrf.mxu0
    %2894 = vdwg.mxu0
    %v2895 = vadd.f32 %v2705, %v2887
    %v2896 = vadd.f32 %v2706, %v2892
    %v2897 = vsel %vm72, %v2895, 0.0
    %2898 = vadd.xlane.f32.xlu0 %v2897
    %v2899 = vpop.xlane.xlu0 %2898
    %v2900 = vsel %vm72, %v2896, 0.0
    %2901 = vadd.xlane.f32.xlu0 %v2900
    %v2902 = vpop.xlane.xlu0 %2901
    %v2903 = vmul.f32 %v2899, %v1288
    %v2904 = vmul.f32 %v2902, %v1288
    %v2905 = vsub.f32 %v2895, %v2903
    %v2906 = vsub.f32 %v2896, %v2904
    %v2907 = vmul.f32 %v2905, %v2905
    %v2908 = vmul.f32 %v2906, %v2906
    %v2909 = vsel %vm72, %v2907, 0.0
    %2910 = vadd.xlane.f32.xlu0 %v2909
    %v2911 = vpop.xlane.xlu0 %2910
    %v2912 = vsel %vm72, %v2908, 0.0
    %2913 = vadd.xlane.f32.xlu0 %v2912
    %v2914 = vpop.xlane.xlu0 %2913
    %v2915 = vmul.f32 %v2911, %v1288
    %v2916 = vmul.f32 %v2914, %v1288
    %v2917 = vadd.f32 %v2915, 1e-05
    %v2918 = vadd.f32 %v2916, 1e-05
    %v2919 = vrsqrt.pop %v2917
    %v2920 = vrsqrt.pop %v2918
    %v2921 = vmul.f32 %v2905, %v2919
    %v2922 = vmul.f32 %v2906, %v2920
    %v2923 = vlaneseq
    %v2924 = vshrl.u32 %v2923, 7
    %v2925 = vsub.s32 0, %v2924
    %v2926 = vrot.slane %v1549, %v2925
    %v2927 = vmul.f32 %v2921, %v2926
    %v2928 = vmul.f32 %v2922, %v2926
    %v2929 = vlaneseq
    %v2930 = vshrl.u32 %v2929, 7
    %v2931 = vsub.s32 1, %v2930
    %v2932 = vrot.slane %v1549, %v2931
    %v2933 = vadd.f32 %v2927, %v2932
    %v2934 = vadd.f32 %v2928, %v2932
    %v2936 = vsel %vm72, %v2933, 0
    %v2939 = vsel %vm72, %v2934, 0
    %2941 = vmatprep.subr.mxu0 0.0
    %2942 = vmatpush1.msra.mxu0 0.0
    %2943 = vmatprep.subr.mxu0 0.0
    %2944 = vmatpush1.msra.mxu0 0.0
    %2945 = vmatprep.subr.mxu0 0.0
    %2946 = vmatpush1.msra.mxu0 0.0
    %2947 = vmatprep.subr.mxu0 0.0
    %2948 = vmatpush1.msra.mxu0 0.0
    %2949 = vmatprep.subr.mxu0 0.0
    %2950 = vmatpush1.msra.mxu0 0.0
    %2951 = vmatprep.subr.mxu0 0.0
    %2952 = vmatpush1.msra.mxu0 0.0
    %2953 = vmatprep.subr.mxu0 0.0
    %2954 = vmatpush1.msra.mxu0 0.0
    %2955 = vmatprep.subr.mxu0 0.0
    %2956 = vmatpush1.msra.mxu0 0.0
    %2957 = vmatprep.subr.mxu0 0.0
    %2958 = vmatpush1.msra.mxu0 0.0
    %2959 = vmatprep.subr.mxu0 0.0
    %2960 = vmatpush1.msra.mxu0 0.0
    %2961 = vmatprep.subr.mxu0 0.0
    %2962 = vmatpush1.msra.mxu0 0.0
    %2963 = vmatprep.subr.mxu0 0.0
    %2964 = vmatpush1.msra.mxu0 0.0
    %2965 = vmatprep.subr.mxu0 %v59
    %2966 = vmatpush1.msra.mxu0 %v58
    %2967 = vmatprep.subr.mxu0 %v57
    %2968 = vmatpush1.msra.mxu0 %v56
    %2969 = vmatprep.subr.mxu0 %v55
    %2970 = vmatpush1.msra.mxu0 %v54
    %2971 = vmatprep.subr.mxu0 %v53
    %2972 = vmatpush1.msra.mxu0 %v52
    %2973 = vmatprep.subr.mxu0 0.0
    %2974 = vmatpush2.msra.mxu0 0.0
    %2975 = vmatprep.subr.mxu0 0.0
    %2976 = vmatpush2.msra.mxu0 0.0
    %2977 = vmatprep.subr.mxu0 0.0
    %2978 = vmatpush2.msra.mxu0 0.0
    %2979 = vmatprep.subr.mxu0 0.0
    %2980 = vmatpush2.msra.mxu0 0.0
    %2981 = vmatprep.subr.mxu0 0.0
    %2982 = vmatpush2.msra.mxu0 0.0
    %2983 = vmatprep.subr.mxu0 0.0
    %2984 = vmatpush2.msra.mxu0 0.0
    %2985 = vmatprep.subr.mxu0 0.0
    %2986 = vmatpush2.msra.mxu0 0.0
    %2987 = vmatprep.subr.mxu0 0.0
    %2988 = vmatpush2.msra.mxu0 0.0
    %2989 = vmatprep.subr.mxu0 0.0
    %2990 = vmatpush2.msra.mxu0 0.0
    %2991 = vmatprep.subr.mxu0 0.0
    %2992 = vmatpush2.msra.mxu0 0.0
    %2993 = vmatprep.subr.mxu0 0.0
    %2994 = vmatpush2.msra.mxu0 0.0
    %2995 = vmatprep.subr.mxu0 0.0
    %2996 = vmatpush2.msra.mxu0 0.0
    %2997 = vmatprep.subr.mxu0 0.0
    %2998 = vmatpush2.msra.mxu0 0.0
    %2999 = vmatprep.subr.mxu0 0.0
    %3000 = vmatpush2.msra.mxu0 0.0
    %3001 = vmatprep.subr.mxu0 0.0
    %3002 = vmatpush2.msra.mxu0 0.0
    %3003 = vmatprep.subr.mxu0 0.0
    %3004 = vmatpush2.msra.mxu0 0.0
    %3005 = vmatprep.mubr.f32.mxu0 0.0
    %3006 = vmatmul.mubr.f32.gmra.mxu0 %v2936
    %v3007 = vpop.f32.mrf.mxu0
    %v3008 = vadd.f32 0.0, %v3007
    %v3009 = vpop.f32.mrf.mxu0
    %v3010 = vadd.f32 0.0, %v3009
    %3011 = vmatprep.mubr.f32.mxu0 0.0
    %3012 = vmatmul.mubr.f32.gmra.mxu0 %v2939
    %v3013 = vpop.f32.mrf.mxu0
    %v3014 = vadd.f32 0.0, %v3013
    %v3015 = vpop.f32.mrf.mxu0
    %v3016 = vadd.f32 0.0, %v3015
    %3017 = vdwg.mxu0
    %v3018 = vand.u32 %v61, 7
    %v3019 = vand.u32 %v62, 7
    %v3020 = vadd.s32 %v66, 128
    %v3021 = vshra.s32 %v66, 5
    %v3022 = vshra.s32 %v3020, 5
    %vm3023 = vcmp.eq.s32.totalorder %v3018, %v3021
    %vm3024 = vcmp.eq.s32.totalorder %v3018, %v3022
    %vm3025 = vcmp.eq.s32.totalorder %v3019, %v3021
    %vm3026 = vcmp.eq.s32.totalorder %v3019, %v3022
    %v3027 = vsel %vm3023, %v3008, 0.0
    %v3028 = vsel %vm3024, %v3010, 0.0
    %v3029 = vsel %vm3025, %v3014, 0.0
    %v3030 = vsel %vm3026, %v3016, 0.0
    %v3031 = vrot.slane %v3027, 4
    %v3032 = vadd.f32 %v3027, %v3031
    %v3033 = vrot.slane %v3032, 2
    %v3034 = vadd.f32 %v3032, %v3033
    %v3035 = vrot.slane %v3034, 1
    %v3036 = vadd.f32 %v3034, %v3035
    %v3037 = vrot.slane %v3028, 4
    %v3038 = vadd.f32 %v3028, %v3037
    %v3039 = vrot.slane %v3038, 2
    %v3040 = vadd.f32 %v3038, %v3039
    %v3041 = vrot.slane %v3040, 1
    %v3042 = vadd.f32 %v3040, %v3041
    %v3043 = vrot.slane %v3029, 4
    %v3044 = vadd.f32 %v3029, %v3043
    %v3045 = vrot.slane %v3044, 2
    %v3046 = vadd.f32 %v3044, %v3045
    %v3047 = vrot.slane %v3046, 1
    %v3048 = vadd.f32 %v3046, %v3047
    %v3049 = vrot.slane %v3030, 4
    %v3050 = vadd.f32 %v3030, %v3049
    %v3051 = vrot.slane %v3050, 2
    %v3052 = vadd.f32 %v3050, %v3051
    %v3053 = vrot.slane %v3052, 1
    %v3054 = vadd.f32 %v3052, %v3053
    %v3055 = vadd.s32 %v61, 16
    %v3056 = vadd.s32 %v61, 24
    %vm3057 = vcmp.eq.s32.totalorder %v61, %v66
    %vm3058 = vcmp.eq.s32.totalorder %v62, %v66
    %vm3059 = vcmp.eq.s32.totalorder %v3055, %v66
    %vm3060 = vcmp.eq.s32.totalorder %v3056, %v66
    %v3061 = vsel %vm3057, 1, 0
    %v3062 = vsel %vm3058, 1, 0
    %v3063 = vsel %vm3059, 1, 0
    %v3064 = vsel %vm3060, 1, 0
    %v3065 = vcvt.s32.f32 %v3061
    %v3066 = vcvt.s32.f32 %v3062
    %v3067 = vcvt.s32.f32 %v3063
    %v3068 = vcvt.s32.f32 %v3064
    %vm3073 = vcmask 1041409
    %v3074 = vsel %vm3073, %v3048, %v3036
    %v3075 = vsel %vm3073, %v3054, %v3042
    %3078 = vmatprep.subr.mxu0 0.0
    %3079 = vmatpush1.msra.mxu0 %v3068
    %3080 = vmatprep.subr.mxu0 0.0
    %3081 = vmatpush1.msra.mxu0 %v3067
    %3082 = vmatprep.subr.mxu0 0.0
    %3083 = vmatpush1.msra.mxu0 %v3066
    %3084 = vmatprep.subr.mxu0 0.0
    %3085 = vmatpush1.msra.mxu0 %v3065
    %3086 = vmatprep.subr.mxu0 0.0
    %3087 = vmatpush1.msra.mxu0 %v3068
    %3088 = vmatprep.subr.mxu0 0.0
    %3089 = vmatpush1.msra.mxu0 %v3067
    %3090 = vmatprep.subr.mxu0 0.0
    %3091 = vmatpush1.msra.mxu0 %v3066
    %3092 = vmatprep.subr.mxu0 0.0
    %3093 = vmatpush1.msra.mxu0 %v3065
    %3094 = vmatprep.subr.mxu0 0.0
    %3095 = vmatpush1.msra.mxu0 %v3068
    %3096 = vmatprep.subr.mxu0 0.0
    %3097 = vmatpush1.msra.mxu0 %v3067
    %3098 = vmatprep.subr.mxu0 0.0
    %3099 = vmatpush1.msra.mxu0 %v3066
    %3100 = vmatprep.subr.mxu0 0.0
    %3101 = vmatpush1.msra.mxu0 %v3065
    %3102 = vmatprep.subr.mxu0 0.0
    %3103 = vmatpush1.msra.mxu0 %v3068
    %3104 = vmatprep.subr.mxu0 0.0
    %3105 = vmatpush1.msra.mxu0 %v3067
    %3106 = vmatprep.subr.mxu0 0.0
    %3107 = vmatpush1.msra.mxu0 %v3066
    %3108 = vmatprep.subr.mxu0 0.0
    %3109 = vmatpush1.msra.mxu0 %v3065
    %3110 = vmatprep.subr.mxu0 0.0
    %3111 = vmatpush2.msra.mxu0 %v3068
    %3112 = vmatprep.subr.mxu0 0.0
    %3113 = vmatpush2.msra.mxu0 %v3067
    %3114 = vmatprep.subr.mxu0 0.0
    %3115 = vmatpush2.msra.mxu0 %v3066
    %3116 = vmatprep.subr.mxu0 0.0
    %3117 = vmatpush2.msra.mxu0 %v3065
    %3118 = vmatprep.subr.mxu0 0.0
    %3119 = vmatpush2.msra.mxu0 %v3068
    %3120 = vmatprep.subr.mxu0 0.0
    %3121 = vmatpush2.msra.mxu0 %v3067
    %3122 = vmatprep.subr.mxu0 0.0
    %3123 = vmatpush2.msra.mxu0 %v3066
    %3124 = vmatprep.subr.mxu0 0.0
    %3125 = vmatpush2.msra.mxu0 %v3065
    %3126 = vmatprep.subr.mxu0 0.0
    %3127 = vmatpush2.msra.mxu0 %v3068
    %3128 = vmatprep.subr.mxu0 0.0
    %3129 = vmatpush2.msra.mxu0 %v3067
    %3130 = vmatprep.subr.mxu0 0.0
    %3131 = vmatpush2.msra.mxu0 %v3066
    %3132 = vmatprep.subr.mxu0 0.0
    %3133 = vmatpush2.msra.mxu0 %v3065
    %3134 = vmatprep.subr.mxu0 0.0
    %3135 = vmatpush2.msra.mxu0 %v3068
    %3136 = vmatprep.subr.mxu0 0.0
    %3137 = vmatpush2.msra.mxu0 %v3067
    %3138 = vmatprep.subr.mxu0 0.0
    %3139 = vmatpush2.msra.mxu0 %v3066
    %3140 = vmatprep.subr.mxu0 0.0
    %3141 = vmatpush2.msra.mxu0 %v3065
    %3142 = vmatprep.mubr.f32.mxu0 %v3075
    %3143 = vmatmul.mubr.f32.gmra.mxu0 %v3074
    %v3144 = vpop.f32.mrf.mxu0
    %v3145 = vadd.f32 %v41, %v3144
    %v3146 = vpop.f32.mrf.mxu0
    %3147 = vdwg.mxu0
    %v3149 = vsel %vm72, %v3145, 0
    %3151 = vmatprep.subr.mxu0 0.0
    %3152 = vmatpush1.msra.mxu0 0.0
    %3153 = vmatprep.subr.mxu0 0.0
    %3154 = vmatpush1.msra.mxu0 0.0
    %3155 = vmatprep.subr.mxu0 0.0
    %3156 = vmatpush1.msra.mxu0 0.0
    %3157 = vmatprep.subr.mxu0 0.0
    %3158 = vmatpush1.msra.mxu0 0.0
    %3159 = vmatprep.subr.mxu0 0.0
    %3160 = vmatpush1.msra.mxu0 0.0
    %3161 = vmatprep.subr.mxu0 0.0
    %3162 = vmatpush1.msra.mxu0 0.0
    %3163 = vmatprep.subr.mxu0 0.0
    %3164 = vmatpush1.msra.mxu0 0.0
    %3165 = vmatprep.subr.mxu0 0.0
    %3166 = vmatpush1.msra.mxu0 0.0
    %3167 = vmatprep.subr.mxu0 0.0
    %3168 = vmatpush1.msra.mxu0 0.0
    %3169 = vmatprep.subr.mxu0 0.0
    %3170 = vmatpush1.msra.mxu0 0.0
    %3171 = vmatprep.subr.mxu0 0.0
    %3172 = vmatpush1.msra.mxu0 0.0
    %3173 = vmatprep.subr.mxu0 0.0
    %3174 = vmatpush1.msra.mxu0 0.0
    %3175 = vmatprep.subr.mxu0 0.0
    %3176 = vmatpush1.msra.mxu0 %v51
    %3177 = vmatprep.subr.mxu0 0.0
    %3178 = vmatpush1.msra.mxu0 %v50
    %3179 = vmatprep.subr.mxu0 0.0
    %3180 = vmatpush1.msra.mxu0 %v49
    %3181 = vmatprep.subr.mxu0 0.0
    %3182 = vmatpush1.msra.mxu0 %v48
    %3183 = vmatprep.subr.mxu0 0.0
    %3184 = vmatpush2.msra.mxu0 0.0
    %3185 = vmatprep.subr.mxu0 0.0
    %3186 = vmatpush2.msra.mxu0 0.0
    %3187 = vmatprep.subr.mxu0 0.0
    %3188 = vmatpush2.msra.mxu0 0.0
    %3189 = vmatprep.subr.mxu0 0.0
    %3190 = vmatpush2.msra.mxu0 0.0
    %3191 = vmatprep.subr.mxu0 0.0
    %3192 = vmatpush2.msra.mxu0 0.0
    %3193 = vmatprep.subr.mxu0 0.0
    %3194 = vmatpush2.msra.mxu0 0.0
    %3195 = vmatprep.subr.mxu0 0.0
    %3196 = vmatpush2.msra.mxu0 0.0
    %3197 = vmatprep.subr.mxu0 0.0
    %3198 = vmatpush2.msra.mxu0 0.0
    %3199 = vmatprep.subr.mxu0 0.0
    %3200 = vmatpush2.msra.mxu0 0.0
    %3201 = vmatprep.subr.mxu0 0.0
    %3202 = vmatpush2.msra.mxu0 0.0
    %3203 = vmatprep.subr.mxu0 0.0
    %3204 = vmatpush2.msra.mxu0 0.0
    %3205 = vmatprep.subr.mxu0 0.0
    %3206 = vmatpush2.msra.mxu0 0.0
    %3207 = vmatprep.subr.mxu0 0.0
    %3208 = vmatpush2.msra.mxu0 0.0
    %3209 = vmatprep.subr.mxu0 0.0
    %3210 = vmatpush2.msra.mxu0 0.0
    %3211 = vmatprep.subr.mxu0 0.0
    %3212 = vmatpush2.msra.mxu0 0.0
    %3213 = vmatprep.subr.mxu0 0.0
    %3214 = vmatpush2.msra.mxu0 0.0
    %3215 = vmatprep.mubr.f32.mxu0 0.0
    %3216 = vmatmul.mubr.f32.gmra.mxu0 %v3149
    %v3217 = vpop.f32.mrf.mxu0
    %v3218 = vadd.f32 %v42, %v3217
    %v3219 = vpop.f32.mrf.mxu0
    %3220 = vdwg.mxu0
    %vm3221 = vcmask 25600
    %3222 = vst.msk [vmem:[#allocation5] sm:$0x3] %vm3221, %v3218
    // Predicated region
    $region34: #{tpu_custom_call.1} parent=1 // pred_check
      _
    $region35: #{tpu_custom_call.1} parent=1 // pred_check_branch
      %3224 = sbr.rel (0) target = $region37
    $region36: #{tpu_custom_call.1} parent=1 // pred_region
      %s3226 = ssub.s32 32, 32
      %3227 = vsyncadd [#allocation4], %s3226
      %s3229 = sshll.u32 [#allocation5], 4
      %s3230 = int_to_ptr.vmem [resolvable:$true] %s3229
      %3232 = dma.vmem_to_hbm [thread:$0]  %s3230, 32, %s7, [#allocation4]
    $region37: #{tpu_custom_call.1} parent=1 // pred_fallthru
      _
    // Predicated region
    $region38: #{tpu_custom_call.1} parent=1 // pred_check
      _
    $region39: #{tpu_custom_call.1} parent=1 // pred_check_branch
      %3234 = sbr.rel (0) target = $region41
    $region40: #{tpu_custom_call.1} parent=1 // pred_region
      %3235 = dma.done [#allocation4], 32
    $region41: #{tpu_custom_call.1} parent=1 // pred_fallthru
      _
    %3236 = vsyncpa [#allocation3], 1
    %3237 = vsyncpa [#allocation4], 1

</llo_original>
